<compile_context>
chip_gen: v7x
topology: tpu7x:2x2x1
jax: 0.10.0
libtpu: 0.0.40
codegen_flags: <defaults>
</compile_context>

<pallas_src>
import jax
import jax.numpy as jnp
from jax import lax
from jax.experimental import pallas as pl
from jax.experimental.pallas import tpu as pltpu

# ----------------------------- model config (small) -------------------------
INPUT_SIZE = 5
HIDDEN = 32          # H  (4H = 128 -> lane-dense gate tile)
NUM_LAYERS = 3
OUTPUT_SIZE = 16
BATCH = 2
SEQ = 8
EPS = 1e-5
PAD = 8              # padded row count for the direction-stacked state (2*BATCH -> 8)


# ----------------------------- fused forward kernel -------------------------
def fused_forward_kernel(
    x_ref,                                     # (T*PAD, INPUT_SIZE), time-major slabs, rows [0:B) real
    wih0_ref, whh0_ref, bg0_ref,               # layer 0: (Din, 8H), (2H, 4H), (1, 8H)  [i/f/o cols pre-scaled 0.5]
    wih1_ref, whh1_ref, bg1_ref,               # layer 1
    wih2_ref, whh2_ref, bg2_ref,               # layer 2
    g1_ref, be1_ref,                           # norm1 gamma/beta       (1, 2H)
    wa1_ref, ba1_ref,                          # attention linear1      (2H, 2H), (1, 2H)
    wa2_ref, ba2_ref,                          # attention linear2 row  (1, 2H), (1, 1)
    wfc1_ref, bfc1_ref,                        # fc1                    (2H, H), (1, H)
    g2_ref, be2_ref,                           # norm2 gamma/beta       (1, H)
    wfc2_ref, bfc2_ref,                        # fc2                    (H, O), (1, O)
    out_ref,                                   # (B, O)
    act_ref,                                   # VMEM (T*PAD, 2H): inter-layer activations, time-major slabs
    attn_ref,                                  # VMEM (B*T, 2H):   last-layer activations, batch-major rows
):
    B, T, H, P = BATCH, SEQ, HIDDEN, PAD
    H2, H4, H8 = 2 * H, 4 * H, 8 * H

    # Block-diagonal direction mask, built in-kernel (no captured constants):
    # rows [:B] keep lanes [:H] (forward h), rows [B:2B] keep lanes [H:] (backward h).
    row2 = lax.broadcasted_iota(jnp.int32, (P, H2), 0)
    col2 = lax.broadcasted_iota(jnp.int32, (P, H2), 1)
    dir_mask = jnp.where((row2 < B) == (col2 < H), 1.0, 0.0)

    # Keep scratch pad rows finite/zero so downstream reasoning stays trivial.
    act_ref[...] = jnp.zeros((T * P, H2), jnp.float32)

    layers = ((wih0_ref, whh0_ref, bg0_ref, False),
              (wih1_ref, whh1_ref, bg1_ref, False),
              (wih2_ref, whh2_ref, bg2_ref, True))

    for li, (wih_ref, whh_ref, bg_ref, is_last) in enumerate(layers):
        inp = x_ref[...] if li == 0 else act_ref[...]            # (T*P, Din)

        # ---- hoisted input projection: all timesteps, both directions, one matmul
        gx = (jnp.dot(inp, wih_ref[...], preferred_element_type=jnp.float32)
              + bg_ref[...])                                      # (T*P, 8H)
        whh = whh_ref[...]                                        # (2H, 4H): rows [:H]=fwd, [H:]=bwd

        # ---- pre-build the per-step gate tiles (independent of h/c -> off the chain)
        zero_pad = jnp.zeros((P - 2 * B, H4), jnp.float32)
        gates_x_steps = []
        for s in range(T):
            gx_f = gx[s * P:s * P + B, 0:H4]                      # fwd x-gates @ t = s
            gx_b = gx[(T - 1 - s) * P:(T - 1 - s) * P + B, H4:H8]  # bwd x-gates @ t = T-1-s
            gates_x_steps.append(jnp.concatenate([gx_f, gx_b, zero_pad], axis=0))  # (P, 4H)

        # ---- recurrence (fully unrolled); only h@Whh -> tanh -> update is serial
        hbd = jnp.zeros((P, H2), jnp.float32)   # block-diag hidden: rows[:B] fwd in cols[:H], rows[B:2B] bwd in cols[H:]
        c = jnp.zeros((P, H), jnp.float32)
        for s in range(T):
            gates = gates_x_steps[s] + jnp.dot(hbd, whh,
                                               preferred_element_type=jnp.float32)  # (P, 4H)
            t_all = jnp.tanh(gates)                     # single EUP pass over the whole gate tile
            i_g = 0.5 * t_all[:, 0:H] + 0.5             # sigmoid(x) = 0.5*tanh(x/2) + 0.5
            f_g = 0.5 * t_all[:, H:2 * H] + 0.5         # (i/f/o preacts were pre-halved in the wrapper)
            g_g = t_all[:, 2 * H:3 * H]
            o_g = 0.5 * t_all[:, 3 * H:4 * H] + 0.5

            c = f_g * c + i_g * g_g
            hc = o_g * jnp.tanh(c)                      # (P, H): rows[:B]=h_fwd[t=s], rows[B:2B]=h_bwd[t=T-1-s]
            hbd = jnp.concatenate([hc, hc], axis=1) * dir_mask

            # ---- store hidden outputs (off the recurrent chain)
            if not is_last:
                # time-major slabs for the next layer's projection
                act_ref[s * P:s * P + B, 0:H] = hc[0:B, :]
                act_ref[(T - 1 - s) * P:(T - 1 - s) * P + B, H:H2] = hc[B:2 * B, :]
            else:
                # batch-major rows (b*T + t) directly in the order the head consumes
                for r in range(B):
                    attn_ref[r * T + s:r * T + s + 1, 0:H] = hc[r:r + 1, :]
                    attn_ref[r * T + (T - 1 - s):r * T + (T - 1 - s) + 1, H:H2] = hc[B + r:B + r + 1, :]

    # ------------------------------- head -----------------------------------
    xb = attn_ref[...]                                   # (B*T, 2H), every row real

    # norm1 (LayerNorm over last dim, biased variance)
    mu = jnp.mean(xb, axis=-1, keepdims=True)
    var = jnp.mean((xb - mu) ** 2, axis=-1, keepdims=True)
    xn = (xb - mu) * lax.rsqrt(var + EPS) * g1_ref[...] + be1_ref[...]

    # attention: Linear -> tanh -> (2H,1) projection as a VPU lane reduction
    a1 = jnp.tanh(jnp.dot(xn, wa1_ref[...], preferred_element_type=jnp.float32)
                  + ba1_ref[...])                                            # (B*T, 2H)
    sc = jnp.sum(a1 * wa2_ref[...], axis=-1, keepdims=True) + ba2_ref[...]   # (B*T, 1)

    att = []
    for r in range(B):                       # each example = one aligned 8-row slab
        scb = sc[r * T:(r + 1) * T, :]
        xnb = xn[r * T:(r + 1) * T, :]
        m = jnp.max(scb, axis=0, keepdims=True)
        e = jnp.exp(scb - m)
        w = e / jnp.sum(e, axis=0, keepdims=True)         # exact divide (no approx reciprocal)
        att.append(jnp.sum(w * xnb, axis=0, keepdims=True))                  # (1, 2H)
    attended = jnp.concatenate(att, axis=0)                                  # (B, 2H)

    # dropout(p=0.3) layers are identity in eval mode
    h1 = jnp.maximum(
        jnp.dot(attended, wfc1_ref[...], preferred_element_type=jnp.float32)
        + bfc1_ref[...], 0.0)                                                # (B, H)

    mu2 = jnp.mean(h1, axis=-1, keepdims=True)
    var2 = jnp.mean((h1 - mu2) ** 2, axis=-1, keepdims=True)
    h1n = (h1 - mu2) * lax.rsqrt(var2 + EPS) * g2_ref[...] + be2_ref[...]

    out_ref[...] = (jnp.dot(h1n, wfc2_ref[...], preferred_element_type=jnp.float32)
                    + bfc2_ref[...])


# ----------------------------- wrapper ---------------------------------------
def _scale_ifo(w):
    """Scale i/f/o gate columns of a (..., 4H) weight/bias by 0.5 so the kernel
    can recover sigmoid(x) = 0.5*tanh(x/2) + 0.5 from a single tanh pass."""
    H = HIDDEN
    return jnp.concatenate(
        [0.5 * w[..., :2 * H], w[..., 2 * H:3 * H], 0.5 * w[..., 3 * H:]], axis=-1)


def pallas_forward(x_btd, params):
    B, T, _ = x_btd.shape
    # time-major, row-padded input: row t*PAD + b = x[b, t]; rows b >= B are zero
    x_tb = jnp.swapaxes(x_btd, 0, 1)                                        # (T, B, Din)
    x_pad = jnp.zeros((T, PAD, INPUT_SIZE), jnp.float32).at[:, :B, :].set(x_tb)
    x_flat = x_pad.reshape(T * PAD, INPUT_SIZE)

    lstm_args = []
    for layer in range(NUM_LAYERS):
        pf, pb = params["lstm"][layer]
        lstm_args += [
            jnp.concatenate([_scale_ifo(pf["w_ih"]), _scale_ifo(pb["w_ih"])], axis=1),  # (Din, 8H)
            jnp.concatenate([_scale_ifo(pf["w_hh"]), _scale_ifo(pb["w_hh"])], axis=0),  # (2H, 4H)
            jnp.concatenate([_scale_ifo(pf["b"]), _scale_ifo(pb["b"])], axis=1),        # (1, 8H)
        ]

    hp = params["head"]
    head_args = [hp["g1"], hp["be1"], hp["wa1"], hp["ba1"],
                 jnp.transpose(hp["wa2"]), hp["ba2"],
                 hp["w1"], hp["b1"], hp["g2"], hp["be2"], hp["w2"], hp["b2"]]

    return pl.pallas_call(
        fused_forward_kernel,
        out_shape=jax.ShapeDtypeStruct((B, OUTPUT_SIZE), jnp.float32),
        scratch_shapes=[
            pltpu.VMEM((SEQ * PAD, 2 * HIDDEN), jnp.float32),      # time-major inter-layer activations
            pltpu.VMEM((BATCH * SEQ, 2 * HIDDEN), jnp.float32),    # batch-major last-layer activations
        ],
    )(x_flat, *lstm_args, *head_args)


# ----------------------------- pure-JAX reference ----------------------------
def ref_lstm_direction(x_btd, w_ih, w_hh, b, reverse):
    H = w_hh.shape[0]
    xs = x_btd[:, ::-1, :] if reverse else x_btd

    def step(carry, x_t):
        h, c = carry
        gates = x_t @ w_ih + h @ w_hh + b
        i = jax.nn.sigmoid(gates[:, :H])
        f = jax.nn.sigmoid(gates[:, H:2 * H])
        g = jnp.tanh(gates[:, 2 * H:3 * H])
        o = jax.nn.sigmoid(gates[:, 3 * H:4 * H])
        c = f * c + i * g
        h = o * jnp.tanh(c)
        return (h, c), h

    B = xs.shape[0]
    init = (jnp.zeros((B, H), jnp.float32), jnp.zeros((B, H), jnp.float32))
    _, hs = lax.scan(step, init, jnp.swapaxes(xs, 0, 1))
    hs = jnp.swapaxes(hs, 0, 1)
    return hs[:, ::-1, :] if reverse else hs


def ref_forward(x_btd, params):
    seq = x_btd
    for layer in range(NUM_LAYERS):
        outs = []
        for d, reverse in enumerate((False, True)):
            p = params["lstm"][layer][d]
            outs.append(ref_lstm_direction(seq, p["w_ih"], p["w_hh"], p["b"], reverse))
        seq = jnp.concatenate(outs, axis=-1)

    hp = params["head"]
    x = seq
    mu = jnp.mean(x, axis=-1, keepdims=True)
    var = jnp.mean((x - mu) ** 2, axis=-1, keepdims=True)
    xn = (x - mu) / jnp.sqrt(var + EPS) * hp["g1"] + hp["be1"]

    a1 = jnp.tanh(jnp.einsum('btd,de->bte', xn, hp["wa1"]) + hp["ba1"])
    sc = jnp.einsum('bte,eo->bto', a1, hp["wa2"]) + hp["ba2"]
    w = jax.nn.softmax(sc, axis=1)
    attended = jnp.sum(w * xn, axis=1)

    h1 = jnp.maximum(attended @ hp["w1"] + hp["b1"], 0.0)
    mu2 = jnp.mean(h1, axis=-1, keepdims=True)
    var2 = jnp.mean((h1 - mu2) ** 2, axis=-1, keepdims=True)
    h1n = (h1 - mu2) / jnp.sqrt(var2 + EPS) * hp["g2"] + hp["be2"]
    return h1n @ hp["w2"] + hp["b2"]


# ----------------------------- deterministic params -------------------------
def make_params(key):
    keys = iter(jax.random.split(key, 128))
    H, H2, H4 = HIDDEN, 2 * HIDDEN, 4 * HIDDEN

    lstm = []
    for layer in range(NUM_LAYERS):
        D = INPUT_SIZE if layer == 0 else H2
        dirs = []
        for _ in range(2):
            w_ih = 0.1 * jax.random.normal(next(keys), (D, H4), jnp.float32)
            w_hh = 0.1 * jax.random.normal(next(keys), (H, H4), jnp.float32)
            b_ih = 0.05 * jax.random.normal(next(keys), (1, H4), jnp.float32)
            b_hh = 0.05 * jax.random.normal(next(keys), (1, H4), jnp.float32)
            dirs.append({"w_ih": w_ih, "w_hh": w_hh, "b": b_ih + b_hh})
        lstm.append(dirs)

    head = {
        "g1": 1.0 + 0.05 * jax.random.normal(next(keys), (1, H2), jnp.float32),
        "be1": 0.05 * jax.random.normal(next(keys), (1, H2), jnp.float32),
        "wa1": 0.1 * jax.random.normal(next(keys), (H2, H2), jnp.float32),
        "ba1": 0.05 * jax.random.normal(next(keys), (1, H2), jnp.float32),
        "wa2": 0.1 * jax.random.normal(next(keys), (H2, 1), jnp.float32),
        "ba2": 0.05 * jax.random.normal(next(keys), (1, 1), jnp.float32),
        "w1": 0.1 * jax.random.normal(next(keys), (H2, H), jnp.float32),
        "b1": 0.05 * jax.random.normal(next(keys), (1, H), jnp.float32),
        "g2": 1.0 + 0.05 * jax.random.normal(next(keys), (1, H), jnp.float32),
        "be2": 0.05 * jax.random.normal(next(keys), (1, H), jnp.float32),
        "w2": 0.1 * jax.random.normal(next(keys), (H, OUTPUT_SIZE), jnp.float32),
        "b2": 0.05 * jax.random.normal(next(keys), (1, OUTPUT_SIZE), jnp.float32),
    }
    return {"lstm": lstm, "head": head}


# ----------------------------- main ------------------------------------------
if __name__ == "__main__":
    key = jax.random.PRNGKey(0)
    k_x, k_p = jax.random.split(key)
    x = jax.random.normal(k_x, (BATCH, SEQ, INPUT_SIZE), jnp.float32)
    params = make_params(k_p)

    fwd = jax.jit(pallas_forward)
    out = jax.block_until_ready(fwd(x, params))
    assert out.shape == (BATCH, OUTPUT_SIZE), out.shape

    ref = jax.block_until_ready(ref_forward(x, params))
    max_err = float(jnp.max(jnp.abs(out - ref)))
    # exact softmax division restored; remaining delta is MXU f32 pass rounding +
    # the exact sigmoid-via-tanh identity (ULP-level)
    assert jnp.allclose(out, ref, atol=2e-3, rtol=2e-3), ("mismatch vs reference", max_err)

    print("KERNEL_OK")
</pallas_src>

<mosaic_0001>
module attributes {stable_mosaic.version = 11 : i64} {
  func.func @fused_forward_kernel(%arg0: memref<64x5xf32, #tpu.memory_space<vmem>>, %arg1: memref<5x256xf32, #tpu.memory_space<vmem>>, %arg2: memref<64x128xf32, #tpu.memory_space<vmem>>, %arg3: memref<1x256xf32, #tpu.memory_space<vmem>>, %arg4: memref<64x256xf32, #tpu.memory_space<vmem>>, %arg5: memref<64x128xf32, #tpu.memory_space<vmem>>, %arg6: memref<1x256xf32, #tpu.memory_space<vmem>>, %arg7: memref<64x256xf32, #tpu.memory_space<vmem>>, %arg8: memref<64x128xf32, #tpu.memory_space<vmem>>, %arg9: memref<1x256xf32, #tpu.memory_space<vmem>>, %arg10: memref<1x64xf32, #tpu.memory_space<vmem>>, %arg11: memref<1x64xf32, #tpu.memory_space<vmem>>, %arg12: memref<64x64xf32, #tpu.memory_space<vmem>>, %arg13: memref<1x64xf32, #tpu.memory_space<vmem>>, %arg14: memref<1x64xf32, #tpu.memory_space<vmem>>, %arg15: memref<1x1xf32, #tpu.memory_space<vmem>>, %arg16: memref<64x32xf32, #tpu.memory_space<vmem>>, %arg17: memref<1x32xf32, #tpu.memory_space<vmem>>, %arg18: memref<1x32xf32, #tpu.memory_space<vmem>>, %arg19: memref<1x32xf32, #tpu.memory_space<vmem>>, %arg20: memref<32x16xf32, #tpu.memory_space<vmem>>, %arg21: memref<1x16xf32, #tpu.memory_space<vmem>>, %arg22: memref<2x16xf32, #tpu.memory_space<vmem>>, %arg23: memref<64x64xf32, #tpu.memory_space<vmem>>, %arg24: memref<16x64xf32, #tpu.memory_space<vmem>>) attributes {dimension_semantics = [], scalar_prefetch = 0 : i64, scratch_operands = 2 : i64, tpu.core_type = #tpu.core_type<tc>} {
    %0 = tpu.iota {dimensions = array<i32: 0>} : vector<8x64xi32>
    %1 = tpu.iota {dimensions = array<i32: 1>} : vector<8x64xi32>
    %c2_i32 = arith.constant 2 : i32
    %2 = vector.broadcast %c2_i32 : i32 to vector<8x64xi32>
    %3 = arith.cmpi slt, %0, %2 : vector<8x64xi32>
    %c32_i32 = arith.constant 32 : i32
    %4 = vector.broadcast %c32_i32 : i32 to vector<8x64xi32>
    %5 = arith.cmpi slt, %1, %4 : vector<8x64xi32>
    %6 = arith.xori %3, %5 : vector<8x64xi1>
    %cst = arith.constant dense<true> : vector<8x64xi1>
    %7 = arith.xori %6, %cst : vector<8x64xi1>
    %cst_0 = arith.constant 1.000000e+00 : f32
    %cst_1 = arith.constant 0.000000e+00 : f32
    %8 = vector.broadcast %cst_0 : f32 to vector<8x64xf32>
    %9 = vector.broadcast %cst_1 : f32 to vector<8x64xf32>
    %10 = arith.select %7, %8, %9 : vector<8x64xi1>, vector<8x64xf32>
    %cst_2 = arith.constant 0.000000e+00 : f32
    %11 = vector.broadcast %cst_2 : f32 to vector<64x64xf32>
    %c0 = arith.constant 0 : index
    %c0_3 = arith.constant 0 : index
    %12 = vector.load %arg23[%c0, %c0_3] : memref<64x64xf32, #tpu.memory_space<vmem>>, vector<64x64xf32>
    tpu.vector_store %arg23[%c0, %c0_3], %11 {strides = array<i32>} : memref<64x64xf32, #tpu.memory_space<vmem>>, vector<64x64xf32>,
    %c0_4 = arith.constant 0 : index
    %c0_5 = arith.constant 0 : index
    %13 = vector.load %arg0[%c0_4, %c0_5] : memref<64x5xf32, #tpu.memory_space<vmem>>, vector<64x5xf32>
    %c0_6 = arith.constant 0 : index
    %c0_7 = arith.constant 0 : index
    %14 = vector.load %arg1[%c0_6, %c0_7] : memref<5x256xf32, #tpu.memory_space<vmem>>, vector<5x256xf32>
    %cst_8 = arith.constant dense<0.000000e+00> : vector<64x256xf32>
    %15 = tpu.matmul %13, %14, %cst_8 {dimension_numbers = #tpu.dot_dimension_numbers<[1], [0], [0], [1], [0, 0, 1, 1], [], []>} : vector<64x5xf32>, vector<5x256xf32>, vector<64x256xf32> -> vector<64x256xf32>
    %c0_9 = arith.constant 0 : index
    %c0_10 = arith.constant 0 : index
    %16 = vector.load %arg3[%c0_9, %c0_10] : memref<1x256xf32, #tpu.memory_space<vmem>>, vector<1x256xf32>
    %17 = vector.broadcast %16 : vector<1x256xf32> to vector<64x256xf32>
    %18 = arith.addf %15, %17 : vector<64x256xf32>
    %c0_11 = arith.constant 0 : index
    %c0_12 = arith.constant 0 : index
    %19 = vector.load %arg2[%c0_11, %c0_12] : memref<64x128xf32, #tpu.memory_space<vmem>>, vector<64x128xf32>
    %cst_13 = arith.constant 0.000000e+00 : f32
    %20 = vector.broadcast %cst_13 : f32 to vector<4x128xf32>
    %21 = vector.extract_strided_slice %18 {offsets = [0, 0], sizes = [2, 128], strides = [1, 1]} : vector<64x256xf32> to vector<2x128xf32>
    %22 = vector.extract_strided_slice %18 {offsets = [56, 128], sizes = [2, 128], strides = [1, 1]} : vector<64x256xf32> to vector<2x128xf32>
    %23 = tpu.concatenate %21, %22, %20 in 0 : vector<2x128xf32>, vector<2x128xf32>, vector<4x128xf32> -> vector<8x128xf32>
    %24 = vector.extract_strided_slice %18 {offsets = [8, 0], sizes = [2, 128], strides = [1, 1]} : vector<64x256xf32> to vector<2x128xf32>
    %25 = vector.extract_strided_slice %18 {offsets = [48, 128], sizes = [2, 128], strides = [1, 1]} : vector<64x256xf32> to vector<2x128xf32>
    %26 = tpu.concatenate %24, %25, %20 in 0 : vector<2x128xf32>, vector<2x128xf32>, vector<4x128xf32> -> vector<8x128xf32>
    %27 = vector.extract_strided_slice %18 {offsets = [16, 0], sizes = [2, 128], strides = [1, 1]} : vector<64x256xf32> to vector<2x128xf32>
    %28 = vector.extract_strided_slice %18 {offsets = [40, 128], sizes = [2, 128], strides = [1, 1]} : vector<64x256xf32> to vector<2x128xf32>
    %29 = tpu.concatenate %27, %28, %20 in 0 : vector<2x128xf32>, vector<2x128xf32>, vector<4x128xf32> -> vector<8x128xf32>
    %30 = vector.extract_strided_slice %18 {offsets = [24, 0], sizes = [2, 128], strides = [1, 1]} : vector<64x256xf32> to vector<2x128xf32>
    %31 = vector.extract_strided_slice %18 {offsets = [32, 128], sizes = [2, 128], strides = [1, 1]} : vector<64x256xf32> to vector<2x128xf32>
    %32 = tpu.concatenate %30, %31, %20 in 0 : vector<2x128xf32>, vector<2x128xf32>, vector<4x128xf32> -> vector<8x128xf32>
    %33 = vector.extract_strided_slice %18 {offsets = [32, 0], sizes = [2, 128], strides = [1, 1]} : vector<64x256xf32> to vector<2x128xf32>
    %34 = vector.extract_strided_slice %18 {offsets = [24, 128], sizes = [2, 128], strides = [1, 1]} : vector<64x256xf32> to vector<2x128xf32>
    %35 = tpu.concatenate %33, %34, %20 in 0 : vector<2x128xf32>, vector<2x128xf32>, vector<4x128xf32> -> vector<8x128xf32>
    %36 = vector.extract_strided_slice %18 {offsets = [40, 0], sizes = [2, 128], strides = [1, 1]} : vector<64x256xf32> to vector<2x128xf32>
    %37 = vector.extract_strided_slice %18 {offsets = [16, 128], sizes = [2, 128], strides = [1, 1]} : vector<64x256xf32> to vector<2x128xf32>
    %38 = tpu.concatenate %36, %37, %20 in 0 : vector<2x128xf32>, vector<2x128xf32>, vector<4x128xf32> -> vector<8x128xf32>
    %39 = vector.extract_strided_slice %18 {offsets = [48, 0], sizes = [2, 128], strides = [1, 1]} : vector<64x256xf32> to vector<2x128xf32>
    %40 = vector.extract_strided_slice %18 {offsets = [8, 128], sizes = [2, 128], strides = [1, 1]} : vector<64x256xf32> to vector<2x128xf32>
    %41 = tpu.concatenate %39, %40, %20 in 0 : vector<2x128xf32>, vector<2x128xf32>, vector<4x128xf32> -> vector<8x128xf32>
    %42 = vector.extract_strided_slice %18 {offsets = [56, 0], sizes = [2, 128], strides = [1, 1]} : vector<64x256xf32> to vector<2x128xf32>
    %43 = vector.extract_strided_slice %18 {offsets = [0, 128], sizes = [2, 128], strides = [1, 1]} : vector<64x256xf32> to vector<2x128xf32>
    %44 = tpu.concatenate %42, %43, %20 in 0 : vector<2x128xf32>, vector<2x128xf32>, vector<4x128xf32> -> vector<8x128xf32>
    %cst_14 = arith.constant 0.000000e+00 : f32
    %45 = vector.broadcast %cst_14 : f32 to vector<8x64xf32>
    %cst_15 = arith.constant 0.000000e+00 : f32
    %46 = vector.broadcast %cst_15 : f32 to vector<8x32xf32>
    %cst_16 = arith.constant dense<0.000000e+00> : vector<8x128xf32>
    %47 = tpu.matmul %45, %19, %cst_16 {dimension_numbers = #tpu.dot_dimension_numbers<[1], [0], [0], [1], [0, 0, 1, 1], [], []>} : vector<8x64xf32>, vector<64x128xf32>, vector<8x128xf32> -> vector<8x128xf32>
    %48 = arith.addf %23, %47 : vector<8x128xf32>
    %49 = math.tanh %48 : vector<8x128xf32>
    %50 = vector.extract_strided_slice %49 {offsets = [0, 0], sizes = [8, 32], strides = [1, 1]} : vector<8x128xf32> to vector<8x32xf32>
    %cst_17 = arith.constant 5.000000e-01 : f32
    %51 = vector.broadcast %cst_17 : f32 to vector<8x32xf32>
    %52 = arith.mulf %51, %50 : vector<8x32xf32>
    %cst_18 = arith.constant 5.000000e-01 : f32
    %53 = vector.broadcast %cst_18 : f32 to vector<8x32xf32>
    %54 = arith.addf %52, %53 : vector<8x32xf32>
    %55 = vector.extract_strided_slice %49 {offsets = [0, 32], sizes = [8, 32], strides = [1, 1]} : vector<8x128xf32> to vector<8x32xf32>
    %cst_19 = arith.constant 5.000000e-01 : f32
    %56 = vector.broadcast %cst_19 : f32 to vector<8x32xf32>
    %57 = arith.mulf %56, %55 : vector<8x32xf32>
    %cst_20 = arith.constant 5.000000e-01 : f32
    %58 = vector.broadcast %cst_20 : f32 to vector<8x32xf32>
    %59 = arith.addf %57, %58 : vector<8x32xf32>
    %60 = vector.extract_strided_slice %49 {offsets = [0, 64], sizes = [8, 32], strides = [1, 1]} : vector<8x128xf32> to vector<8x32xf32>
    %61 = vector.extract_strided_slice %49 {offsets = [0, 96], sizes = [8, 32], strides = [1, 1]} : vector<8x128xf32> to vector<8x32xf32>
    %cst_21 = arith.constant 5.000000e-01 : f32
    %62 = vector.broadcast %cst_21 : f32 to vector<8x32xf32>
    %63 = arith.mulf %62, %61 : vector<8x32xf32>
    %cst_22 = arith.constant 5.000000e-01 : f32
    %64 = vector.broadcast %cst_22 : f32 to vector<8x32xf32>
    %65 = arith.addf %63, %64 : vector<8x32xf32>
    %66 = arith.mulf %59, %46 : vector<8x32xf32>
    %67 = arith.mulf %54, %60 : vector<8x32xf32>
    %68 = arith.addf %66, %67 : vector<8x32xf32>
    %69 = math.tanh %68 : vector<8x32xf32>
    %70 = arith.mulf %65, %69 : vector<8x32xf32>
    %71 = tpu.concatenate %70, %70 in 1 : vector<8x32xf32>, vector<8x32xf32> -> vector<8x64xf32>
    %72 = arith.mulf %71, %10 : vector<8x64xf32>
    %73 = vector.extract_strided_slice %70 {offsets = [0, 0], sizes = [2, 32], strides = [1, 1]} : vector<8x32xf32> to vector<2x32xf32>
    %c0_23 = arith.constant 0 : index
    %c0_24 = arith.constant 0 : index
    %74 = vector.load %arg23[%c0_23, %c0_24] : memref<64x64xf32, #tpu.memory_space<vmem>>, vector<2x32xf32>
    tpu.vector_store %arg23[%c0_23, %c0_24], %73 {strides = array<i32>} : memref<64x64xf32, #tpu.memory_space<vmem>>, vector<2x32xf32>,
    %75 = vector.extract_strided_slice %70 {offsets = [2, 0], sizes = [2, 32], strides = [1, 1]} : vector<8x32xf32> to vector<2x32xf32>
    %c56 = arith.constant 56 : index
    %c32 = arith.constant 32 : index
    %76 = vector.load %arg23[%c56, %c32] : memref<64x64xf32, #tpu.memory_space<vmem>>, vector<2x32xf32>
    tpu.vector_store %arg23[%c56, %c32], %75 {strides = array<i32>} : memref<64x64xf32, #tpu.memory_space<vmem>>, vector<2x32xf32>,
    %cst_25 = arith.constant dense<0.000000e+00> : vector<8x128xf32>
    %77 = tpu.matmul %72, %19, %cst_25 {dimension_numbers = #tpu.dot_dimension_numbers<[1], [0], [0], [1], [0, 0, 1, 1], [], []>} : vector<8x64xf32>, vector<64x128xf32>, vector<8x128xf32> -> vector<8x128xf32>
    %78 = arith.addf %26, %77 : vector<8x128xf32>
    %79 = math.tanh %78 : vector<8x128xf32>
    %80 = vector.extract_strided_slice %79 {offsets = [0, 0], sizes = [8, 32], strides = [1, 1]} : vector<8x128xf32> to vector<8x32xf32>
    %cst_26 = arith.constant 5.000000e-01 : f32
    %81 = vector.broadcast %cst_26 : f32 to vector<8x32xf32>
    %82 = arith.mulf %81, %80 : vector<8x32xf32>
    %cst_27 = arith.constant 5.000000e-01 : f32
    %83 = vector.broadcast %cst_27 : f32 to vector<8x32xf32>
    %84 = arith.addf %82, %83 : vector<8x32xf32>
    %85 = vector.extract_strided_slice %79 {offsets = [0, 32], sizes = [8, 32], strides = [1, 1]} : vector<8x128xf32> to vector<8x32xf32>
    %cst_28 = arith.constant 5.000000e-01 : f32
    %86 = vector.broadcast %cst_28 : f32 to vector<8x32xf32>
    %87 = arith.mulf %86, %85 : vector<8x32xf32>
    %cst_29 = arith.constant 5.000000e-01 : f32
    %88 = vector.broadcast %cst_29 : f32 to vector<8x32xf32>
    %89 = arith.addf %87, %88 : vector<8x32xf32>
    %90 = vector.extract_strided_slice %79 {offsets = [0, 64], sizes = [8, 32], strides = [1, 1]} : vector<8x128xf32> to vector<8x32xf32>
    %91 = vector.extract_strided_slice %79 {offsets = [0, 96], sizes = [8, 32], strides = [1, 1]} : vector<8x128xf32> to vector<8x32xf32>
    %cst_30 = arith.constant 5.000000e-01 : f32
    %92 = vector.broadcast %cst_30 : f32 to vector<8x32xf32>
    %93 = arith.mulf %92, %91 : vector<8x32xf32>
    %cst_31 = arith.constant 5.000000e-01 : f32
    %94 = vector.broadcast %cst_31 : f32 to vector<8x32xf32>
    %95 = arith.addf %93, %94 : vector<8x32xf32>
    %96 = arith.mulf %89, %68 : vector<8x32xf32>
    %97 = arith.mulf %84, %90 : vector<8x32xf32>
    %98 = arith.addf %96, %97 : vector<8x32xf32>
    %99 = math.tanh %98 : vector<8x32xf32>
    %100 = arith.mulf %95, %99 : vector<8x32xf32>
    %101 = tpu.concatenate %100, %100 in 1 : vector<8x32xf32>, vector<8x32xf32> -> vector<8x64xf32>
    %102 = arith.mulf %101, %10 : vector<8x64xf32>
    %103 = vector.extract_strided_slice %100 {offsets = [0, 0], sizes = [2, 32], strides = [1, 1]} : vector<8x32xf32> to vector<2x32xf32>
    %c8 = arith.constant 8 : index
    %c0_32 = arith.constant 0 : index
    %104 = vector.load %arg23[%c8, %c0_32] : memref<64x64xf32, #tpu.memory_space<vmem>>, vector<2x32xf32>
    tpu.vector_store %arg23[%c8, %c0_32], %103 {strides = array<i32>} : memref<64x64xf32, #tpu.memory_space<vmem>>, vector<2x32xf32>,
    %105 = vector.extract_strided_slice %100 {offsets = [2, 0], sizes = [2, 32], strides = [1, 1]} : vector<8x32xf32> to vector<2x32xf32>
    %c48 = arith.constant 48 : index
    %c32_33 = arith.constant 32 : index
    %106 = vector.load %arg23[%c48, %c32_33] : memref<64x64xf32, #tpu.memory_space<vmem>>, vector<2x32xf32>
    tpu.vector_store %arg23[%c48, %c32_33], %105 {strides = array<i32>} : memref<64x64xf32, #tpu.memory_space<vmem>>, vector<2x32xf32>,
    %cst_34 = arith.constant dense<0.000000e+00> : vector<8x128xf32>
    %107 = tpu.matmul %102, %19, %cst_34 {dimension_numbers = #tpu.dot_dimension_numbers<[1], [0], [0], [1], [0, 0, 1, 1], [], []>} : vector<8x64xf32>, vector<64x128xf32>, vector<8x128xf32> -> vector<8x128xf32>
    %108 = arith.addf %29, %107 : vector<8x128xf32>
    %109 = math.tanh %108 : vector<8x128xf32>
    %110 = vector.extract_strided_slice %109 {offsets = [0, 0], sizes = [8, 32], strides = [1, 1]} : vector<8x128xf32> to vector<8x32xf32>
    %cst_35 = arith.constant 5.000000e-01 : f32
    %111 = vector.broadcast %cst_35 : f32 to vector<8x32xf32>
    %112 = arith.mulf %111, %110 : vector<8x32xf32>
    %cst_36 = arith.constant 5.000000e-01 : f32
    %113 = vector.broadcast %cst_36 : f32 to vector<8x32xf32>
    %114 = arith.addf %112, %113 : vector<8x32xf32>
    %115 = vector.extract_strided_slice %109 {offsets = [0, 32], sizes = [8, 32], strides = [1, 1]} : vector<8x128xf32> to vector<8x32xf32>
    %cst_37 = arith.constant 5.000000e-01 : f32
    %116 = vector.broadcast %cst_37 : f32 to vector<8x32xf32>
    %117 = arith.mulf %116, %115 : vector<8x32xf32>
    %cst_38 = arith.constant 5.000000e-01 : f32
    %118 = vector.broadcast %cst_38 : f32 to vector<8x32xf32>
    %119 = arith.addf %117, %118 : vector<8x32xf32>
    %120 = vector.extract_strided_slice %109 {offsets = [0, 64], sizes = [8, 32], strides = [1, 1]} : vector<8x128xf32> to vector<8x32xf32>
    %121 = vector.extract_strided_slice %109 {offsets = [0, 96], sizes = [8, 32], strides = [1, 1]} : vector<8x128xf32> to vector<8x32xf32>
    %cst_39 = arith.constant 5.000000e-01 : f32
    %122 = vector.broadcast %cst_39 : f32 to vector<8x32xf32>
    %123 = arith.mulf %122, %121 : vector<8x32xf32>
    %cst_40 = arith.constant 5.000000e-01 : f32
    %124 = vector.broadcast %cst_40 : f32 to vector<8x32xf32>
    %125 = arith.addf %123, %124 : vector<8x32xf32>
    %126 = arith.mulf %119, %98 : vector<8x32xf32>
    %127 = arith.mulf %114, %120 : vector<8x32xf32>
    %128 = arith.addf %126, %127 : vector<8x32xf32>
    %129 = math.tanh %128 : vector<8x32xf32>
    %130 = arith.mulf %125, %129 : vector<8x32xf32>
    %131 = tpu.concatenate %130, %130 in 1 : vector<8x32xf32>, vector<8x32xf32> -> vector<8x64xf32>
    %132 = arith.mulf %131, %10 : vector<8x64xf32>
    %133 = vector.extract_strided_slice %130 {offsets = [0, 0], sizes = [2, 32], strides = [1, 1]} : vector<8x32xf32> to vector<2x32xf32>
    %c16 = arith.constant 16 : index
    %c0_41 = arith.constant 0 : index
    %134 = vector.load %arg23[%c16, %c0_41] : memref<64x64xf32, #tpu.memory_space<vmem>>, vector<2x32xf32>
    tpu.vector_store %arg23[%c16, %c0_41], %133 {strides = array<i32>} : memref<64x64xf32, #tpu.memory_space<vmem>>, vector<2x32xf32>,
    %135 = vector.extract_strided_slice %130 {offsets = [2, 0], sizes = [2, 32], strides = [1, 1]} : vector<8x32xf32> to vector<2x32xf32>
    %c40 = arith.constant 40 : index
    %c32_42 = arith.constant 32 : index
    %136 = vector.load %arg23[%c40, %c32_42] : memref<64x64xf32, #tpu.memory_space<vmem>>, vector<2x32xf32>
    tpu.vector_store %arg23[%c40, %c32_42], %135 {strides = array<i32>} : memref<64x64xf32, #tpu.memory_space<vmem>>, vector<2x32xf32>,
    %cst_43 = arith.constant dense<0.000000e+00> : vector<8x128xf32>
    %137 = tpu.matmul %132, %19, %cst_43 {dimension_numbers = #tpu.dot_dimension_numbers<[1], [0], [0], [1], [0, 0, 1, 1], [], []>} : vector<8x64xf32>, vector<64x128xf32>, vector<8x128xf32> -> vector<8x128xf32>
    %138 = arith.addf %32, %137 : vector<8x128xf32>
    %139 = math.tanh %138 : vector<8x128xf32>
    %140 = vector.extract_strided_slice %139 {offsets = [0, 0], sizes = [8, 32], strides = [1, 1]} : vector<8x128xf32> to vector<8x32xf32>
    %cst_44 = arith.constant 5.000000e-01 : f32
    %141 = vector.broadcast %cst_44 : f32 to vector<8x32xf32>
    %142 = arith.mulf %141, %140 : vector<8x32xf32>
    %cst_45 = arith.constant 5.000000e-01 : f32
    %143 = vector.broadcast %cst_45 : f32 to vector<8x32xf32>
    %144 = arith.addf %142, %143 : vector<8x32xf32>
    %145 = vector.extract_strided_slice %139 {offsets = [0, 32], sizes = [8, 32], strides = [1, 1]} : vector<8x128xf32> to vector<8x32xf32>
    %cst_46 = arith.constant 5.000000e-01 : f32
    %146 = vector.broadcast %cst_46 : f32 to vector<8x32xf32>
    %147 = arith.mulf %146, %145 : vector<8x32xf32>
    %cst_47 = arith.constant 5.000000e-01 : f32
    %148 = vector.broadcast %cst_47 : f32 to vector<8x32xf32>
    %149 = arith.addf %147, %148 : vector<8x32xf32>
    %150 = vector.extract_strided_slice %139 {offsets = [0, 64], sizes = [8, 32], strides = [1, 1]} : vector<8x128xf32> to vector<8x32xf32>
    %151 = vector.extract_strided_slice %139 {offsets = [0, 96], sizes = [8, 32], strides = [1, 1]} : vector<8x128xf32> to vector<8x32xf32>
    %cst_48 = arith.constant 5.000000e-01 : f32
    %152 = vector.broadcast %cst_48 : f32 to vector<8x32xf32>
    %153 = arith.mulf %152, %151 : vector<8x32xf32>
    %cst_49 = arith.constant 5.000000e-01 : f32
    %154 = vector.broadcast %cst_49 : f32 to vector<8x32xf32>
    %155 = arith.addf %153, %154 : vector<8x32xf32>
    %156 = arith.mulf %149, %128 : vector<8x32xf32>
    %157 = arith.mulf %144, %150 : vector<8x32xf32>
    %158 = arith.addf %156, %157 : vector<8x32xf32>
    %159 = math.tanh %158 : vector<8x32xf32>
    %160 = arith.mulf %155, %159 : vector<8x32xf32>
    %161 = tpu.concatenate %160, %160 in 1 : vector<8x32xf32>, vector<8x32xf32> -> vector<8x64xf32>
    %162 = arith.mulf %161, %10 : vector<8x64xf32>
    %163 = vector.extract_strided_slice %160 {offsets = [0, 0], sizes = [2, 32], strides = [1, 1]} : vector<8x32xf32> to vector<2x32xf32>
    %c24 = arith.constant 24 : index
    %c0_50 = arith.constant 0 : index
    %164 = vector.load %arg23[%c24, %c0_50] : memref<64x64xf32, #tpu.memory_space<vmem>>, vector<2x32xf32>
    tpu.vector_store %arg23[%c24, %c0_50], %163 {strides = array<i32>} : memref<64x64xf32, #tpu.memory_space<vmem>>, vector<2x32xf32>,
    %165 = vector.extract_strided_slice %160 {offsets = [2, 0], sizes = [2, 32], strides = [1, 1]} : vector<8x32xf32> to vector<2x32xf32>
    %c32_51 = arith.constant 32 : index
    %c32_52 = arith.constant 32 : index
    %166 = vector.load %arg23[%c32_51, %c32_52] : memref<64x64xf32, #tpu.memory_space<vmem>>, vector<2x32xf32>
    tpu.vector_store %arg23[%c32_51, %c32_52], %165 {strides = array<i32>} : memref<64x64xf32, #tpu.memory_space<vmem>>, vector<2x32xf32>,
    %cst_53 = arith.constant dense<0.000000e+00> : vector<8x128xf32>
    %167 = tpu.matmul %162, %19, %cst_53 {dimension_numbers = #tpu.dot_dimension_numbers<[1], [0], [0], [1], [0, 0, 1, 1], [], []>} : vector<8x64xf32>, vector<64x128xf32>, vector<8x128xf32> -> vector<8x128xf32>
    %168 = arith.addf %35, %167 : vector<8x128xf32>
    %169 = math.tanh %168 : vector<8x128xf32>
    %170 = vector.extract_strided_slice %169 {offsets = [0, 0], sizes = [8, 32], strides = [1, 1]} : vector<8x128xf32> to vector<8x32xf32>
    %cst_54 = arith.constant 5.000000e-01 : f32
    %171 = vector.broadcast %cst_54 : f32 to vector<8x32xf32>
    %172 = arith.mulf %171, %170 : vector<8x32xf32>
    %cst_55 = arith.constant 5.000000e-01 : f32
    %173 = vector.broadcast %cst_55 : f32 to vector<8x32xf32>
    %174 = arith.addf %172, %173 : vector<8x32xf32>
    %175 = vector.extract_strided_slice %169 {offsets = [0, 32], sizes = [8, 32], strides = [1, 1]} : vector<8x128xf32> to vector<8x32xf32>
    %cst_56 = arith.constant 5.000000e-01 : f32
    %176 = vector.broadcast %cst_56 : f32 to vector<8x32xf32>
    %177 = arith.mulf %176, %175 : vector<8x32xf32>
    %cst_57 = arith.constant 5.000000e-01 : f32
    %178 = vector.broadcast %cst_57 : f32 to vector<8x32xf32>
    %179 = arith.addf %177, %178 : vector<8x32xf32>
    %180 = vector.extract_strided_slice %169 {offsets = [0, 64], sizes = [8, 32], strides = [1, 1]} : vector<8x128xf32> to vector<8x32xf32>
    %181 = vector.extract_strided_slice %169 {offsets = [0, 96], sizes = [8, 32], strides = [1, 1]} : vector<8x128xf32> to vector<8x32xf32>
    %cst_58 = arith.constant 5.000000e-01 : f32
    %182 = vector.broadcast %cst_58 : f32 to vector<8x32xf32>
    %183 = arith.mulf %182, %181 : vector<8x32xf32>
    %cst_59 = arith.constant 5.000000e-01 : f32
    %184 = vector.broadcast %cst_59 : f32 to vector<8x32xf32>
    %185 = arith.addf %183, %184 : vector<8x32xf32>
    %186 = arith.mulf %179, %158 : vector<8x32xf32>
    %187 = arith.mulf %174, %180 : vector<8x32xf32>
    %188 = arith.addf %186, %187 : vector<8x32xf32>
    %189 = math.tanh %188 : vector<8x32xf32>
    %190 = arith.mulf %185, %189 : vector<8x32xf32>
    %191 = tpu.concatenate %190, %190 in 1 : vector<8x32xf32>, vector<8x32xf32> -> vector<8x64xf32>
    %192 = arith.mulf %191, %10 : vector<8x64xf32>
    %193 = vector.extract_strided_slice %190 {offsets = [0, 0], sizes = [2, 32], strides = [1, 1]} : vector<8x32xf32> to vector<2x32xf32>
    %c32_60 = arith.constant 32 : index
    %c0_61 = arith.constant 0 : index
    %194 = vector.load %arg23[%c32_60, %c0_61] : memref<64x64xf32, #tpu.memory_space<vmem>>, vector<2x32xf32>
    tpu.vector_store %arg23[%c32_60, %c0_61], %193 {strides = array<i32>} : memref<64x64xf32, #tpu.memory_space<vmem>>, vector<2x32xf32>,
    %195 = vector.extract_strided_slice %190 {offsets = [2, 0], sizes = [2, 32], strides = [1, 1]} : vector<8x32xf32> to vector<2x32xf32>
    %c24_62 = arith.constant 24 : index
    %c32_63 = arith.constant 32 : index
    %196 = vector.load %arg23[%c24_62, %c32_63] : memref<64x64xf32, #tpu.memory_space<vmem>>, vector<2x32xf32>
    tpu.vector_store %arg23[%c24_62, %c32_63], %195 {strides = array<i32>} : memref<64x64xf32, #tpu.memory_space<vmem>>, vector<2x32xf32>,
    %cst_64 = arith.constant dense<0.000000e+00> : vector<8x128xf32>
    %197 = tpu.matmul %192, %19, %cst_64 {dimension_numbers = #tpu.dot_dimension_numbers<[1], [0], [0], [1], [0, 0, 1, 1], [], []>} : vector<8x64xf32>, vector<64x128xf32>, vector<8x128xf32> -> vector<8x128xf32>
    %198 = arith.addf %38, %197 : vector<8x128xf32>
    %199 = math.tanh %198 : vector<8x128xf32>
    %200 = vector.extract_strided_slice %199 {offsets = [0, 0], sizes = [8, 32], strides = [1, 1]} : vector<8x128xf32> to vector<8x32xf32>
    %cst_65 = arith.constant 5.000000e-01 : f32
    %201 = vector.broadcast %cst_65 : f32 to vector<8x32xf32>
    %202 = arith.mulf %201, %200 : vector<8x32xf32>
    %cst_66 = arith.constant 5.000000e-01 : f32
    %203 = vector.broadcast %cst_66 : f32 to vector<8x32xf32>
    %204 = arith.addf %202, %203 : vector<8x32xf32>
    %205 = vector.extract_strided_slice %199 {offsets = [0, 32], sizes = [8, 32], strides = [1, 1]} : vector<8x128xf32> to vector<8x32xf32>
    %cst_67 = arith.constant 5.000000e-01 : f32
    %206 = vector.broadcast %cst_67 : f32 to vector<8x32xf32>
    %207 = arith.mulf %206, %205 : vector<8x32xf32>
    %cst_68 = arith.constant 5.000000e-01 : f32
    %208 = vector.broadcast %cst_68 : f32 to vector<8x32xf32>
    %209 = arith.addf %207, %208 : vector<8x32xf32>
    %210 = vector.extract_strided_slice %199 {offsets = [0, 64], sizes = [8, 32], strides = [1, 1]} : vector<8x128xf32> to vector<8x32xf32>
    %211 = vector.extract_strided_slice %199 {offsets = [0, 96], sizes = [8, 32], strides = [1, 1]} : vector<8x128xf32> to vector<8x32xf32>
    %cst_69 = arith.constant 5.000000e-01 : f32
    %212 = vector.broadcast %cst_69 : f32 to vector<8x32xf32>
    %213 = arith.mulf %212, %211 : vector<8x32xf32>
    %cst_70 = arith.constant 5.000000e-01 : f32
    %214 = vector.broadcast %cst_70 : f32 to vector<8x32xf32>
    %215 = arith.addf %213, %214 : vector<8x32xf32>
    %216 = arith.mulf %209, %188 : vector<8x32xf32>
    %217 = arith.mulf %204, %210 : vector<8x32xf32>
    %218 = arith.addf %216, %217 : vector<8x32xf32>
    %219 = math.tanh %218 : vector<8x32xf32>
    %220 = arith.mulf %215, %219 : vector<8x32xf32>
    %221 = tpu.concatenate %220, %220 in 1 : vector<8x32xf32>, vector<8x32xf32> -> vector<8x64xf32>
    %222 = arith.mulf %221, %10 : vector<8x64xf32>
    %223 = vector.extract_strided_slice %220 {offsets = [0, 0], sizes = [2, 32], strides = [1, 1]} : vector<8x32xf32> to vector<2x32xf32>
    %c40_71 = arith.constant 40 : index
    %c0_72 = arith.constant 0 : index
    %224 = vector.load %arg23[%c40_71, %c0_72] : memref<64x64xf32, #tpu.memory_space<vmem>>, vector<2x32xf32>
    tpu.vector_store %arg23[%c40_71, %c0_72], %223 {strides = array<i32>} : memref<64x64xf32, #tpu.memory_space<vmem>>, vector<2x32xf32>,
    %225 = vector.extract_strided_slice %220 {offsets = [2, 0], sizes = [2, 32], strides = [1, 1]} : vector<8x32xf32> to vector<2x32xf32>
    %c16_73 = arith.constant 16 : index
    %c32_74 = arith.constant 32 : index
    %226 = vector.load %arg23[%c16_73, %c32_74] : memref<64x64xf32, #tpu.memory_space<vmem>>, vector<2x32xf32>
    tpu.vector_store %arg23[%c16_73, %c32_74], %225 {strides = array<i32>} : memref<64x64xf32, #tpu.memory_space<vmem>>, vector<2x32xf32>,
    %cst_75 = arith.constant dense<0.000000e+00> : vector<8x128xf32>
    %227 = tpu.matmul %222, %19, %cst_75 {dimension_numbers = #tpu.dot_dimension_numbers<[1], [0], [0], [1], [0, 0, 1, 1], [], []>} : vector<8x64xf32>, vector<64x128xf32>, vector<8x128xf32> -> vector<8x128xf32>
    %228 = arith.addf %41, %227 : vector<8x128xf32>
    %229 = math.tanh %228 : vector<8x128xf32>
    %230 = vector.extract_strided_slice %229 {offsets = [0, 0], sizes = [8, 32], strides = [1, 1]} : vector<8x128xf32> to vector<8x32xf32>
    %cst_76 = arith.constant 5.000000e-01 : f32
    %231 = vector.broadcast %cst_76 : f32 to vector<8x32xf32>
    %232 = arith.mulf %231, %230 : vector<8x32xf32>
    %cst_77 = arith.constant 5.000000e-01 : f32
    %233 = vector.broadcast %cst_77 : f32 to vector<8x32xf32>
    %234 = arith.addf %232, %233 : vector<8x32xf32>
    %235 = vector.extract_strided_slice %229 {offsets = [0, 32], sizes = [8, 32], strides = [1, 1]} : vector<8x128xf32> to vector<8x32xf32>
    %cst_78 = arith.constant 5.000000e-01 : f32
    %236 = vector.broadcast %cst_78 : f32 to vector<8x32xf32>
    %237 = arith.mulf %236, %235 : vector<8x32xf32>
    %cst_79 = arith.constant 5.000000e-01 : f32
    %238 = vector.broadcast %cst_79 : f32 to vector<8x32xf32>
    %239 = arith.addf %237, %238 : vector<8x32xf32>
    %240 = vector.extract_strided_slice %229 {offsets = [0, 64], sizes = [8, 32], strides = [1, 1]} : vector<8x128xf32> to vector<8x32xf32>
    %241 = vector.extract_strided_slice %229 {offsets = [0, 96], sizes = [8, 32], strides = [1, 1]} : vector<8x128xf32> to vector<8x32xf32>
    %cst_80 = arith.constant 5.000000e-01 : f32
    %242 = vector.broadcast %cst_80 : f32 to vector<8x32xf32>
    %243 = arith.mulf %242, %241 : vector<8x32xf32>
    %cst_81 = arith.constant 5.000000e-01 : f32
    %244 = vector.broadcast %cst_81 : f32 to vector<8x32xf32>
    %245 = arith.addf %243, %244 : vector<8x32xf32>
    %246 = arith.mulf %239, %218 : vector<8x32xf32>
    %247 = arith.mulf %234, %240 : vector<8x32xf32>
    %248 = arith.addf %246, %247 : vector<8x32xf32>
    %249 = math.tanh %248 : vector<8x32xf32>
    %250 = arith.mulf %245, %249 : vector<8x32xf32>
    %251 = tpu.concatenate %250, %250 in 1 : vector<8x32xf32>, vector<8x32xf32> -> vector<8x64xf32>
    %252 = arith.mulf %251, %10 : vector<8x64xf32>
    %253 = vector.extract_strided_slice %250 {offsets = [0, 0], sizes = [2, 32], strides = [1, 1]} : vector<8x32xf32> to vector<2x32xf32>
    %c48_82 = arith.constant 48 : index
    %c0_83 = arith.constant 0 : index
    %254 = vector.load %arg23[%c48_82, %c0_83] : memref<64x64xf32, #tpu.memory_space<vmem>>, vector<2x32xf32>
    tpu.vector_store %arg23[%c48_82, %c0_83], %253 {strides = array<i32>} : memref<64x64xf32, #tpu.memory_space<vmem>>, vector<2x32xf32>,
    %255 = vector.extract_strided_slice %250 {offsets = [2, 0], sizes = [2, 32], strides = [1, 1]} : vector<8x32xf32> to vector<2x32xf32>
    %c8_84 = arith.constant 8 : index
    %c32_85 = arith.constant 32 : index
    %256 = vector.load %arg23[%c8_84, %c32_85] : memref<64x64xf32, #tpu.memory_space<vmem>>, vector<2x32xf32>
    tpu.vector_store %arg23[%c8_84, %c32_85], %255 {strides = array<i32>} : memref<64x64xf32, #tpu.memory_space<vmem>>, vector<2x32xf32>,
    %cst_86 = arith.constant dense<0.000000e+00> : vector<8x128xf32>
    %257 = tpu.matmul %252, %19, %cst_86 {dimension_numbers = #tpu.dot_dimension_numbers<[1], [0], [0], [1], [0, 0, 1, 1], [], []>} : vector<8x64xf32>, vector<64x128xf32>, vector<8x128xf32> -> vector<8x128xf32>
    %258 = arith.addf %44, %257 : vector<8x128xf32>
    %259 = math.tanh %258 : vector<8x128xf32>
    %260 = vector.extract_strided_slice %259 {offsets = [0, 0], sizes = [8, 32], strides = [1, 1]} : vector<8x128xf32> to vector<8x32xf32>
    %cst_87 = arith.constant 5.000000e-01 : f32
    %261 = vector.broadcast %cst_87 : f32 to vector<8x32xf32>
    %262 = arith.mulf %261, %260 : vector<8x32xf32>
    %cst_88 = arith.constant 5.000000e-01 : f32
    %263 = vector.broadcast %cst_88 : f32 to vector<8x32xf32>
    %264 = arith.addf %262, %263 : vector<8x32xf32>
    %265 = vector.extract_strided_slice %259 {offsets = [0, 32], sizes = [8, 32], strides = [1, 1]} : vector<8x128xf32> to vector<8x32xf32>
    %cst_89 = arith.constant 5.000000e-01 : f32
    %266 = vector.broadcast %cst_89 : f32 to vector<8x32xf32>
    %267 = arith.mulf %266, %265 : vector<8x32xf32>
    %cst_90 = arith.constant 5.000000e-01 : f32
    %268 = vector.broadcast %cst_90 : f32 to vector<8x32xf32>
    %269 = arith.addf %267, %268 : vector<8x32xf32>
    %270 = vector.extract_strided_slice %259 {offsets = [0, 64], sizes = [8, 32], strides = [1, 1]} : vector<8x128xf32> to vector<8x32xf32>
    %271 = vector.extract_strided_slice %259 {offsets = [0, 96], sizes = [8, 32], strides = [1, 1]} : vector<8x128xf32> to vector<8x32xf32>
    %cst_91 = arith.constant 5.000000e-01 : f32
    %272 = vector.broadcast %cst_91 : f32 to vector<8x32xf32>
    %273 = arith.mulf %272, %271 : vector<8x32xf32>
    %cst_92 = arith.constant 5.000000e-01 : f32
    %274 = vector.broadcast %cst_92 : f32 to vector<8x32xf32>
    %275 = arith.addf %273, %274 : vector<8x32xf32>
    %276 = arith.mulf %269, %248 : vector<8x32xf32>
    %277 = arith.mulf %264, %270 : vector<8x32xf32>
    %278 = arith.addf %276, %277 : vector<8x32xf32>
    %279 = math.tanh %278 : vector<8x32xf32>
    %280 = arith.mulf %275, %279 : vector<8x32xf32>
    %281 = vector.extract_strided_slice %280 {offsets = [0, 0], sizes = [2, 32], strides = [1, 1]} : vector<8x32xf32> to vector<2x32xf32>
    %c56_93 = arith.constant 56 : index
    %c0_94 = arith.constant 0 : index
    %282 = vector.load %arg23[%c56_93, %c0_94] : memref<64x64xf32, #tpu.memory_space<vmem>>, vector<2x32xf32>
    tpu.vector_store %arg23[%c56_93, %c0_94], %281 {strides = array<i32>} : memref<64x64xf32, #tpu.memory_space<vmem>>, vector<2x32xf32>,
    %283 = vector.extract_strided_slice %280 {offsets = [2, 0], sizes = [2, 32], strides = [1, 1]} : vector<8x32xf32> to vector<2x32xf32>
    %c0_95 = arith.constant 0 : index
    %c32_96 = arith.constant 32 : index
    %284 = vector.load %arg23[%c0_95, %c32_96] : memref<64x64xf32, #tpu.memory_space<vmem>>, vector<2x32xf32>
    tpu.vector_store %arg23[%c0_95, %c32_96], %283 {strides = array<i32>} : memref<64x64xf32, #tpu.memory_space<vmem>>, vector<2x32xf32>,
    %c0_97 = arith.constant 0 : index
    %c0_98 = arith.constant 0 : index
    %285 = vector.load %arg23[%c0_97, %c0_98] : memref<64x64xf32, #tpu.memory_space<vmem>>, vector<64x64xf32>
    %c0_99 = arith.constant 0 : index
    %c0_100 = arith.constant 0 : index
    %286 = vector.load %arg4[%c0_99, %c0_100] : memref<64x256xf32, #tpu.memory_space<vmem>>, vector<64x256xf32>
    %cst_101 = arith.constant dense<0.000000e+00> : vector<64x256xf32>
    %287 = tpu.matmul %285, %286, %cst_101 {dimension_numbers = #tpu.dot_dimension_numbers<[1], [0], [0], [1], [0, 0, 1, 1], [], []>} : vector<64x64xf32>, vector<64x256xf32>, vector<64x256xf32> -> vector<64x256xf32>
    %c0_102 = arith.constant 0 : index
    %c0_103 = arith.constant 0 : index
    %288 = vector.load %arg6[%c0_102, %c0_103] : memref<1x256xf32, #tpu.memory_space<vmem>>, vector<1x256xf32>
    %289 = vector.broadcast %288 : vector<1x256xf32> to vector<64x256xf32>
    %290 = arith.addf %287, %289 : vector<64x256xf32>
    %c0_104 = arith.constant 0 : index
    %c0_105 = arith.constant 0 : index
    %291 = vector.load %arg5[%c0_104, %c0_105] : memref<64x128xf32, #tpu.memory_space<vmem>>, vector<64x128xf32>
    %cst_106 = arith.constant 0.000000e+00 : f32
    %292 = vector.broadcast %cst_106 : f32 to vector<4x128xf32>
    %293 = vector.extract_strided_slice %290 {offsets = [0, 0], sizes = [2, 128], strides = [1, 1]} : vector<64x256xf32> to vector<2x128xf32>
    %294 = vector.extract_strided_slice %290 {offsets = [56, 128], sizes = [2, 128], strides = [1, 1]} : vector<64x256xf32> to vector<2x128xf32>
    %295 = tpu.concatenate %293, %294, %292 in 0 : vector<2x128xf32>, vector<2x128xf32>, vector<4x128xf32> -> vector<8x128xf32>
    %296 = vector.extract_strided_slice %290 {offsets = [8, 0], sizes = [2, 128], strides = [1, 1]} : vector<64x256xf32> to vector<2x128xf32>
    %297 = vector.extract_strided_slice %290 {offsets = [48, 128], sizes = [2, 128], strides = [1, 1]} : vector<64x256xf32> to vector<2x128xf32>
    %298 = tpu.concatenate %296, %297, %292 in 0 : vector<2x128xf32>, vector<2x128xf32>, vector<4x128xf32> -> vector<8x128xf32>
    %299 = vector.extract_strided_slice %290 {offsets = [16, 0], sizes = [2, 128], strides = [1, 1]} : vector<64x256xf32> to vector<2x128xf32>
    %300 = vector.extract_strided_slice %290 {offsets = [40, 128], sizes = [2, 128], strides = [1, 1]} : vector<64x256xf32> to vector<2x128xf32>
    %301 = tpu.concatenate %299, %300, %292 in 0 : vector<2x128xf32>, vector<2x128xf32>, vector<4x128xf32> -> vector<8x128xf32>
    %302 = vector.extract_strided_slice %290 {offsets = [24, 0], sizes = [2, 128], strides = [1, 1]} : vector<64x256xf32> to vector<2x128xf32>
    %303 = vector.extract_strided_slice %290 {offsets = [32, 128], sizes = [2, 128], strides = [1, 1]} : vector<64x256xf32> to vector<2x128xf32>
    %304 = tpu.concatenate %302, %303, %292 in 0 : vector<2x128xf32>, vector<2x128xf32>, vector<4x128xf32> -> vector<8x128xf32>
    %305 = vector.extract_strided_slice %290 {offsets = [32, 0], sizes = [2, 128], strides = [1, 1]} : vector<64x256xf32> to vector<2x128xf32>
    %306 = vector.extract_strided_slice %290 {offsets = [24, 128], sizes = [2, 128], strides = [1, 1]} : vector<64x256xf32> to vector<2x128xf32>
    %307 = tpu.concatenate %305, %306, %292 in 0 : vector<2x128xf32>, vector<2x128xf32>, vector<4x128xf32> -> vector<8x128xf32>
    %308 = vector.extract_strided_slice %290 {offsets = [40, 0], sizes = [2, 128], strides = [1, 1]} : vector<64x256xf32> to vector<2x128xf32>
    %309 = vector.extract_strided_slice %290 {offsets = [16, 128], sizes = [2, 128], strides = [1, 1]} : vector<64x256xf32> to vector<2x128xf32>
    %310 = tpu.concatenate %308, %309, %292 in 0 : vector<2x128xf32>, vector<2x128xf32>, vector<4x128xf32> -> vector<8x128xf32>
    %311 = vector.extract_strided_slice %290 {offsets = [48, 0], sizes = [2, 128], strides = [1, 1]} : vector<64x256xf32> to vector<2x128xf32>
    %312 = vector.extract_strided_slice %290 {offsets = [8, 128], sizes = [2, 128], strides = [1, 1]} : vector<64x256xf32> to vector<2x128xf32>
    %313 = tpu.concatenate %311, %312, %292 in 0 : vector<2x128xf32>, vector<2x128xf32>, vector<4x128xf32> -> vector<8x128xf32>
    %314 = vector.extract_strided_slice %290 {offsets = [56, 0], sizes = [2, 128], strides = [1, 1]} : vector<64x256xf32> to vector<2x128xf32>
    %315 = vector.extract_strided_slice %290 {offsets = [0, 128], sizes = [2, 128], strides = [1, 1]} : vector<64x256xf32> to vector<2x128xf32>
    %316 = tpu.concatenate %314, %315, %292 in 0 : vector<2x128xf32>, vector<2x128xf32>, vector<4x128xf32> -> vector<8x128xf32>
    %cst_107 = arith.constant 0.000000e+00 : f32
    %317 = vector.broadcast %cst_107 : f32 to vector<8x64xf32>
    %cst_108 = arith.constant 0.000000e+00 : f32
    %318 = vector.broadcast %cst_108 : f32 to vector<8x32xf32>
    %cst_109 = arith.constant dense<0.000000e+00> : vector<8x128xf32>
    %319 = tpu.matmul %317, %291, %cst_109 {dimension_numbers = #tpu.dot_dimension_numbers<[1], [0], [0], [1], [0, 0, 1, 1], [], []>} : vector<8x64xf32>, vector<64x128xf32>, vector<8x128xf32> -> vector<8x128xf32>
    %320 = arith.addf %295, %319 : vector<8x128xf32>
    %321 = math.tanh %320 : vector<8x128xf32>
    %322 = vector.extract_strided_slice %321 {offsets = [0, 0], sizes = [8, 32], strides = [1, 1]} : vector<8x128xf32> to vector<8x32xf32>
    %cst_110 = arith.constant 5.000000e-01 : f32
    %323 = vector.broadcast %cst_110 : f32 to vector<8x32xf32>
    %324 = arith.mulf %323, %322 : vector<8x32xf32>
    %cst_111 = arith.constant 5.000000e-01 : f32
    %325 = vector.broadcast %cst_111 : f32 to vector<8x32xf32>
    %326 = arith.addf %324, %325 : vector<8x32xf32>
    %327 = vector.extract_strided_slice %321 {offsets = [0, 32], sizes = [8, 32], strides = [1, 1]} : vector<8x128xf32> to vector<8x32xf32>
    %cst_112 = arith.constant 5.000000e-01 : f32
    %328 = vector.broadcast %cst_112 : f32 to vector<8x32xf32>
    %329 = arith.mulf %328, %327 : vector<8x32xf32>
    %cst_113 = arith.constant 5.000000e-01 : f32
    %330 = vector.broadcast %cst_113 : f32 to vector<8x32xf32>
    %331 = arith.addf %329, %330 : vector<8x32xf32>
    %332 = vector.extract_strided_slice %321 {offsets = [0, 64], sizes = [8, 32], strides = [1, 1]} : vector<8x128xf32> to vector<8x32xf32>
    %333 = vector.extract_strided_slice %321 {offsets = [0, 96], sizes = [8, 32], strides = [1, 1]} : vector<8x128xf32> to vector<8x32xf32>
    %cst_114 = arith.constant 5.000000e-01 : f32
    %334 = vector.broadcast %cst_114 : f32 to vector<8x32xf32>
    %335 = arith.mulf %334, %333 : vector<8x32xf32>
    %cst_115 = arith.constant 5.000000e-01 : f32
    %336 = vector.broadcast %cst_115 : f32 to vector<8x32xf32>
    %337 = arith.addf %335, %336 : vector<8x32xf32>
    %338 = arith.mulf %331, %318 : vector<8x32xf32>
    %339 = arith.mulf %326, %332 : vector<8x32xf32>
    %340 = arith.addf %338, %339 : vector<8x32xf32>
    %341 = math.tanh %340 : vector<8x32xf32>
    %342 = arith.mulf %337, %341 : vector<8x32xf32>
    %343 = tpu.concatenate %342, %342 in 1 : vector<8x32xf32>, vector<8x32xf32> -> vector<8x64xf32>
    %344 = arith.mulf %343, %10 : vector<8x64xf32>
    %345 = vector.extract_strided_slice %342 {offsets = [0, 0], sizes = [2, 32], strides = [1, 1]} : vector<8x32xf32> to vector<2x32xf32>
    %c0_116 = arith.constant 0 : index
    %c0_117 = arith.constant 0 : index
    %346 = vector.load %arg23[%c0_116, %c0_117] : memref<64x64xf32, #tpu.memory_space<vmem>>, vector<2x32xf32>
    tpu.vector_store %arg23[%c0_116, %c0_117], %345 {strides = array<i32>} : memref<64x64xf32, #tpu.memory_space<vmem>>, vector<2x32xf32>,
    %347 = vector.extract_strided_slice %342 {offsets = [2, 0], sizes = [2, 32], strides = [1, 1]} : vector<8x32xf32> to vector<2x32xf32>
    %c56_118 = arith.constant 56 : index
    %c32_119 = arith.constant 32 : index
    %348 = vector.load %arg23[%c56_118, %c32_119] : memref<64x64xf32, #tpu.memory_space<vmem>>, vector<2x32xf32>
    tpu.vector_store %arg23[%c56_118, %c32_119], %347 {strides = array<i32>} : memref<64x64xf32, #tpu.memory_space<vmem>>, vector<2x32xf32>,
    %cst_120 = arith.constant dense<0.000000e+00> : vector<8x128xf32>
    %349 = tpu.matmul %344, %291, %cst_120 {dimension_numbers = #tpu.dot_dimension_numbers<[1], [0], [0], [1], [0, 0, 1, 1], [], []>} : vector<8x64xf32>, vector<64x128xf32>, vector<8x128xf32> -> vector<8x128xf32>
    %350 = arith.addf %298, %349 : vector<8x128xf32>
    %351 = math.tanh %350 : vector<8x128xf32>
    %352 = vector.extract_strided_slice %351 {offsets = [0, 0], sizes = [8, 32], strides = [1, 1]} : vector<8x128xf32> to vector<8x32xf32>
    %cst_121 = arith.constant 5.000000e-01 : f32
    %353 = vector.broadcast %cst_121 : f32 to vector<8x32xf32>
    %354 = arith.mulf %353, %352 : vector<8x32xf32>
    %cst_122 = arith.constant 5.000000e-01 : f32
    %355 = vector.broadcast %cst_122 : f32 to vector<8x32xf32>
    %356 = arith.addf %354, %355 : vector<8x32xf32>
    %357 = vector.extract_strided_slice %351 {offsets = [0, 32], sizes = [8, 32], strides = [1, 1]} : vector<8x128xf32> to vector<8x32xf32>
    %cst_123 = arith.constant 5.000000e-01 : f32
    %358 = vector.broadcast %cst_123 : f32 to vector<8x32xf32>
    %359 = arith.mulf %358, %357 : vector<8x32xf32>
    %cst_124 = arith.constant 5.000000e-01 : f32
    %360 = vector.broadcast %cst_124 : f32 to vector<8x32xf32>
    %361 = arith.addf %359, %360 : vector<8x32xf32>
    %362 = vector.extract_strided_slice %351 {offsets = [0, 64], sizes = [8, 32], strides = [1, 1]} : vector<8x128xf32> to vector<8x32xf32>
    %363 = vector.extract_strided_slice %351 {offsets = [0, 96], sizes = [8, 32], strides = [1, 1]} : vector<8x128xf32> to vector<8x32xf32>
    %cst_125 = arith.constant 5.000000e-01 : f32
    %364 = vector.broadcast %cst_125 : f32 to vector<8x32xf32>
    %365 = arith.mulf %364, %363 : vector<8x32xf32>
    %cst_126 = arith.constant 5.000000e-01 : f32
    %366 = vector.broadcast %cst_126 : f32 to vector<8x32xf32>
    %367 = arith.addf %365, %366 : vector<8x32xf32>
    %368 = arith.mulf %361, %340 : vector<8x32xf32>
    %369 = arith.mulf %356, %362 : vector<8x32xf32>
    %370 = arith.addf %368, %369 : vector<8x32xf32>
    %371 = math.tanh %370 : vector<8x32xf32>
    %372 = arith.mulf %367, %371 : vector<8x32xf32>
    %373 = tpu.concatenate %372, %372 in 1 : vector<8x32xf32>, vector<8x32xf32> -> vector<8x64xf32>
    %374 = arith.mulf %373, %10 : vector<8x64xf32>
    %375 = vector.extract_strided_slice %372 {offsets = [0, 0], sizes = [2, 32], strides = [1, 1]} : vector<8x32xf32> to vector<2x32xf32>
    %c8_127 = arith.constant 8 : index
    %c0_128 = arith.constant 0 : index
    %376 = vector.load %arg23[%c8_127, %c0_128] : memref<64x64xf32, #tpu.memory_space<vmem>>, vector<2x32xf32>
    tpu.vector_store %arg23[%c8_127, %c0_128], %375 {strides = array<i32>} : memref<64x64xf32, #tpu.memory_space<vmem>>, vector<2x32xf32>,
    %377 = vector.extract_strided_slice %372 {offsets = [2, 0], sizes = [2, 32], strides = [1, 1]} : vector<8x32xf32> to vector<2x32xf32>
    %c48_129 = arith.constant 48 : index
    %c32_130 = arith.constant 32 : index
    %378 = vector.load %arg23[%c48_129, %c32_130] : memref<64x64xf32, #tpu.memory_space<vmem>>, vector<2x32xf32>
    tpu.vector_store %arg23[%c48_129, %c32_130], %377 {strides = array<i32>} : memref<64x64xf32, #tpu.memory_space<vmem>>, vector<2x32xf32>,
    %cst_131 = arith.constant dense<0.000000e+00> : vector<8x128xf32>
    %379 = tpu.matmul %374, %291, %cst_131 {dimension_numbers = #tpu.dot_dimension_numbers<[1], [0], [0], [1], [0, 0, 1, 1], [], []>} : vector<8x64xf32>, vector<64x128xf32>, vector<8x128xf32> -> vector<8x128xf32>
    %380 = arith.addf %301, %379 : vector<8x128xf32>
    %381 = math.tanh %380 : vector<8x128xf32>
    %382 = vector.extract_strided_slice %381 {offsets = [0, 0], sizes = [8, 32], strides = [1, 1]} : vector<8x128xf32> to vector<8x32xf32>
    %cst_132 = arith.constant 5.000000e-01 : f32
    %383 = vector.broadcast %cst_132 : f32 to vector<8x32xf32>
    %384 = arith.mulf %383, %382 : vector<8x32xf32>
    %cst_133 = arith.constant 5.000000e-01 : f32
    %385 = vector.broadcast %cst_133 : f32 to vector<8x32xf32>
    %386 = arith.addf %384, %385 : vector<8x32xf32>
    %387 = vector.extract_strided_slice %381 {offsets = [0, 32], sizes = [8, 32], strides = [1, 1]} : vector<8x128xf32> to vector<8x32xf32>
    %cst_134 = arith.constant 5.000000e-01 : f32
    %388 = vector.broadcast %cst_134 : f32 to vector<8x32xf32>
    %389 = arith.mulf %388, %387 : vector<8x32xf32>
    %cst_135 = arith.constant 5.000000e-01 : f32
    %390 = vector.broadcast %cst_135 : f32 to vector<8x32xf32>
    %391 = arith.addf %389, %390 : vector<8x32xf32>
    %392 = vector.extract_strided_slice %381 {offsets = [0, 64], sizes = [8, 32], strides = [1, 1]} : vector<8x128xf32> to vector<8x32xf32>
    %393 = vector.extract_strided_slice %381 {offsets = [0, 96], sizes = [8, 32], strides = [1, 1]} : vector<8x128xf32> to vector<8x32xf32>
    %cst_136 = arith.constant 5.000000e-01 : f32
    %394 = vector.broadcast %cst_136 : f32 to vector<8x32xf32>
    %395 = arith.mulf %394, %393 : vector<8x32xf32>
    %cst_137 = arith.constant 5.000000e-01 : f32
    %396 = vector.broadcast %cst_137 : f32 to vector<8x32xf32>
    %397 = arith.addf %395, %396 : vector<8x32xf32>
    %398 = arith.mulf %391, %370 : vector<8x32xf32>
    %399 = arith.mulf %386, %392 : vector<8x32xf32>
    %400 = arith.addf %398, %399 : vector<8x32xf32>
    %401 = math.tanh %400 : vector<8x32xf32>
    %402 = arith.mulf %397, %401 : vector<8x32xf32>
    %403 = tpu.concatenate %402, %402 in 1 : vector<8x32xf32>, vector<8x32xf32> -> vector<8x64xf32>
    %404 = arith.mulf %403, %10 : vector<8x64xf32>
    %405 = vector.extract_strided_slice %402 {offsets = [0, 0], sizes = [2, 32], strides = [1, 1]} : vector<8x32xf32> to vector<2x32xf32>
    %c16_138 = arith.constant 16 : index
    %c0_139 = arith.constant 0 : index
    %406 = vector.load %arg23[%c16_138, %c0_139] : memref<64x64xf32, #tpu.memory_space<vmem>>, vector<2x32xf32>
    tpu.vector_store %arg23[%c16_138, %c0_139], %405 {strides = array<i32>} : memref<64x64xf32, #tpu.memory_space<vmem>>, vector<2x32xf32>,
    %407 = vector.extract_strided_slice %402 {offsets = [2, 0], sizes = [2, 32], strides = [1, 1]} : vector<8x32xf32> to vector<2x32xf32>
    %c40_140 = arith.constant 40 : index
    %c32_141 = arith.constant 32 : index
    %408 = vector.load %arg23[%c40_140, %c32_141] : memref<64x64xf32, #tpu.memory_space<vmem>>, vector<2x32xf32>
    tpu.vector_store %arg23[%c40_140, %c32_141], %407 {strides = array<i32>} : memref<64x64xf32, #tpu.memory_space<vmem>>, vector<2x32xf32>,
    %cst_142 = arith.constant dense<0.000000e+00> : vector<8x128xf32>
    %409 = tpu.matmul %404, %291, %cst_142 {dimension_numbers = #tpu.dot_dimension_numbers<[1], [0], [0], [1], [0, 0, 1, 1], [], []>} : vector<8x64xf32>, vector<64x128xf32>, vector<8x128xf32> -> vector<8x128xf32>
    %410 = arith.addf %304, %409 : vector<8x128xf32>
    %411 = math.tanh %410 : vector<8x128xf32>
    %412 = vector.extract_strided_slice %411 {offsets = [0, 0], sizes = [8, 32], strides = [1, 1]} : vector<8x128xf32> to vector<8x32xf32>
    %cst_143 = arith.constant 5.000000e-01 : f32
    %413 = vector.broadcast %cst_143 : f32 to vector<8x32xf32>
    %414 = arith.mulf %413, %412 : vector<8x32xf32>
    %cst_144 = arith.constant 5.000000e-01 : f32
    %415 = vector.broadcast %cst_144 : f32 to vector<8x32xf32>
    %416 = arith.addf %414, %415 : vector<8x32xf32>
    %417 = vector.extract_strided_slice %411 {offsets = [0, 32], sizes = [8, 32], strides = [1, 1]} : vector<8x128xf32> to vector<8x32xf32>
    %cst_145 = arith.constant 5.000000e-01 : f32
    %418 = vector.broadcast %cst_145 : f32 to vector<8x32xf32>
    %419 = arith.mulf %418, %417 : vector<8x32xf32>
    %cst_146 = arith.constant 5.000000e-01 : f32
    %420 = vector.broadcast %cst_146 : f32 to vector<8x32xf32>
    %421 = arith.addf %419, %420 : vector<8x32xf32>
    %422 = vector.extract_strided_slice %411 {offsets = [0, 64], sizes = [8, 32], strides = [1, 1]} : vector<8x128xf32> to vector<8x32xf32>
    %423 = vector.extract_strided_slice %411 {offsets = [0, 96], sizes = [8, 32], strides = [1, 1]} : vector<8x128xf32> to vector<8x32xf32>
    %cst_147 = arith.constant 5.000000e-01 : f32
    %424 = vector.broadcast %cst_147 : f32 to vector<8x32xf32>
    %425 = arith.mulf %424, %423 : vector<8x32xf32>
    %cst_148 = arith.constant 5.000000e-01 : f32
    %426 = vector.broadcast %cst_148 : f32 to vector<8x32xf32>
    %427 = arith.addf %425, %426 : vector<8x32xf32>
    %428 = arith.mulf %421, %400 : vector<8x32xf32>
    %429 = arith.mulf %416, %422 : vector<8x32xf32>
    %430 = arith.addf %428, %429 : vector<8x32xf32>
    %431 = math.tanh %430 : vector<8x32xf32>
    %432 = arith.mulf %427, %431 : vector<8x32xf32>
    %433 = tpu.concatenate %432, %432 in 1 : vector<8x32xf32>, vector<8x32xf32> -> vector<8x64xf32>
    %434 = arith.mulf %433, %10 : vector<8x64xf32>
    %435 = vector.extract_strided_slice %432 {offsets = [0, 0], sizes = [2, 32], strides = [1, 1]} : vector<8x32xf32> to vector<2x32xf32>
    %c24_149 = arith.constant 24 : index
    %c0_150 = arith.constant 0 : index
    %436 = vector.load %arg23[%c24_149, %c0_150] : memref<64x64xf32, #tpu.memory_space<vmem>>, vector<2x32xf32>
    tpu.vector_store %arg23[%c24_149, %c0_150], %435 {strides = array<i32>} : memref<64x64xf32, #tpu.memory_space<vmem>>, vector<2x32xf32>,
    %437 = vector.extract_strided_slice %432 {offsets = [2, 0], sizes = [2, 32], strides = [1, 1]} : vector<8x32xf32> to vector<2x32xf32>
    %c32_151 = arith.constant 32 : index
    %c32_152 = arith.constant 32 : index
    %438 = vector.load %arg23[%c32_151, %c32_152] : memref<64x64xf32, #tpu.memory_space<vmem>>, vector<2x32xf32>
    tpu.vector_store %arg23[%c32_151, %c32_152], %437 {strides = array<i32>} : memref<64x64xf32, #tpu.memory_space<vmem>>, vector<2x32xf32>,
    %cst_153 = arith.constant dense<0.000000e+00> : vector<8x128xf32>
    %439 = tpu.matmul %434, %291, %cst_153 {dimension_numbers = #tpu.dot_dimension_numbers<[1], [0], [0], [1], [0, 0, 1, 1], [], []>} : vector<8x64xf32>, vector<64x128xf32>, vector<8x128xf32> -> vector<8x128xf32>
    %440 = arith.addf %307, %439 : vector<8x128xf32>
    %441 = math.tanh %440 : vector<8x128xf32>
    %442 = vector.extract_strided_slice %441 {offsets = [0, 0], sizes = [8, 32], strides = [1, 1]} : vector<8x128xf32> to vector<8x32xf32>
    %cst_154 = arith.constant 5.000000e-01 : f32
    %443 = vector.broadcast %cst_154 : f32 to vector<8x32xf32>
    %444 = arith.mulf %443, %442 : vector<8x32xf32>
    %cst_155 = arith.constant 5.000000e-01 : f32
    %445 = vector.broadcast %cst_155 : f32 to vector<8x32xf32>
    %446 = arith.addf %444, %445 : vector<8x32xf32>
    %447 = vector.extract_strided_slice %441 {offsets = [0, 32], sizes = [8, 32], strides = [1, 1]} : vector<8x128xf32> to vector<8x32xf32>
    %cst_156 = arith.constant 5.000000e-01 : f32
    %448 = vector.broadcast %cst_156 : f32 to vector<8x32xf32>
    %449 = arith.mulf %448, %447 : vector<8x32xf32>
    %cst_157 = arith.constant 5.000000e-01 : f32
    %450 = vector.broadcast %cst_157 : f32 to vector<8x32xf32>
    %451 = arith.addf %449, %450 : vector<8x32xf32>
    %452 = vector.extract_strided_slice %441 {offsets = [0, 64], sizes = [8, 32], strides = [1, 1]} : vector<8x128xf32> to vector<8x32xf32>
    %453 = vector.extract_strided_slice %441 {offsets = [0, 96], sizes = [8, 32], strides = [1, 1]} : vector<8x128xf32> to vector<8x32xf32>
    %cst_158 = arith.constant 5.000000e-01 : f32
    %454 = vector.broadcast %cst_158 : f32 to vector<8x32xf32>
    %455 = arith.mulf %454, %453 : vector<8x32xf32>
    %cst_159 = arith.constant 5.000000e-01 : f32
    %456 = vector.broadcast %cst_159 : f32 to vector<8x32xf32>
    %457 = arith.addf %455, %456 : vector<8x32xf32>
    %458 = arith.mulf %451, %430 : vector<8x32xf32>
    %459 = arith.mulf %446, %452 : vector<8x32xf32>
    %460 = arith.addf %458, %459 : vector<8x32xf32>
    %461 = math.tanh %460 : vector<8x32xf32>
    %462 = arith.mulf %457, %461 : vector<8x32xf32>
    %463 = tpu.concatenate %462, %462 in 1 : vector<8x32xf32>, vector<8x32xf32> -> vector<8x64xf32>
    %464 = arith.mulf %463, %10 : vector<8x64xf32>
    %465 = vector.extract_strided_slice %462 {offsets = [0, 0], sizes = [2, 32], strides = [1, 1]} : vector<8x32xf32> to vector<2x32xf32>
    %c32_160 = arith.constant 32 : index
    %c0_161 = arith.constant 0 : index
    %466 = vector.load %arg23[%c32_160, %c0_161] : memref<64x64xf32, #tpu.memory_space<vmem>>, vector<2x32xf32>
    tpu.vector_store %arg23[%c32_160, %c0_161], %465 {strides = array<i32>} : memref<64x64xf32, #tpu.memory_space<vmem>>, vector<2x32xf32>,
    %467 = vector.extract_strided_slice %462 {offsets = [2, 0], sizes = [2, 32], strides = [1, 1]} : vector<8x32xf32> to vector<2x32xf32>
    %c24_162 = arith.constant 24 : index
    %c32_163 = arith.constant 32 : index
    %468 = vector.load %arg23[%c24_162, %c32_163] : memref<64x64xf32, #tpu.memory_space<vmem>>, vector<2x32xf32>
    tpu.vector_store %arg23[%c24_162, %c32_163], %467 {strides = array<i32>} : memref<64x64xf32, #tpu.memory_space<vmem>>, vector<2x32xf32>,
    %cst_164 = arith.constant dense<0.000000e+00> : vector<8x128xf32>
    %469 = tpu.matmul %464, %291, %cst_164 {dimension_numbers = #tpu.dot_dimension_numbers<[1], [0], [0], [1], [0, 0, 1, 1], [], []>} : vector<8x64xf32>, vector<64x128xf32>, vector<8x128xf32> -> vector<8x128xf32>
    %470 = arith.addf %310, %469 : vector<8x128xf32>
    %471 = math.tanh %470 : vector<8x128xf32>
    %472 = vector.extract_strided_slice %471 {offsets = [0, 0], sizes = [8, 32], strides = [1, 1]} : vector<8x128xf32> to vector<8x32xf32>
    %cst_165 = arith.constant 5.000000e-01 : f32
    %473 = vector.broadcast %cst_165 : f32 to vector<8x32xf32>
    %474 = arith.mulf %473, %472 : vector<8x32xf32>
    %cst_166 = arith.constant 5.000000e-01 : f32
    %475 = vector.broadcast %cst_166 : f32 to vector<8x32xf32>
    %476 = arith.addf %474, %475 : vector<8x32xf32>
    %477 = vector.extract_strided_slice %471 {offsets = [0, 32], sizes = [8, 32], strides = [1, 1]} : vector<8x128xf32> to vector<8x32xf32>
    %cst_167 = arith.constant 5.000000e-01 : f32
    %478 = vector.broadcast %cst_167 : f32 to vector<8x32xf32>
    %479 = arith.mulf %478, %477 : vector<8x32xf32>
    %cst_168 = arith.constant 5.000000e-01 : f32
    %480 = vector.broadcast %cst_168 : f32 to vector<8x32xf32>
    %481 = arith.addf %479, %480 : vector<8x32xf32>
    %482 = vector.extract_strided_slice %471 {offsets = [0, 64], sizes = [8, 32], strides = [1, 1]} : vector<8x128xf32> to vector<8x32xf32>
    %483 = vector.extract_strided_slice %471 {offsets = [0, 96], sizes = [8, 32], strides = [1, 1]} : vector<8x128xf32> to vector<8x32xf32>
    %cst_169 = arith.constant 5.000000e-01 : f32
    %484 = vector.broadcast %cst_169 : f32 to vector<8x32xf32>
    %485 = arith.mulf %484, %483 : vector<8x32xf32>
    %cst_170 = arith.constant 5.000000e-01 : f32
    %486 = vector.broadcast %cst_170 : f32 to vector<8x32xf32>
    %487 = arith.addf %485, %486 : vector<8x32xf32>
    %488 = arith.mulf %481, %460 : vector<8x32xf32>
    %489 = arith.mulf %476, %482 : vector<8x32xf32>
    %490 = arith.addf %488, %489 : vector<8x32xf32>
    %491 = math.tanh %490 : vector<8x32xf32>
    %492 = arith.mulf %487, %491 : vector<8x32xf32>
    %493 = tpu.concatenate %492, %492 in 1 : vector<8x32xf32>, vector<8x32xf32> -> vector<8x64xf32>
    %494 = arith.mulf %493, %10 : vector<8x64xf32>
    %495 = vector.extract_strided_slice %492 {offsets = [0, 0], sizes = [2, 32], strides = [1, 1]} : vector<8x32xf32> to vector<2x32xf32>
    %c40_171 = arith.constant 40 : index
    %c0_172 = arith.constant 0 : index
    %496 = vector.load %arg23[%c40_171, %c0_172] : memref<64x64xf32, #tpu.memory_space<vmem>>, vector<2x32xf32>
    tpu.vector_store %arg23[%c40_171, %c0_172], %495 {strides = array<i32>} : memref<64x64xf32, #tpu.memory_space<vmem>>, vector<2x32xf32>,
    %497 = vector.extract_strided_slice %492 {offsets = [2, 0], sizes = [2, 32], strides = [1, 1]} : vector<8x32xf32> to vector<2x32xf32>
    %c16_173 = arith.constant 16 : index
    %c32_174 = arith.constant 32 : index
    %498 = vector.load %arg23[%c16_173, %c32_174] : memref<64x64xf32, #tpu.memory_space<vmem>>, vector<2x32xf32>
    tpu.vector_store %arg23[%c16_173, %c32_174], %497 {strides = array<i32>} : memref<64x64xf32, #tpu.memory_space<vmem>>, vector<2x32xf32>,
    %cst_175 = arith.constant dense<0.000000e+00> : vector<8x128xf32>
    %499 = tpu.matmul %494, %291, %cst_175 {dimension_numbers = #tpu.dot_dimension_numbers<[1], [0], [0], [1], [0, 0, 1, 1], [], []>} : vector<8x64xf32>, vector<64x128xf32>, vector<8x128xf32> -> vector<8x128xf32>
    %500 = arith.addf %313, %499 : vector<8x128xf32>
    %501 = math.tanh %500 : vector<8x128xf32>
    %502 = vector.extract_strided_slice %501 {offsets = [0, 0], sizes = [8, 32], strides = [1, 1]} : vector<8x128xf32> to vector<8x32xf32>
    %cst_176 = arith.constant 5.000000e-01 : f32
    %503 = vector.broadcast %cst_176 : f32 to vector<8x32xf32>
    %504 = arith.mulf %503, %502 : vector<8x32xf32>
    %cst_177 = arith.constant 5.000000e-01 : f32
    %505 = vector.broadcast %cst_177 : f32 to vector<8x32xf32>
    %506 = arith.addf %504, %505 : vector<8x32xf32>
    %507 = vector.extract_strided_slice %501 {offsets = [0, 32], sizes = [8, 32], strides = [1, 1]} : vector<8x128xf32> to vector<8x32xf32>
    %cst_178 = arith.constant 5.000000e-01 : f32
    %508 = vector.broadcast %cst_178 : f32 to vector<8x32xf32>
    %509 = arith.mulf %508, %507 : vector<8x32xf32>
    %cst_179 = arith.constant 5.000000e-01 : f32
    %510 = vector.broadcast %cst_179 : f32 to vector<8x32xf32>
    %511 = arith.addf %509, %510 : vector<8x32xf32>
    %512 = vector.extract_strided_slice %501 {offsets = [0, 64], sizes = [8, 32], strides = [1, 1]} : vector<8x128xf32> to vector<8x32xf32>
    %513 = vector.extract_strided_slice %501 {offsets = [0, 96], sizes = [8, 32], strides = [1, 1]} : vector<8x128xf32> to vector<8x32xf32>
    %cst_180 = arith.constant 5.000000e-01 : f32
    %514 = vector.broadcast %cst_180 : f32 to vector<8x32xf32>
    %515 = arith.mulf %514, %513 : vector<8x32xf32>
    %cst_181 = arith.constant 5.000000e-01 : f32
    %516 = vector.broadcast %cst_181 : f32 to vector<8x32xf32>
    %517 = arith.addf %515, %516 : vector<8x32xf32>
    %518 = arith.mulf %511, %490 : vector<8x32xf32>
    %519 = arith.mulf %506, %512 : vector<8x32xf32>
    %520 = arith.addf %518, %519 : vector<8x32xf32>
    %521 = math.tanh %520 : vector<8x32xf32>
    %522 = arith.mulf %517, %521 : vector<8x32xf32>
    %523 = tpu.concatenate %522, %522 in 1 : vector<8x32xf32>, vector<8x32xf32> -> vector<8x64xf32>
    %524 = arith.mulf %523, %10 : vector<8x64xf32>
    %525 = vector.extract_strided_slice %522 {offsets = [0, 0], sizes = [2, 32], strides = [1, 1]} : vector<8x32xf32> to vector<2x32xf32>
    %c48_182 = arith.constant 48 : index
    %c0_183 = arith.constant 0 : index
    %526 = vector.load %arg23[%c48_182, %c0_183] : memref<64x64xf32, #tpu.memory_space<vmem>>, vector<2x32xf32>
    tpu.vector_store %arg23[%c48_182, %c0_183], %525 {strides = array<i32>} : memref<64x64xf32, #tpu.memory_space<vmem>>, vector<2x32xf32>,
    %527 = vector.extract_strided_slice %522 {offsets = [2, 0], sizes = [2, 32], strides = [1, 1]} : vector<8x32xf32> to vector<2x32xf32>
    %c8_184 = arith.constant 8 : index
    %c32_185 = arith.constant 32 : index
    %528 = vector.load %arg23[%c8_184, %c32_185] : memref<64x64xf32, #tpu.memory_space<vmem>>, vector<2x32xf32>
    tpu.vector_store %arg23[%c8_184, %c32_185], %527 {strides = array<i32>} : memref<64x64xf32, #tpu.memory_space<vmem>>, vector<2x32xf32>,
    %cst_186 = arith.constant dense<0.000000e+00> : vector<8x128xf32>
    %529 = tpu.matmul %524, %291, %cst_186 {dimension_numbers = #tpu.dot_dimension_numbers<[1], [0], [0], [1], [0, 0, 1, 1], [], []>} : vector<8x64xf32>, vector<64x128xf32>, vector<8x128xf32> -> vector<8x128xf32>
    %530 = arith.addf %316, %529 : vector<8x128xf32>
    %531 = math.tanh %530 : vector<8x128xf32>
    %532 = vector.extract_strided_slice %531 {offsets = [0, 0], sizes = [8, 32], strides = [1, 1]} : vector<8x128xf32> to vector<8x32xf32>
    %cst_187 = arith.constant 5.000000e-01 : f32
    %533 = vector.broadcast %cst_187 : f32 to vector<8x32xf32>
    %534 = arith.mulf %533, %532 : vector<8x32xf32>
    %cst_188 = arith.constant 5.000000e-01 : f32
    %535 = vector.broadcast %cst_188 : f32 to vector<8x32xf32>
    %536 = arith.addf %534, %535 : vector<8x32xf32>
    %537 = vector.extract_strided_slice %531 {offsets = [0, 32], sizes = [8, 32], strides = [1, 1]} : vector<8x128xf32> to vector<8x32xf32>
    %cst_189 = arith.constant 5.000000e-01 : f32
    %538 = vector.broadcast %cst_189 : f32 to vector<8x32xf32>
    %539 = arith.mulf %538, %537 : vector<8x32xf32>
    %cst_190 = arith.constant 5.000000e-01 : f32
    %540 = vector.broadcast %cst_190 : f32 to vector<8x32xf32>
    %541 = arith.addf %539, %540 : vector<8x32xf32>
    %542 = vector.extract_strided_slice %531 {offsets = [0, 64], sizes = [8, 32], strides = [1, 1]} : vector<8x128xf32> to vector<8x32xf32>
    %543 = vector.extract_strided_slice %531 {offsets = [0, 96], sizes = [8, 32], strides = [1, 1]} : vector<8x128xf32> to vector<8x32xf32>
    %cst_191 = arith.constant 5.000000e-01 : f32
    %544 = vector.broadcast %cst_191 : f32 to vector<8x32xf32>
    %545 = arith.mulf %544, %543 : vector<8x32xf32>
    %cst_192 = arith.constant 5.000000e-01 : f32
    %546 = vector.broadcast %cst_192 : f32 to vector<8x32xf32>
    %547 = arith.addf %545, %546 : vector<8x32xf32>
    %548 = arith.mulf %541, %520 : vector<8x32xf32>
    %549 = arith.mulf %536, %542 : vector<8x32xf32>
    %550 = arith.addf %548, %549 : vector<8x32xf32>
    %551 = math.tanh %550 : vector<8x32xf32>
    %552 = arith.mulf %547, %551 : vector<8x32xf32>
    %553 = vector.extract_strided_slice %552 {offsets = [0, 0], sizes = [2, 32], strides = [1, 1]} : vector<8x32xf32> to vector<2x32xf32>
    %c56_193 = arith.constant 56 : index
    %c0_194 = arith.constant 0 : index
    %554 = vector.load %arg23[%c56_193, %c0_194] : memref<64x64xf32, #tpu.memory_space<vmem>>, vector<2x32xf32>
    tpu.vector_store %arg23[%c56_193, %c0_194], %553 {strides = array<i32>} : memref<64x64xf32, #tpu.memory_space<vmem>>, vector<2x32xf32>,
    %555 = vector.extract_strided_slice %552 {offsets = [2, 0], sizes = [2, 32], strides = [1, 1]} : vector<8x32xf32> to vector<2x32xf32>
    %c0_195 = arith.constant 0 : index
    %c32_196 = arith.constant 32 : index
    %556 = vector.load %arg23[%c0_195, %c32_196] : memref<64x64xf32, #tpu.memory_space<vmem>>, vector<2x32xf32>
    tpu.vector_store %arg23[%c0_195, %c32_196], %555 {strides = array<i32>} : memref<64x64xf32, #tpu.memory_space<vmem>>, vector<2x32xf32>,
    %c0_197 = arith.constant 0 : index
    %c0_198 = arith.constant 0 : index
    %557 = vector.load %arg23[%c0_197, %c0_198] : memref<64x64xf32, #tpu.memory_space<vmem>>, vector<64x64xf32>
    %c0_199 = arith.constant 0 : index
    %c0_200 = arith.constant 0 : index
    %558 = vector.load %arg7[%c0_199, %c0_200] : memref<64x256xf32, #tpu.memory_space<vmem>>, vector<64x256xf32>
    %cst_201 = arith.constant dense<0.000000e+00> : vector<64x256xf32>
    %559 = tpu.matmul %557, %558, %cst_201 {dimension_numbers = #tpu.dot_dimension_numbers<[1], [0], [0], [1], [0, 0, 1, 1], [], []>} : vector<64x64xf32>, vector<64x256xf32>, vector<64x256xf32> -> vector<64x256xf32>
    %c0_202 = arith.constant 0 : index
    %c0_203 = arith.constant 0 : index
    %560 = vector.load %arg9[%c0_202, %c0_203] : memref<1x256xf32, #tpu.memory_space<vmem>>, vector<1x256xf32>
    %561 = vector.broadcast %560 : vector<1x256xf32> to vector<64x256xf32>
    %562 = arith.addf %559, %561 : vector<64x256xf32>
    %c0_204 = arith.constant 0 : index
    %c0_205 = arith.constant 0 : index
    %563 = vector.load %arg8[%c0_204, %c0_205] : memref<64x128xf32, #tpu.memory_space<vmem>>, vector<64x128xf32>
    %cst_206 = arith.constant 0.000000e+00 : f32
    %564 = vector.broadcast %cst_206 : f32 to vector<4x128xf32>
    %565 = vector.extract_strided_slice %562 {offsets = [0, 0], sizes = [2, 128], strides = [1, 1]} : vector<64x256xf32> to vector<2x128xf32>
    %566 = vector.extract_strided_slice %562 {offsets = [56, 128], sizes = [2, 128], strides = [1, 1]} : vector<64x256xf32> to vector<2x128xf32>
    %567 = tpu.concatenate %565, %566, %564 in 0 : vector<2x128xf32>, vector<2x128xf32>, vector<4x128xf32> -> vector<8x128xf32>
    %568 = vector.extract_strided_slice %562 {offsets = [8, 0], sizes = [2, 128], strides = [1, 1]} : vector<64x256xf32> to vector<2x128xf32>
    %569 = vector.extract_strided_slice %562 {offsets = [48, 128], sizes = [2, 128], strides = [1, 1]} : vector<64x256xf32> to vector<2x128xf32>
    %570 = tpu.concatenate %568, %569, %564 in 0 : vector<2x128xf32>, vector<2x128xf32>, vector<4x128xf32> -> vector<8x128xf32>
    %571 = vector.extract_strided_slice %562 {offsets = [16, 0], sizes = [2, 128], strides = [1, 1]} : vector<64x256xf32> to vector<2x128xf32>
    %572 = vector.extract_strided_slice %562 {offsets = [40, 128], sizes = [2, 128], strides = [1, 1]} : vector<64x256xf32> to vector<2x128xf32>
    %573 = tpu.concatenate %571, %572, %564 in 0 : vector<2x128xf32>, vector<2x128xf32>, vector<4x128xf32> -> vector<8x128xf32>
    %574 = vector.extract_strided_slice %562 {offsets = [24, 0], sizes = [2, 128], strides = [1, 1]} : vector<64x256xf32> to vector<2x128xf32>
    %575 = vector.extract_strided_slice %562 {offsets = [32, 128], sizes = [2, 128], strides = [1, 1]} : vector<64x256xf32> to vector<2x128xf32>
    %576 = tpu.concatenate %574, %575, %564 in 0 : vector<2x128xf32>, vector<2x128xf32>, vector<4x128xf32> -> vector<8x128xf32>
    %577 = vector.extract_strided_slice %562 {offsets = [32, 0], sizes = [2, 128], strides = [1, 1]} : vector<64x256xf32> to vector<2x128xf32>
    %578 = vector.extract_strided_slice %562 {offsets = [24, 128], sizes = [2, 128], strides = [1, 1]} : vector<64x256xf32> to vector<2x128xf32>
    %579 = tpu.concatenate %577, %578, %564 in 0 : vector<2x128xf32>, vector<2x128xf32>, vector<4x128xf32> -> vector<8x128xf32>
    %580 = vector.extract_strided_slice %562 {offsets = [40, 0], sizes = [2, 128], strides = [1, 1]} : vector<64x256xf32> to vector<2x128xf32>
    %581 = vector.extract_strided_slice %562 {offsets = [16, 128], sizes = [2, 128], strides = [1, 1]} : vector<64x256xf32> to vector<2x128xf32>
    %582 = tpu.concatenate %580, %581, %564 in 0 : vector<2x128xf32>, vector<2x128xf32>, vector<4x128xf32> -> vector<8x128xf32>
    %583 = vector.extract_strided_slice %562 {offsets = [48, 0], sizes = [2, 128], strides = [1, 1]} : vector<64x256xf32> to vector<2x128xf32>
    %584 = vector.extract_strided_slice %562 {offsets = [8, 128], sizes = [2, 128], strides = [1, 1]} : vector<64x256xf32> to vector<2x128xf32>
    %585 = tpu.concatenate %583, %584, %564 in 0 : vector<2x128xf32>, vector<2x128xf32>, vector<4x128xf32> -> vector<8x128xf32>
    %586 = vector.extract_strided_slice %562 {offsets = [56, 0], sizes = [2, 128], strides = [1, 1]} : vector<64x256xf32> to vector<2x128xf32>
    %587 = vector.extract_strided_slice %562 {offsets = [0, 128], sizes = [2, 128], strides = [1, 1]} : vector<64x256xf32> to vector<2x128xf32>
    %588 = tpu.concatenate %586, %587, %564 in 0 : vector<2x128xf32>, vector<2x128xf32>, vector<4x128xf32> -> vector<8x128xf32>
    %cst_207 = arith.constant 0.000000e+00 : f32
    %589 = vector.broadcast %cst_207 : f32 to vector<8x64xf32>
    %cst_208 = arith.constant 0.000000e+00 : f32
    %590 = vector.broadcast %cst_208 : f32 to vector<8x32xf32>
    %cst_209 = arith.constant dense<0.000000e+00> : vector<8x128xf32>
    %591 = tpu.matmul %589, %563, %cst_209 {dimension_numbers = #tpu.dot_dimension_numbers<[1], [0], [0], [1], [0, 0, 1, 1], [], []>} : vector<8x64xf32>, vector<64x128xf32>, vector<8x128xf32> -> vector<8x128xf32>
    %592 = arith.addf %567, %591 : vector<8x128xf32>
    %593 = math.tanh %592 : vector<8x128xf32>
    %594 = vector.extract_strided_slice %593 {offsets = [0, 0], sizes = [8, 32], strides = [1, 1]} : vector<8x128xf32> to vector<8x32xf32>
    %cst_210 = arith.constant 5.000000e-01 : f32
    %595 = vector.broadcast %cst_210 : f32 to vector<8x32xf32>
    %596 = arith.mulf %595, %594 : vector<8x32xf32>
    %cst_211 = arith.constant 5.000000e-01 : f32
    %597 = vector.broadcast %cst_211 : f32 to vector<8x32xf32>
    %598 = arith.addf %596, %597 : vector<8x32xf32>
    %599 = vector.extract_strided_slice %593 {offsets = [0, 32], sizes = [8, 32], strides = [1, 1]} : vector<8x128xf32> to vector<8x32xf32>
    %cst_212 = arith.constant 5.000000e-01 : f32
    %600 = vector.broadcast %cst_212 : f32 to vector<8x32xf32>
    %601 = arith.mulf %600, %599 : vector<8x32xf32>
    %cst_213 = arith.constant 5.000000e-01 : f32
    %602 = vector.broadcast %cst_213 : f32 to vector<8x32xf32>
    %603 = arith.addf %601, %602 : vector<8x32xf32>
    %604 = vector.extract_strided_slice %593 {offsets = [0, 64], sizes = [8, 32], strides = [1, 1]} : vector<8x128xf32> to vector<8x32xf32>
    %605 = vector.extract_strided_slice %593 {offsets = [0, 96], sizes = [8, 32], strides = [1, 1]} : vector<8x128xf32> to vector<8x32xf32>
    %cst_214 = arith.constant 5.000000e-01 : f32
    %606 = vector.broadcast %cst_214 : f32 to vector<8x32xf32>
    %607 = arith.mulf %606, %605 : vector<8x32xf32>
    %cst_215 = arith.constant 5.000000e-01 : f32
    %608 = vector.broadcast %cst_215 : f32 to vector<8x32xf32>
    %609 = arith.addf %607, %608 : vector<8x32xf32>
    %610 = arith.mulf %603, %590 : vector<8x32xf32>
    %611 = arith.mulf %598, %604 : vector<8x32xf32>
    %612 = arith.addf %610, %611 : vector<8x32xf32>
    %613 = math.tanh %612 : vector<8x32xf32>
    %614 = arith.mulf %609, %613 : vector<8x32xf32>
    %615 = tpu.concatenate %614, %614 in 1 : vector<8x32xf32>, vector<8x32xf32> -> vector<8x64xf32>
    %616 = arith.mulf %615, %10 : vector<8x64xf32>
    %617 = vector.extract_strided_slice %614 {offsets = [0, 0], sizes = [1, 32], strides = [1, 1]} : vector<8x32xf32> to vector<1x32xf32>
    %c0_216 = arith.constant 0 : index
    %c0_217 = arith.constant 0 : index
    %618 = vector.load %arg24[%c0_216, %c0_217] : memref<16x64xf32, #tpu.memory_space<vmem>>, vector<1x32xf32>
    tpu.vector_store %arg24[%c0_216, %c0_217], %617 {strides = array<i32>} : memref<16x64xf32, #tpu.memory_space<vmem>>, vector<1x32xf32>,
    %619 = vector.extract_strided_slice %614 {offsets = [2, 0], sizes = [1, 32], strides = [1, 1]} : vector<8x32xf32> to vector<1x32xf32>
    %c7 = arith.constant 7 : index
    %c32_218 = arith.constant 32 : index
    %620 = vector.load %arg24[%c7, %c32_218] : memref<16x64xf32, #tpu.memory_space<vmem>>, vector<1x32xf32>
    tpu.vector_store %arg24[%c7, %c32_218], %619 {strides = array<i32>} : memref<16x64xf32, #tpu.memory_space<vmem>>, vector<1x32xf32>,
    %621 = vector.extract_strided_slice %614 {offsets = [1, 0], sizes = [1, 32], strides = [1, 1]} : vector<8x32xf32> to vector<1x32xf32>
    %c8_219 = arith.constant 8 : index
    %c0_220 = arith.constant 0 : index
    %622 = vector.load %arg24[%c8_219, %c0_220] : memref<16x64xf32, #tpu.memory_space<vmem>>, vector<1x32xf32>
    tpu.vector_store %arg24[%c8_219, %c0_220], %621 {strides = array<i32>} : memref<16x64xf32, #tpu.memory_space<vmem>>, vector<1x32xf32>,
    %623 = vector.extract_strided_slice %614 {offsets = [3, 0], sizes = [1, 32], strides = [1, 1]} : vector<8x32xf32> to vector<1x32xf32>
    %c15 = arith.constant 15 : index
    %c32_221 = arith.constant 32 : index
    %624 = vector.load %arg24[%c15, %c32_221] : memref<16x64xf32, #tpu.memory_space<vmem>>, vector<1x32xf32>
    tpu.vector_store %arg24[%c15, %c32_221], %623 {strides = array<i32>} : memref<16x64xf32, #tpu.memory_space<vmem>>, vector<1x32xf32>,
    %cst_222 = arith.constant dense<0.000000e+00> : vector<8x128xf32>
    %625 = tpu.matmul %616, %563, %cst_222 {dimension_numbers = #tpu.dot_dimension_numbers<[1], [0], [0], [1], [0, 0, 1, 1], [], []>} : vector<8x64xf32>, vector<64x128xf32>, vector<8x128xf32> -> vector<8x128xf32>
    %626 = arith.addf %570, %625 : vector<8x128xf32>
    %627 = math.tanh %626 : vector<8x128xf32>
    %628 = vector.extract_strided_slice %627 {offsets = [0, 0], sizes = [8, 32], strides = [1, 1]} : vector<8x128xf32> to vector<8x32xf32>
    %cst_223 = arith.constant 5.000000e-01 : f32
    %629 = vector.broadcast %cst_223 : f32 to vector<8x32xf32>
    %630 = arith.mulf %629, %628 : vector<8x32xf32>
    %cst_224 = arith.constant 5.000000e-01 : f32
    %631 = vector.broadcast %cst_224 : f32 to vector<8x32xf32>
    %632 = arith.addf %630, %631 : vector<8x32xf32>
    %633 = vector.extract_strided_slice %627 {offsets = [0, 32], sizes = [8, 32], strides = [1, 1]} : vector<8x128xf32> to vector<8x32xf32>
    %cst_225 = arith.constant 5.000000e-01 : f32
    %634 = vector.broadcast %cst_225 : f32 to vector<8x32xf32>
    %635 = arith.mulf %634, %633 : vector<8x32xf32>
    %cst_226 = arith.constant 5.000000e-01 : f32
    %636 = vector.broadcast %cst_226 : f32 to vector<8x32xf32>
    %637 = arith.addf %635, %636 : vector<8x32xf32>
    %638 = vector.extract_strided_slice %627 {offsets = [0, 64], sizes = [8, 32], strides = [1, 1]} : vector<8x128xf32> to vector<8x32xf32>
    %639 = vector.extract_strided_slice %627 {offsets = [0, 96], sizes = [8, 32], strides = [1, 1]} : vector<8x128xf32> to vector<8x32xf32>
    %cst_227 = arith.constant 5.000000e-01 : f32
    %640 = vector.broadcast %cst_227 : f32 to vector<8x32xf32>
    %641 = arith.mulf %640, %639 : vector<8x32xf32>
    %cst_228 = arith.constant 5.000000e-01 : f32
    %642 = vector.broadcast %cst_228 : f32 to vector<8x32xf32>
    %643 = arith.addf %641, %642 : vector<8x32xf32>
    %644 = arith.mulf %637, %612 : vector<8x32xf32>
    %645 = arith.mulf %632, %638 : vector<8x32xf32>
    %646 = arith.addf %644, %645 : vector<8x32xf32>
    %647 = math.tanh %646 : vector<8x32xf32>
    %648 = arith.mulf %643, %647 : vector<8x32xf32>
    %649 = tpu.concatenate %648, %648 in 1 : vector<8x32xf32>, vector<8x32xf32> -> vector<8x64xf32>
    %650 = arith.mulf %649, %10 : vector<8x64xf32>
    %651 = vector.extract_strided_slice %648 {offsets = [0, 0], sizes = [1, 32], strides = [1, 1]} : vector<8x32xf32> to vector<1x32xf32>
    %c1 = arith.constant 1 : index
    %c0_229 = arith.constant 0 : index
    %652 = vector.load %arg24[%c1, %c0_229] : memref<16x64xf32, #tpu.memory_space<vmem>>, vector<1x32xf32>
    tpu.vector_store %arg24[%c1, %c0_229], %651 {strides = array<i32>} : memref<16x64xf32, #tpu.memory_space<vmem>>, vector<1x32xf32>,
    %653 = vector.extract_strided_slice %648 {offsets = [2, 0], sizes = [1, 32], strides = [1, 1]} : vector<8x32xf32> to vector<1x32xf32>
    %c6 = arith.constant 6 : index
    %c32_230 = arith.constant 32 : index
    %654 = vector.load %arg24[%c6, %c32_230] : memref<16x64xf32, #tpu.memory_space<vmem>>, vector<1x32xf32>
    tpu.vector_store %arg24[%c6, %c32_230], %653 {strides = array<i32>} : memref<16x64xf32, #tpu.memory_space<vmem>>, vector<1x32xf32>,
    %655 = vector.extract_strided_slice %648 {offsets = [1, 0], sizes = [1, 32], strides = [1, 1]} : vector<8x32xf32> to vector<1x32xf32>
    %c9 = arith.constant 9 : index
    %c0_231 = arith.constant 0 : index
    %656 = vector.load %arg24[%c9, %c0_231] : memref<16x64xf32, #tpu.memory_space<vmem>>, vector<1x32xf32>
    tpu.vector_store %arg24[%c9, %c0_231], %655 {strides = array<i32>} : memref<16x64xf32, #tpu.memory_space<vmem>>, vector<1x32xf32>,
    %657 = vector.extract_strided_slice %648 {offsets = [3, 0], sizes = [1, 32], strides = [1, 1]} : vector<8x32xf32> to vector<1x32xf32>
    %c14 = arith.constant 14 : index
    %c32_232 = arith.constant 32 : index
    %658 = vector.load %arg24[%c14, %c32_232] : memref<16x64xf32, #tpu.memory_space<vmem>>, vector<1x32xf32>
    tpu.vector_store %arg24[%c14, %c32_232], %657 {strides = array<i32>} : memref<16x64xf32, #tpu.memory_space<vmem>>, vector<1x32xf32>,
    %cst_233 = arith.constant dense<0.000000e+00> : vector<8x128xf32>
    %659 = tpu.matmul %650, %563, %cst_233 {dimension_numbers = #tpu.dot_dimension_numbers<[1], [0], [0], [1], [0, 0, 1, 1], [], []>} : vector<8x64xf32>, vector<64x128xf32>, vector<8x128xf32> -> vector<8x128xf32>
    %660 = arith.addf %573, %659 : vector<8x128xf32>
    %661 = math.tanh %660 : vector<8x128xf32>
    %662 = vector.extract_strided_slice %661 {offsets = [0, 0], sizes = [8, 32], strides = [1, 1]} : vector<8x128xf32> to vector<8x32xf32>
    %cst_234 = arith.constant 5.000000e-01 : f32
    %663 = vector.broadcast %cst_234 : f32 to vector<8x32xf32>
    %664 = arith.mulf %663, %662 : vector<8x32xf32>
    %cst_235 = arith.constant 5.000000e-01 : f32
    %665 = vector.broadcast %cst_235 : f32 to vector<8x32xf32>
    %666 = arith.addf %664, %665 : vector<8x32xf32>
    %667 = vector.extract_strided_slice %661 {offsets = [0, 32], sizes = [8, 32], strides = [1, 1]} : vector<8x128xf32> to vector<8x32xf32>
    %cst_236 = arith.constant 5.000000e-01 : f32
    %668 = vector.broadcast %cst_236 : f32 to vector<8x32xf32>
    %669 = arith.mulf %668, %667 : vector<8x32xf32>
    %cst_237 = arith.constant 5.000000e-01 : f32
    %670 = vector.broadcast %cst_237 : f32 to vector<8x32xf32>
    %671 = arith.addf %669, %670 : vector<8x32xf32>
    %672 = vector.extract_strided_slice %661 {offsets = [0, 64], sizes = [8, 32], strides = [1, 1]} : vector<8x128xf32> to vector<8x32xf32>
    %673 = vector.extract_strided_slice %661 {offsets = [0, 96], sizes = [8, 32], strides = [1, 1]} : vector<8x128xf32> to vector<8x32xf32>
    %cst_238 = arith.constant 5.000000e-01 : f32
    %674 = vector.broadcast %cst_238 : f32 to vector<8x32xf32>
    %675 = arith.mulf %674, %673 : vector<8x32xf32>
    %cst_239 = arith.constant 5.000000e-01 : f32
    %676 = vector.broadcast %cst_239 : f32 to vector<8x32xf32>
    %677 = arith.addf %675, %676 : vector<8x32xf32>
    %678 = arith.mulf %671, %646 : vector<8x32xf32>
    %679 = arith.mulf %666, %672 : vector<8x32xf32>
    %680 = arith.addf %678, %679 : vector<8x32xf32>
    %681 = math.tanh %680 : vector<8x32xf32>
    %682 = arith.mulf %677, %681 : vector<8x32xf32>
    %683 = tpu.concatenate %682, %682 in 1 : vector<8x32xf32>, vector<8x32xf32> -> vector<8x64xf32>
    %684 = arith.mulf %683, %10 : vector<8x64xf32>
    %685 = vector.extract_strided_slice %682 {offsets = [0, 0], sizes = [1, 32], strides = [1, 1]} : vector<8x32xf32> to vector<1x32xf32>
    %c2 = arith.constant 2 : index
    %c0_240 = arith.constant 0 : index
    %686 = vector.load %arg24[%c2, %c0_240] : memref<16x64xf32, #tpu.memory_space<vmem>>, vector<1x32xf32>
    tpu.vector_store %arg24[%c2, %c0_240], %685 {strides = array<i32>} : memref<16x64xf32, #tpu.memory_space<vmem>>, vector<1x32xf32>,
    %687 = vector.extract_strided_slice %682 {offsets = [2, 0], sizes = [1, 32], strides = [1, 1]} : vector<8x32xf32> to vector<1x32xf32>
    %c5 = arith.constant 5 : index
    %c32_241 = arith.constant 32 : index
    %688 = vector.load %arg24[%c5, %c32_241] : memref<16x64xf32, #tpu.memory_space<vmem>>, vector<1x32xf32>
    tpu.vector_store %arg24[%c5, %c32_241], %687 {strides = array<i32>} : memref<16x64xf32, #tpu.memory_space<vmem>>, vector<1x32xf32>,
    %689 = vector.extract_strided_slice %682 {offsets = [1, 0], sizes = [1, 32], strides = [1, 1]} : vector<8x32xf32> to vector<1x32xf32>
    %c10 = arith.constant 10 : index
    %c0_242 = arith.constant 0 : index
    %690 = vector.load %arg24[%c10, %c0_242] : memref<16x64xf32, #tpu.memory_space<vmem>>, vector<1x32xf32>
    tpu.vector_store %arg24[%c10, %c0_242], %689 {strides = array<i32>} : memref<16x64xf32, #tpu.memory_space<vmem>>, vector<1x32xf32>,
    %691 = vector.extract_strided_slice %682 {offsets = [3, 0], sizes = [1, 32], strides = [1, 1]} : vector<8x32xf32> to vector<1x32xf32>
    %c13 = arith.constant 13 : index
    %c32_243 = arith.constant 32 : index
    %692 = vector.load %arg24[%c13, %c32_243] : memref<16x64xf32, #tpu.memory_space<vmem>>, vector<1x32xf32>
    tpu.vector_store %arg24[%c13, %c32_243], %691 {strides = array<i32>} : memref<16x64xf32, #tpu.memory_space<vmem>>, vector<1x32xf32>,
    %cst_244 = arith.constant dense<0.000000e+00> : vector<8x128xf32>
    %693 = tpu.matmul %684, %563, %cst_244 {dimension_numbers = #tpu.dot_dimension_numbers<[1], [0], [0], [1], [0, 0, 1, 1], [], []>} : vector<8x64xf32>, vector<64x128xf32>, vector<8x128xf32> -> vector<8x128xf32>
    %694 = arith.addf %576, %693 : vector<8x128xf32>
    %695 = math.tanh %694 : vector<8x128xf32>
    %696 = vector.extract_strided_slice %695 {offsets = [0, 0], sizes = [8, 32], strides = [1, 1]} : vector<8x128xf32> to vector<8x32xf32>
    %cst_245 = arith.constant 5.000000e-01 : f32
    %697 = vector.broadcast %cst_245 : f32 to vector<8x32xf32>
    %698 = arith.mulf %697, %696 : vector<8x32xf32>
    %cst_246 = arith.constant 5.000000e-01 : f32
    %699 = vector.broadcast %cst_246 : f32 to vector<8x32xf32>
    %700 = arith.addf %698, %699 : vector<8x32xf32>
    %701 = vector.extract_strided_slice %695 {offsets = [0, 32], sizes = [8, 32], strides = [1, 1]} : vector<8x128xf32> to vector<8x32xf32>
    %cst_247 = arith.constant 5.000000e-01 : f32
    %702 = vector.broadcast %cst_247 : f32 to vector<8x32xf32>
    %703 = arith.mulf %702, %701 : vector<8x32xf32>
    %cst_248 = arith.constant 5.000000e-01 : f32
    %704 = vector.broadcast %cst_248 : f32 to vector<8x32xf32>
    %705 = arith.addf %703, %704 : vector<8x32xf32>
    %706 = vector.extract_strided_slice %695 {offsets = [0, 64], sizes = [8, 32], strides = [1, 1]} : vector<8x128xf32> to vector<8x32xf32>
    %707 = vector.extract_strided_slice %695 {offsets = [0, 96], sizes = [8, 32], strides = [1, 1]} : vector<8x128xf32> to vector<8x32xf32>
    %cst_249 = arith.constant 5.000000e-01 : f32
    %708 = vector.broadcast %cst_249 : f32 to vector<8x32xf32>
    %709 = arith.mulf %708, %707 : vector<8x32xf32>
    %cst_250 = arith.constant 5.000000e-01 : f32
    %710 = vector.broadcast %cst_250 : f32 to vector<8x32xf32>
    %711 = arith.addf %709, %710 : vector<8x32xf32>
    %712 = arith.mulf %705, %680 : vector<8x32xf32>
    %713 = arith.mulf %700, %706 : vector<8x32xf32>
    %714 = arith.addf %712, %713 : vector<8x32xf32>
    %715 = math.tanh %714 : vector<8x32xf32>
    %716 = arith.mulf %711, %715 : vector<8x32xf32>
    %717 = tpu.concatenate %716, %716 in 1 : vector<8x32xf32>, vector<8x32xf32> -> vector<8x64xf32>
    %718 = arith.mulf %717, %10 : vector<8x64xf32>
    %719 = vector.extract_strided_slice %716 {offsets = [0, 0], sizes = [1, 32], strides = [1, 1]} : vector<8x32xf32> to vector<1x32xf32>
    %c3 = arith.constant 3 : index
    %c0_251 = arith.constant 0 : index
    %720 = vector.load %arg24[%c3, %c0_251] : memref<16x64xf32, #tpu.memory_space<vmem>>, vector<1x32xf32>
    tpu.vector_store %arg24[%c3, %c0_251], %719 {strides = array<i32>} : memref<16x64xf32, #tpu.memory_space<vmem>>, vector<1x32xf32>,
    %721 = vector.extract_strided_slice %716 {offsets = [2, 0], sizes = [1, 32], strides = [1, 1]} : vector<8x32xf32> to vector<1x32xf32>
    %c4 = arith.constant 4 : index
    %c32_252 = arith.constant 32 : index
    %722 = vector.load %arg24[%c4, %c32_252] : memref<16x64xf32, #tpu.memory_space<vmem>>, vector<1x32xf32>
    tpu.vector_store %arg24[%c4, %c32_252], %721 {strides = array<i32>} : memref<16x64xf32, #tpu.memory_space<vmem>>, vector<1x32xf32>,
    %723 = vector.extract_strided_slice %716 {offsets = [1, 0], sizes = [1, 32], strides = [1, 1]} : vector<8x32xf32> to vector<1x32xf32>
    %c11 = arith.constant 11 : index
    %c0_253 = arith.constant 0 : index
    %724 = vector.load %arg24[%c11, %c0_253] : memref<16x64xf32, #tpu.memory_space<vmem>>, vector<1x32xf32>
    tpu.vector_store %arg24[%c11, %c0_253], %723 {strides = array<i32>} : memref<16x64xf32, #tpu.memory_space<vmem>>, vector<1x32xf32>,
    %725 = vector.extract_strided_slice %716 {offsets = [3, 0], sizes = [1, 32], strides = [1, 1]} : vector<8x32xf32> to vector<1x32xf32>
    %c12 = arith.constant 12 : index
    %c32_254 = arith.constant 32 : index
    %726 = vector.load %arg24[%c12, %c32_254] : memref<16x64xf32, #tpu.memory_space<vmem>>, vector<1x32xf32>
    tpu.vector_store %arg24[%c12, %c32_254], %725 {strides = array<i32>} : memref<16x64xf32, #tpu.memory_space<vmem>>, vector<1x32xf32>,
    %cst_255 = arith.constant dense<0.000000e+00> : vector<8x128xf32>
    %727 = tpu.matmul %718, %563, %cst_255 {dimension_numbers = #tpu.dot_dimension_numbers<[1], [0], [0], [1], [0, 0, 1, 1], [], []>} : vector<8x64xf32>, vector<64x128xf32>, vector<8x128xf32> -> vector<8x128xf32>
    %728 = arith.addf %579, %727 : vector<8x128xf32>
    %729 = math.tanh %728 : vector<8x128xf32>
    %730 = vector.extract_strided_slice %729 {offsets = [0, 0], sizes = [8, 32], strides = [1, 1]} : vector<8x128xf32> to vector<8x32xf32>
    %cst_256 = arith.constant 5.000000e-01 : f32
    %731 = vector.broadcast %cst_256 : f32 to vector<8x32xf32>
    %732 = arith.mulf %731, %730 : vector<8x32xf32>
    %cst_257 = arith.constant 5.000000e-01 : f32
    %733 = vector.broadcast %cst_257 : f32 to vector<8x32xf32>
    %734 = arith.addf %732, %733 : vector<8x32xf32>
    %735 = vector.extract_strided_slice %729 {offsets = [0, 32], sizes = [8, 32], strides = [1, 1]} : vector<8x128xf32> to vector<8x32xf32>
    %cst_258 = arith.constant 5.000000e-01 : f32
    %736 = vector.broadcast %cst_258 : f32 to vector<8x32xf32>
    %737 = arith.mulf %736, %735 : vector<8x32xf32>
    %cst_259 = arith.constant 5.000000e-01 : f32
    %738 = vector.broadcast %cst_259 : f32 to vector<8x32xf32>
    %739 = arith.addf %737, %738 : vector<8x32xf32>
    %740 = vector.extract_strided_slice %729 {offsets = [0, 64], sizes = [8, 32], strides = [1, 1]} : vector<8x128xf32> to vector<8x32xf32>
    %741 = vector.extract_strided_slice %729 {offsets = [0, 96], sizes = [8, 32], strides = [1, 1]} : vector<8x128xf32> to vector<8x32xf32>
    %cst_260 = arith.constant 5.000000e-01 : f32
    %742 = vector.broadcast %cst_260 : f32 to vector<8x32xf32>
    %743 = arith.mulf %742, %741 : vector<8x32xf32>
    %cst_261 = arith.constant 5.000000e-01 : f32
    %744 = vector.broadcast %cst_261 : f32 to vector<8x32xf32>
    %745 = arith.addf %743, %744 : vector<8x32xf32>
    %746 = arith.mulf %739, %714 : vector<8x32xf32>
    %747 = arith.mulf %734, %740 : vector<8x32xf32>
    %748 = arith.addf %746, %747 : vector<8x32xf32>
    %749 = math.tanh %748 : vector<8x32xf32>
    %750 = arith.mulf %745, %749 : vector<8x32xf32>
    %751 = tpu.concatenate %750, %750 in 1 : vector<8x32xf32>, vector<8x32xf32> -> vector<8x64xf32>
    %752 = arith.mulf %751, %10 : vector<8x64xf32>
    %753 = vector.extract_strided_slice %750 {offsets = [0, 0], sizes = [1, 32], strides = [1, 1]} : vector<8x32xf32> to vector<1x32xf32>
    %c4_262 = arith.constant 4 : index
    %c0_263 = arith.constant 0 : index
    %754 = vector.load %arg24[%c4_262, %c0_263] : memref<16x64xf32, #tpu.memory_space<vmem>>, vector<1x32xf32>
    tpu.vector_store %arg24[%c4_262, %c0_263], %753 {strides = array<i32>} : memref<16x64xf32, #tpu.memory_space<vmem>>, vector<1x32xf32>,
    %755 = vector.extract_strided_slice %750 {offsets = [2, 0], sizes = [1, 32], strides = [1, 1]} : vector<8x32xf32> to vector<1x32xf32>
    %c3_264 = arith.constant 3 : index
    %c32_265 = arith.constant 32 : index
    %756 = vector.load %arg24[%c3_264, %c32_265] : memref<16x64xf32, #tpu.memory_space<vmem>>, vector<1x32xf32>
    tpu.vector_store %arg24[%c3_264, %c32_265], %755 {strides = array<i32>} : memref<16x64xf32, #tpu.memory_space<vmem>>, vector<1x32xf32>,
    %757 = vector.extract_strided_slice %750 {offsets = [1, 0], sizes = [1, 32], strides = [1, 1]} : vector<8x32xf32> to vector<1x32xf32>
    %c12_266 = arith.constant 12 : index
    %c0_267 = arith.constant 0 : index
    %758 = vector.load %arg24[%c12_266, %c0_267] : memref<16x64xf32, #tpu.memory_space<vmem>>, vector<1x32xf32>
    tpu.vector_store %arg24[%c12_266, %c0_267], %757 {strides = array<i32>} : memref<16x64xf32, #tpu.memory_space<vmem>>, vector<1x32xf32>,
    %759 = vector.extract_strided_slice %750 {offsets = [3, 0], sizes = [1, 32], strides = [1, 1]} : vector<8x32xf32> to vector<1x32xf32>
    %c11_268 = arith.constant 11 : index
    %c32_269 = arith.constant 32 : index
    %760 = vector.load %arg24[%c11_268, %c32_269] : memref<16x64xf32, #tpu.memory_space<vmem>>, vector<1x32xf32>
    tpu.vector_store %arg24[%c11_268, %c32_269], %759 {strides = array<i32>} : memref<16x64xf32, #tpu.memory_space<vmem>>, vector<1x32xf32>,
    %cst_270 = arith.constant dense<0.000000e+00> : vector<8x128xf32>
    %761 = tpu.matmul %752, %563, %cst_270 {dimension_numbers = #tpu.dot_dimension_numbers<[1], [0], [0], [1], [0, 0, 1, 1], [], []>} : vector<8x64xf32>, vector<64x128xf32>, vector<8x128xf32> -> vector<8x128xf32>
    %762 = arith.addf %582, %761 : vector<8x128xf32>
    %763 = math.tanh %762 : vector<8x128xf32>
    %764 = vector.extract_strided_slice %763 {offsets = [0, 0], sizes = [8, 32], strides = [1, 1]} : vector<8x128xf32> to vector<8x32xf32>
    %cst_271 = arith.constant 5.000000e-01 : f32
    %765 = vector.broadcast %cst_271 : f32 to vector<8x32xf32>
    %766 = arith.mulf %765, %764 : vector<8x32xf32>
    %cst_272 = arith.constant 5.000000e-01 : f32
    %767 = vector.broadcast %cst_272 : f32 to vector<8x32xf32>
    %768 = arith.addf %766, %767 : vector<8x32xf32>
    %769 = vector.extract_strided_slice %763 {offsets = [0, 32], sizes = [8, 32], strides = [1, 1]} : vector<8x128xf32> to vector<8x32xf32>
    %cst_273 = arith.constant 5.000000e-01 : f32
    %770 = vector.broadcast %cst_273 : f32 to vector<8x32xf32>
    %771 = arith.mulf %770, %769 : vector<8x32xf32>
    %cst_274 = arith.constant 5.000000e-01 : f32
    %772 = vector.broadcast %cst_274 : f32 to vector<8x32xf32>
    %773 = arith.addf %771, %772 : vector<8x32xf32>
    %774 = vector.extract_strided_slice %763 {offsets = [0, 64], sizes = [8, 32], strides = [1, 1]} : vector<8x128xf32> to vector<8x32xf32>
    %775 = vector.extract_strided_slice %763 {offsets = [0, 96], sizes = [8, 32], strides = [1, 1]} : vector<8x128xf32> to vector<8x32xf32>
    %cst_275 = arith.constant 5.000000e-01 : f32
    %776 = vector.broadcast %cst_275 : f32 to vector<8x32xf32>
    %777 = arith.mulf %776, %775 : vector<8x32xf32>
    %cst_276 = arith.constant 5.000000e-01 : f32
    %778 = vector.broadcast %cst_276 : f32 to vector<8x32xf32>
    %779 = arith.addf %777, %778 : vector<8x32xf32>
    %780 = arith.mulf %773, %748 : vector<8x32xf32>
    %781 = arith.mulf %768, %774 : vector<8x32xf32>
    %782 = arith.addf %780, %781 : vector<8x32xf32>
    %783 = math.tanh %782 : vector<8x32xf32>
    %784 = arith.mulf %779, %783 : vector<8x32xf32>
    %785 = tpu.concatenate %784, %784 in 1 : vector<8x32xf32>, vector<8x32xf32> -> vector<8x64xf32>
    %786 = arith.mulf %785, %10 : vector<8x64xf32>
    %787 = vector.extract_strided_slice %784 {offsets = [0, 0], sizes = [1, 32], strides = [1, 1]} : vector<8x32xf32> to vector<1x32xf32>
    %c5_277 = arith.constant 5 : index
    %c0_278 = arith.constant 0 : index
    %788 = vector.load %arg24[%c5_277, %c0_278] : memref<16x64xf32, #tpu.memory_space<vmem>>, vector<1x32xf32>
    tpu.vector_store %arg24[%c5_277, %c0_278], %787 {strides = array<i32>} : memref<16x64xf32, #tpu.memory_space<vmem>>, vector<1x32xf32>,
    %789 = vector.extract_strided_slice %784 {offsets = [2, 0], sizes = [1, 32], strides = [1, 1]} : vector<8x32xf32> to vector<1x32xf32>
    %c2_279 = arith.constant 2 : index
    %c32_280 = arith.constant 32 : index
    %790 = vector.load %arg24[%c2_279, %c32_280] : memref<16x64xf32, #tpu.memory_space<vmem>>, vector<1x32xf32>
    tpu.vector_store %arg24[%c2_279, %c32_280], %789 {strides = array<i32>} : memref<16x64xf32, #tpu.memory_space<vmem>>, vector<1x32xf32>,
    %791 = vector.extract_strided_slice %784 {offsets = [1, 0], sizes = [1, 32], strides = [1, 1]} : vector<8x32xf32> to vector<1x32xf32>
    %c13_281 = arith.constant 13 : index
    %c0_282 = arith.constant 0 : index
    %792 = vector.load %arg24[%c13_281, %c0_282] : memref<16x64xf32, #tpu.memory_space<vmem>>, vector<1x32xf32>
    tpu.vector_store %arg24[%c13_281, %c0_282], %791 {strides = array<i32>} : memref<16x64xf32, #tpu.memory_space<vmem>>, vector<1x32xf32>,
    %793 = vector.extract_strided_slice %784 {offsets = [3, 0], sizes = [1, 32], strides = [1, 1]} : vector<8x32xf32> to vector<1x32xf32>
    %c10_283 = arith.constant 10 : index
    %c32_284 = arith.constant 32 : index
    %794 = vector.load %arg24[%c10_283, %c32_284] : memref<16x64xf32, #tpu.memory_space<vmem>>, vector<1x32xf32>
    tpu.vector_store %arg24[%c10_283, %c32_284], %793 {strides = array<i32>} : memref<16x64xf32, #tpu.memory_space<vmem>>, vector<1x32xf32>,
    %cst_285 = arith.constant dense<0.000000e+00> : vector<8x128xf32>
    %795 = tpu.matmul %786, %563, %cst_285 {dimension_numbers = #tpu.dot_dimension_numbers<[1], [0], [0], [1], [0, 0, 1, 1], [], []>} : vector<8x64xf32>, vector<64x128xf32>, vector<8x128xf32> -> vector<8x128xf32>
    %796 = arith.addf %585, %795 : vector<8x128xf32>
    %797 = math.tanh %796 : vector<8x128xf32>
    %798 = vector.extract_strided_slice %797 {offsets = [0, 0], sizes = [8, 32], strides = [1, 1]} : vector<8x128xf32> to vector<8x32xf32>
    %cst_286 = arith.constant 5.000000e-01 : f32
    %799 = vector.broadcast %cst_286 : f32 to vector<8x32xf32>
    %800 = arith.mulf %799, %798 : vector<8x32xf32>
    %cst_287 = arith.constant 5.000000e-01 : f32
    %801 = vector.broadcast %cst_287 : f32 to vector<8x32xf32>
    %802 = arith.addf %800, %801 : vector<8x32xf32>
    %803 = vector.extract_strided_slice %797 {offsets = [0, 32], sizes = [8, 32], strides = [1, 1]} : vector<8x128xf32> to vector<8x32xf32>
    %cst_288 = arith.constant 5.000000e-01 : f32
    %804 = vector.broadcast %cst_288 : f32 to vector<8x32xf32>
    %805 = arith.mulf %804, %803 : vector<8x32xf32>
    %cst_289 = arith.constant 5.000000e-01 : f32
    %806 = vector.broadcast %cst_289 : f32 to vector<8x32xf32>
    %807 = arith.addf %805, %806 : vector<8x32xf32>
    %808 = vector.extract_strided_slice %797 {offsets = [0, 64], sizes = [8, 32], strides = [1, 1]} : vector<8x128xf32> to vector<8x32xf32>
    %809 = vector.extract_strided_slice %797 {offsets = [0, 96], sizes = [8, 32], strides = [1, 1]} : vector<8x128xf32> to vector<8x32xf32>
    %cst_290 = arith.constant 5.000000e-01 : f32
    %810 = vector.broadcast %cst_290 : f32 to vector<8x32xf32>
    %811 = arith.mulf %810, %809 : vector<8x32xf32>
    %cst_291 = arith.constant 5.000000e-01 : f32
    %812 = vector.broadcast %cst_291 : f32 to vector<8x32xf32>
    %813 = arith.addf %811, %812 : vector<8x32xf32>
    %814 = arith.mulf %807, %782 : vector<8x32xf32>
    %815 = arith.mulf %802, %808 : vector<8x32xf32>
    %816 = arith.addf %814, %815 : vector<8x32xf32>
    %817 = math.tanh %816 : vector<8x32xf32>
    %818 = arith.mulf %813, %817 : vector<8x32xf32>
    %819 = tpu.concatenate %818, %818 in 1 : vector<8x32xf32>, vector<8x32xf32> -> vector<8x64xf32>
    %820 = arith.mulf %819, %10 : vector<8x64xf32>
    %821 = vector.extract_strided_slice %818 {offsets = [0, 0], sizes = [1, 32], strides = [1, 1]} : vector<8x32xf32> to vector<1x32xf32>
    %c6_292 = arith.constant 6 : index
    %c0_293 = arith.constant 0 : index
    %822 = vector.load %arg24[%c6_292, %c0_293] : memref<16x64xf32, #tpu.memory_space<vmem>>, vector<1x32xf32>
    tpu.vector_store %arg24[%c6_292, %c0_293], %821 {strides = array<i32>} : memref<16x64xf32, #tpu.memory_space<vmem>>, vector<1x32xf32>,
    %823 = vector.extract_strided_slice %818 {offsets = [2, 0], sizes = [1, 32], strides = [1, 1]} : vector<8x32xf32> to vector<1x32xf32>
    %c1_294 = arith.constant 1 : index
    %c32_295 = arith.constant 32 : index
    %824 = vector.load %arg24[%c1_294, %c32_295] : memref<16x64xf32, #tpu.memory_space<vmem>>, vector<1x32xf32>
    tpu.vector_store %arg24[%c1_294, %c32_295], %823 {strides = array<i32>} : memref<16x64xf32, #tpu.memory_space<vmem>>, vector<1x32xf32>,
    %825 = vector.extract_strided_slice %818 {offsets = [1, 0], sizes = [1, 32], strides = [1, 1]} : vector<8x32xf32> to vector<1x32xf32>
    %c14_296 = arith.constant 14 : index
    %c0_297 = arith.constant 0 : index
    %826 = vector.load %arg24[%c14_296, %c0_297] : memref<16x64xf32, #tpu.memory_space<vmem>>, vector<1x32xf32>
    tpu.vector_store %arg24[%c14_296, %c0_297], %825 {strides = array<i32>} : memref<16x64xf32, #tpu.memory_space<vmem>>, vector<1x32xf32>,
    %827 = vector.extract_strided_slice %818 {offsets = [3, 0], sizes = [1, 32], strides = [1, 1]} : vector<8x32xf32> to vector<1x32xf32>
    %c9_298 = arith.constant 9 : index
    %c32_299 = arith.constant 32 : index
    %828 = vector.load %arg24[%c9_298, %c32_299] : memref<16x64xf32, #tpu.memory_space<vmem>>, vector<1x32xf32>
    tpu.vector_store %arg24[%c9_298, %c32_299], %827 {strides = array<i32>} : memref<16x64xf32, #tpu.memory_space<vmem>>, vector<1x32xf32>,
    %cst_300 = arith.constant dense<0.000000e+00> : vector<8x128xf32>
    %829 = tpu.matmul %820, %563, %cst_300 {dimension_numbers = #tpu.dot_dimension_numbers<[1], [0], [0], [1], [0, 0, 1, 1], [], []>} : vector<8x64xf32>, vector<64x128xf32>, vector<8x128xf32> -> vector<8x128xf32>
    %830 = arith.addf %588, %829 : vector<8x128xf32>
    %831 = math.tanh %830 : vector<8x128xf32>
    %832 = vector.extract_strided_slice %831 {offsets = [0, 0], sizes = [8, 32], strides = [1, 1]} : vector<8x128xf32> to vector<8x32xf32>
    %cst_301 = arith.constant 5.000000e-01 : f32
    %833 = vector.broadcast %cst_301 : f32 to vector<8x32xf32>
    %834 = arith.mulf %833, %832 : vector<8x32xf32>
    %cst_302 = arith.constant 5.000000e-01 : f32
    %835 = vector.broadcast %cst_302 : f32 to vector<8x32xf32>
    %836 = arith.addf %834, %835 : vector<8x32xf32>
    %837 = vector.extract_strided_slice %831 {offsets = [0, 32], sizes = [8, 32], strides = [1, 1]} : vector<8x128xf32> to vector<8x32xf32>
    %cst_303 = arith.constant 5.000000e-01 : f32
    %838 = vector.broadcast %cst_303 : f32 to vector<8x32xf32>
    %839 = arith.mulf %838, %837 : vector<8x32xf32>
    %cst_304 = arith.constant 5.000000e-01 : f32
    %840 = vector.broadcast %cst_304 : f32 to vector<8x32xf32>
    %841 = arith.addf %839, %840 : vector<8x32xf32>
    %842 = vector.extract_strided_slice %831 {offsets = [0, 64], sizes = [8, 32], strides = [1, 1]} : vector<8x128xf32> to vector<8x32xf32>
    %843 = vector.extract_strided_slice %831 {offsets = [0, 96], sizes = [8, 32], strides = [1, 1]} : vector<8x128xf32> to vector<8x32xf32>
    %cst_305 = arith.constant 5.000000e-01 : f32
    %844 = vector.broadcast %cst_305 : f32 to vector<8x32xf32>
    %845 = arith.mulf %844, %843 : vector<8x32xf32>
    %cst_306 = arith.constant 5.000000e-01 : f32
    %846 = vector.broadcast %cst_306 : f32 to vector<8x32xf32>
    %847 = arith.addf %845, %846 : vector<8x32xf32>
    %848 = arith.mulf %841, %816 : vector<8x32xf32>
    %849 = arith.mulf %836, %842 : vector<8x32xf32>
    %850 = arith.addf %848, %849 : vector<8x32xf32>
    %851 = math.tanh %850 : vector<8x32xf32>
    %852 = arith.mulf %847, %851 : vector<8x32xf32>
    %853 = vector.extract_strided_slice %852 {offsets = [0, 0], sizes = [1, 32], strides = [1, 1]} : vector<8x32xf32> to vector<1x32xf32>
    %c7_307 = arith.constant 7 : index
    %c0_308 = arith.constant 0 : index
    %854 = vector.load %arg24[%c7_307, %c0_308] : memref<16x64xf32, #tpu.memory_space<vmem>>, vector<1x32xf32>
    tpu.vector_store %arg24[%c7_307, %c0_308], %853 {strides = array<i32>} : memref<16x64xf32, #tpu.memory_space<vmem>>, vector<1x32xf32>,
    %855 = vector.extract_strided_slice %852 {offsets = [2, 0], sizes = [1, 32], strides = [1, 1]} : vector<8x32xf32> to vector<1x32xf32>
    %c0_309 = arith.constant 0 : index
    %c32_310 = arith.constant 32 : index
    %856 = vector.load %arg24[%c0_309, %c32_310] : memref<16x64xf32, #tpu.memory_space<vmem>>, vector<1x32xf32>
    tpu.vector_store %arg24[%c0_309, %c32_310], %855 {strides = array<i32>} : memref<16x64xf32, #tpu.memory_space<vmem>>, vector<1x32xf32>,
    %857 = vector.extract_strided_slice %852 {offsets = [1, 0], sizes = [1, 32], strides = [1, 1]} : vector<8x32xf32> to vector<1x32xf32>
    %c15_311 = arith.constant 15 : index
    %c0_312 = arith.constant 0 : index
    %858 = vector.load %arg24[%c15_311, %c0_312] : memref<16x64xf32, #tpu.memory_space<vmem>>, vector<1x32xf32>
    tpu.vector_store %arg24[%c15_311, %c0_312], %857 {strides = array<i32>} : memref<16x64xf32, #tpu.memory_space<vmem>>, vector<1x32xf32>,
    %859 = vector.extract_strided_slice %852 {offsets = [3, 0], sizes = [1, 32], strides = [1, 1]} : vector<8x32xf32> to vector<1x32xf32>
    %c8_313 = arith.constant 8 : index
    %c32_314 = arith.constant 32 : index
    %860 = vector.load %arg24[%c8_313, %c32_314] : memref<16x64xf32, #tpu.memory_space<vmem>>, vector<1x32xf32>
    tpu.vector_store %arg24[%c8_313, %c32_314], %859 {strides = array<i32>} : memref<16x64xf32, #tpu.memory_space<vmem>>, vector<1x32xf32>,
    %c0_315 = arith.constant 0 : index
    %c0_316 = arith.constant 0 : index
    %861 = vector.load %arg24[%c0_315, %c0_316] : memref<16x64xf32, #tpu.memory_space<vmem>>, vector<16x64xf32>
    %cst_317 = arith.constant dense<0.000000e+00> : vector<16xf32>
    %862 = vector.multi_reduction <add>, %861, %cst_317 [1] : vector<16x64xf32> to vector<16xf32>
    %863 = vector.shape_cast %862 : vector<16xf32> to vector<16x1xf32>
    %cst_318 = arith.constant 6.400000e+01 : f32
    %864 = vector.broadcast %cst_318 : f32 to vector<16x1xf32>
    %865 = arith.divf %863, %864 : vector<16x1xf32>
    %866 = vector.broadcast %865 : vector<16x1xf32> to vector<16x64xf32>
    %867 = arith.subf %861, %866 : vector<16x64xf32>
    %868 = arith.mulf %867, %867 : vector<16x64xf32>
    %cst_319 = arith.constant dense<0.000000e+00> : vector<16xf32>
    %869 = vector.multi_reduction <add>, %868, %cst_319 [1] : vector<16x64xf32> to vector<16xf32>
    %870 = vector.shape_cast %869 : vector<16xf32> to vector<16x1xf32>
    %cst_320 = arith.constant 6.400000e+01 : f32
    %871 = vector.broadcast %cst_320 : f32 to vector<16x1xf32>
    %872 = arith.divf %870, %871 : vector<16x1xf32>
    %873 = vector.broadcast %865 : vector<16x1xf32> to vector<16x64xf32>
    %874 = arith.subf %861, %873 : vector<16x64xf32>
    %cst_321 = arith.constant 9.99999974E-6 : f32
    %875 = vector.broadcast %cst_321 : f32 to vector<16x1xf32>
    %876 = arith.addf %872, %875 : vector<16x1xf32>
    %877 = math.rsqrt %876 : vector<16x1xf32>
    %878 = vector.broadcast %877 : vector<16x1xf32> to vector<16x64xf32>
    %879 = arith.mulf %874, %878 : vector<16x64xf32>
    %c0_322 = arith.constant 0 : index
    %c0_323 = arith.constant 0 : index
    %880 = vector.load %arg10[%c0_322, %c0_323] : memref<1x64xf32, #tpu.memory_space<vmem>>, vector<1x64xf32>
    %881 = vector.broadcast %880 : vector<1x64xf32> to vector<16x64xf32>
    %882 = arith.mulf %879, %881 : vector<16x64xf32>
    %c0_324 = arith.constant 0 : index
    %c0_325 = arith.constant 0 : index
    %883 = vector.load %arg11[%c0_324, %c0_325] : memref<1x64xf32, #tpu.memory_space<vmem>>, vector<1x64xf32>
    %884 = vector.broadcast %883 : vector<1x64xf32> to vector<16x64xf32>
    %885 = arith.addf %882, %884 : vector<16x64xf32>
    %c0_326 = arith.constant 0 : index
    %c0_327 = arith.constant 0 : index
    %886 = vector.load %arg12[%c0_326, %c0_327] : memref<64x64xf32, #tpu.memory_space<vmem>>, vector<64x64xf32>
    %cst_328 = arith.constant dense<0.000000e+00> : vector<16x64xf32>
    %887 = tpu.matmul %885, %886, %cst_328 {dimension_numbers = #tpu.dot_dimension_numbers<[1], [0], [0], [1], [0, 0, 1, 1], [], []>} : vector<16x64xf32>, vector<64x64xf32>, vector<16x64xf32> -> vector<16x64xf32>
    %c0_329 = arith.constant 0 : index
    %c0_330 = arith.constant 0 : index
    %888 = vector.load %arg13[%c0_329, %c0_330] : memref<1x64xf32, #tpu.memory_space<vmem>>, vector<1x64xf32>
    %889 = vector.broadcast %888 : vector<1x64xf32> to vector<16x64xf32>
    %890 = arith.addf %887, %889 : vector<16x64xf32>
    %891 = math.tanh %890 : vector<16x64xf32>
    %c0_331 = arith.constant 0 : index
    %c0_332 = arith.constant 0 : index
    %892 = vector.load %arg14[%c0_331, %c0_332] : memref<1x64xf32, #tpu.memory_space<vmem>>, vector<1x64xf32>
    %893 = vector.broadcast %892 : vector<1x64xf32> to vector<16x64xf32>
    %894 = arith.mulf %891, %893 : vector<16x64xf32>
    %cst_333 = arith.constant dense<0.000000e+00> : vector<16xf32>
    %895 = vector.multi_reduction <add>, %894, %cst_333 [1] : vector<16x64xf32> to vector<16xf32>
    %896 = vector.shape_cast %895 : vector<16xf32> to vector<16x1xf32>
    %c0_334 = arith.constant 0 : index
    %c0_335 = arith.constant 0 : index
    %897 = vector.load %arg15[%c0_334, %c0_335] : memref<1x1xf32, #tpu.memory_space<vmem>>, vector<1x1xf32>
    %898 = vector.broadcast %897 : vector<1x1xf32> to vector<16x1xf32>
    %899 = arith.addf %896, %898 : vector<16x1xf32>
    %900 = vector.extract_strided_slice %899 {offsets = [0, 0], sizes = [8, 1], strides = [1, 1]} : vector<16x1xf32> to vector<8x1xf32>
    %901 = vector.extract_strided_slice %885 {offsets = [0, 0], sizes = [8, 64], strides = [1, 1]} : vector<16x64xf32> to vector<8x64xf32>
    %cst_336 = arith.constant dense<0xFF800000> : vector<1xf32>
    %902 = vector.multi_reduction <maximumf>, %900, %cst_336 [0] : vector<8x1xf32> to vector<1xf32>
    %903 = vector.shape_cast %902 : vector<1xf32> to vector<1x1xf32>
    %904 = vector.broadcast %903 : vector<1x1xf32> to vector<8x1xf32>
    %905 = arith.subf %900, %904 : vector<8x1xf32>
    %906 = math.exp %905 : vector<8x1xf32>
    %cst_337 = arith.constant dense<0.000000e+00> : vector<1xf32>
    %907 = vector.multi_reduction <add>, %906, %cst_337 [0] : vector<8x1xf32> to vector<1xf32>
    %908 = vector.shape_cast %907 : vector<1xf32> to vector<1x1xf32>
    %909 = vector.broadcast %908 : vector<1x1xf32> to vector<8x1xf32>
    %910 = arith.divf %906, %909 : vector<8x1xf32>
    %911 = vector.broadcast %910 : vector<8x1xf32> to vector<8x64xf32>
    %912 = arith.mulf %911, %901 : vector<8x64xf32>
    %cst_338 = arith.constant dense<0.000000e+00> : vector<64xf32>
    %913 = vector.multi_reduction <add>, %912, %cst_338 [0] : vector<8x64xf32> to vector<64xf32>
    %914 = vector.shape_cast %913 : vector<64xf32> to vector<1x64xf32>
    %915 = vector.extract_strided_slice %899 {offsets = [8, 0], sizes = [8, 1], strides = [1, 1]} : vector<16x1xf32> to vector<8x1xf32>
    %916 = vector.extract_strided_slice %885 {offsets = [8, 0], sizes = [8, 64], strides = [1, 1]} : vector<16x64xf32> to vector<8x64xf32>
    %cst_339 = arith.constant dense<0xFF800000> : vector<1xf32>
    %917 = vector.multi_reduction <maximumf>, %915, %cst_339 [0] : vector<8x1xf32> to vector<1xf32>
    %918 = vector.shape_cast %917 : vector<1xf32> to vector<1x1xf32>
    %919 = vector.broadcast %918 : vector<1x1xf32> to vector<8x1xf32>
    %920 = arith.subf %915, %919 : vector<8x1xf32>
    %921 = math.exp %920 : vector<8x1xf32>
    %cst_340 = arith.constant dense<0.000000e+00> : vector<1xf32>
    %922 = vector.multi_reduction <add>, %921, %cst_340 [0] : vector<8x1xf32> to vector<1xf32>
    %923 = vector.shape_cast %922 : vector<1xf32> to vector<1x1xf32>
    %924 = vector.broadcast %923 : vector<1x1xf32> to vector<8x1xf32>
    %925 = arith.divf %921, %924 : vector<8x1xf32>
    %926 = vector.broadcast %925 : vector<8x1xf32> to vector<8x64xf32>
    %927 = arith.mulf %926, %916 : vector<8x64xf32>
    %cst_341 = arith.constant dense<0.000000e+00> : vector<64xf32>
    %928 = vector.multi_reduction <add>, %927, %cst_341 [0] : vector<8x64xf32> to vector<64xf32>
    %929 = vector.shape_cast %928 : vector<64xf32> to vector<1x64xf32>
    %930 = tpu.concatenate %914, %929 in 0 : vector<1x64xf32>, vector<1x64xf32> -> vector<2x64xf32>
    %c0_342 = arith.constant 0 : index
    %c0_343 = arith.constant 0 : index
    %931 = vector.load %arg16[%c0_342, %c0_343] : memref<64x32xf32, #tpu.memory_space<vmem>>, vector<64x32xf32>
    %cst_344 = arith.constant dense<0.000000e+00> : vector<2x32xf32>
    %932 = tpu.matmul %930, %931, %cst_344 {dimension_numbers = #tpu.dot_dimension_numbers<[1], [0], [0], [1], [0, 0, 1, 1], [], []>} : vector<2x64xf32>, vector<64x32xf32>, vector<2x32xf32> -> vector<2x32xf32>
    %c0_345 = arith.constant 0 : index
    %c0_346 = arith.constant 0 : index
    %933 = vector.load %arg17[%c0_345, %c0_346] : memref<1x32xf32, #tpu.memory_space<vmem>>, vector<1x32xf32>
    %934 = vector.broadcast %933 : vector<1x32xf32> to vector<2x32xf32>
    %935 = arith.addf %932, %934 : vector<2x32xf32>
    %cst_347 = arith.constant 0.000000e+00 : f32
    %936 = vector.broadcast %cst_347 : f32 to vector<2x32xf32>
    %937 = arith.maximumf %935, %936 : vector<2x32xf32>
    %cst_348 = arith.constant dense<0.000000e+00> : vector<2xf32>
    %938 = vector.multi_reduction <add>, %937, %cst_348 [1] : vector<2x32xf32> to vector<2xf32>
    %939 = vector.shape_cast %938 : vector<2xf32> to vector<2x1xf32>
    %cst_349 = arith.constant 3.200000e+01 : f32
    %940 = vector.broadcast %cst_349 : f32 to vector<2x1xf32>
    %941 = arith.divf %939, %940 : vector<2x1xf32>
    %942 = vector.broadcast %941 : vector<2x1xf32> to vector<2x32xf32>
    %943 = arith.subf %937, %942 : vector<2x32xf32>
    %944 = arith.mulf %943, %943 : vector<2x32xf32>
    %cst_350 = arith.constant dense<0.000000e+00> : vector<2xf32>
    %945 = vector.multi_reduction <add>, %944, %cst_350 [1] : vector<2x32xf32> to vector<2xf32>
    %946 = vector.shape_cast %945 : vector<2xf32> to vector<2x1xf32>
    %cst_351 = arith.constant 3.200000e+01 : f32
    %947 = vector.broadcast %cst_351 : f32 to vector<2x1xf32>
    %948 = arith.divf %946, %947 : vector<2x1xf32>
    %949 = vector.broadcast %941 : vector<2x1xf32> to vector<2x32xf32>
    %950 = arith.subf %937, %949 : vector<2x32xf32>
    %cst_352 = arith.constant 9.99999974E-6 : f32
    %951 = vector.broadcast %cst_352 : f32 to vector<2x1xf32>
    %952 = arith.addf %948, %951 : vector<2x1xf32>
    %953 = math.rsqrt %952 : vector<2x1xf32>
    %954 = vector.broadcast %953 : vector<2x1xf32> to vector<2x32xf32>
    %955 = arith.mulf %950, %954 : vector<2x32xf32>
    %c0_353 = arith.constant 0 : index
    %c0_354 = arith.constant 0 : index
    %956 = vector.load %arg18[%c0_353, %c0_354] : memref<1x32xf32, #tpu.memory_space<vmem>>, vector<1x32xf32>
    %957 = vector.broadcast %956 : vector<1x32xf32> to vector<2x32xf32>
    %958 = arith.mulf %955, %957 : vector<2x32xf32>
    %c0_355 = arith.constant 0 : index
    %c0_356 = arith.constant 0 : index
    %959 = vector.load %arg19[%c0_355, %c0_356] : memref<1x32xf32, #tpu.memory_space<vmem>>, vector<1x32xf32>
    %960 = vector.broadcast %959 : vector<1x32xf32> to vector<2x32xf32>
    %961 = arith.addf %958, %960 : vector<2x32xf32>
    %c0_357 = arith.constant 0 : index
    %c0_358 = arith.constant 0 : index
    %962 = vector.load %arg20[%c0_357, %c0_358] : memref<32x16xf32, #tpu.memory_space<vmem>>, vector<32x16xf32>
    %cst_359 = arith.constant dense<0.000000e+00> : vector<2x16xf32>
    %963 = tpu.matmul %961, %962, %cst_359 {dimension_numbers = #tpu.dot_dimension_numbers<[1], [0], [0], [1], [0, 0, 1, 1], [], []>} : vector<2x32xf32>, vector<32x16xf32>, vector<2x16xf32> -> vector<2x16xf32>
    %c0_360 = arith.constant 0 : index
    %c0_361 = arith.constant 0 : index
    %964 = vector.load %arg21[%c0_360, %c0_361] : memref<1x16xf32, #tpu.memory_space<vmem>>, vector<1x16xf32>
    %965 = vector.broadcast %964 : vector<1x16xf32> to vector<2x16xf32>
    %966 = arith.addf %963, %965 : vector<2x16xf32>
    %c0_362 = arith.constant 0 : index
    %c0_363 = arith.constant 0 : index
    %967 = vector.load %arg22[%c0_362, %c0_363] : memref<2x16xf32, #tpu.memory_space<vmem>>, vector<2x16xf32>
    tpu.vector_store %arg22[%c0_362, %c0_363], %966 {strides = array<i32>} : memref<2x16xf32, #tpu.memory_space<vmem>>, vector<2x16xf32>,
    return
  }
}

</mosaic_0001>

<llo_original>
// kernel: pallas_forward.1
$region0: #{pallas_forward.1}
  #allocation0 [shape = 'u32[]', space=smem, size = 0x4, offset = 0x4, fixed_abs, tag = 'smem constant byte address 0x4 - core index']
  #allocation1 [shape = 'u32[144,128]{1,0:T(1,128)}', space=vmem, size = 0x12000, scoped, tag = 'internal scratch']
  #allocation2 [shape = 'f32[64,64]{1,0:T(8,128)}', space=vmem, size = 0x8000, scoped, tag = 'scratch operand']
  #allocation3 [shape = 'f32[16,64]{1,0:T(8,128)}', space=vmem, size = 0x2000, scoped, tag = 'scratch operand']
  #allocation4 [shape = 'f32[1,1]{1,0:T(1,128)S(1)}', space=vmem, size = 0x200, scoped, tag = 'scoped memory for pallas_forward.1']
  %s0 = inlined_call_operand.vmem [shape: f32[64,5], index: 0, kind: input, shape index: {}]
  %s1 = inlined_call_operand.vmem [shape: f32[5,256], index: 1, kind: input, shape index: {}]
  %s2 = inlined_call_operand.vmem [shape: f32[64,128], index: 2, kind: input, shape index: {}]
  %s3 = inlined_call_operand.vmem [shape: f32[1,256], index: 3, kind: input, shape index: {}]
  %s4 = inlined_call_operand.vmem [shape: f32[64,256], index: 4, kind: input, shape index: {}]
  %s5 = inlined_call_operand.vmem [shape: f32[64,128], index: 5, kind: input, shape index: {}]
  %s6 = inlined_call_operand.vmem [shape: f32[1,256], index: 6, kind: input, shape index: {}]
  %s7 = inlined_call_operand.vmem [shape: f32[64,256], index: 7, kind: input, shape index: {}]
  %s8 = inlined_call_operand.vmem [shape: f32[64,128], index: 8, kind: input, shape index: {}]
  %s9 = inlined_call_operand.vmem [shape: f32[1,256], index: 9, kind: input, shape index: {}]
  %s10 = inlined_call_operand.vmem [shape: f32[1,64], index: 10, kind: input, shape index: {}]
  %s11 = inlined_call_operand.vmem [shape: f32[1,64], index: 11, kind: input, shape index: {}]
  %s12 = inlined_call_operand.vmem [shape: f32[64,64], index: 12, kind: input, shape index: {}]
  %s13 = inlined_call_operand.vmem [shape: f32[1,64], index: 13, kind: input, shape index: {}]
  %s14 = inlined_call_operand.vmem [shape: f32[1,64], index: 14, kind: input, shape index: {}]
  %s15 = inlined_call_operand.<no memory space> [shape: f32[1,1], index: 15, kind: input, shape index: {}]
  %s16 = inlined_call_operand.vmem [shape: f32[64,32], index: 16, kind: input, shape index: {}]
  %s17 = inlined_call_operand.vmem [shape: f32[1,32], index: 17, kind: input, shape index: {}]
  %s18 = inlined_call_operand.vmem [shape: f32[1,32], index: 18, kind: input, shape index: {}]
  %s19 = inlined_call_operand.vmem [shape: f32[1,32], index: 19, kind: input, shape index: {}]
  %s20 = inlined_call_operand.vmem [shape: f32[32,16], index: 20, kind: input, shape index: {}]
  %s21 = inlined_call_operand.vmem [shape: f32[1,16], index: 21, kind: input, shape index: {}]
  %s22 = inlined_call_operand.hbm [shape: f32[2,16], index: 22, kind: output, shape index: {}]
  %s23 = sld [smem:[#allocation0]]
  $region98: #{pallas_forward.1} parent=0
    _
  %s25 = ssub.s32 1, %s23
  %s26 = scalar_select 0, %s25, %s23
  %v27 = vstv %s15
  %28 = vst [vmem:[#allocation4] sm:$0x1] %v27
  $region1: #{pallas_forward.1} parent=0
    #allocation5 [shape = 'u8[1024]{0}', space=vmem, size = 0x400, scoped, tag = 'output window, operand 0, single buffered']
    #allocation6 [shape = 's32[1]{0}', space=sflag, size = 0x4, scoped, tag = 'scoped memory for pallas_forward.1']
    %29 = vsyncpa [#allocation6], 0
    // Predicated region
    $region2: #{pallas_forward.1} parent=1 // pred_check
      _
    $region3: #{pallas_forward.1} parent=1 // pred_check_branch
      %31 = sbr.rel (0) target = $region5
    $region4: #{pallas_forward.1} parent=1 // pred_region
      _
    $region5: #{pallas_forward.1} parent=1 // pred_fallthru
      _
    // Predicated region
    $region6: #{pallas_forward.1} parent=1 // pred_check
      _
    $region7: #{pallas_forward.1} parent=1 // pred_check_branch
      %33 = sbr.rel (0) target = $region9
    $region8: #{pallas_forward.1} parent=1 // pred_region
      _
    $region9: #{pallas_forward.1} parent=1 // pred_fallthru
      _
    // Predicated region
    $region10: #{pallas_forward.1} parent=1 // pred_check
      _
    $region11: #{pallas_forward.1} parent=1 // pred_check_branch
      %35 = sbr.rel (0) target = $region13
    $region12: #{pallas_forward.1} parent=1 // pred_region
      _
    $region13: #{pallas_forward.1} parent=1 // pred_fallthru
      _
    // Predicated region
    $region14: #{pallas_forward.1} parent=1 // pred_check
      _
    $region15: #{pallas_forward.1} parent=1 // pred_check_branch
      %37 = sbr.rel (0) target = $region17
    $region16: #{pallas_forward.1} parent=1 // pred_region
      _
    $region17: #{pallas_forward.1} parent=1 // pred_fallthru
      _
    // Predicated region
    $region18: #{pallas_forward.1} parent=1 // pred_check
      _
    $region19: #{pallas_forward.1} parent=1 // pred_check_branch
      %39 = sbr.rel (0) target = $region21
    $region20: #{pallas_forward.1} parent=1 // pred_region
      _
    $region21: #{pallas_forward.1} parent=1 // pred_fallthru
      _
    // Predicated region
    $region22: #{pallas_forward.1} parent=1 // pred_check
      _
    $region23: #{pallas_forward.1} parent=1 // pred_check_branch
      %41 = sbr.rel (0) target = $region25
    $region24: #{pallas_forward.1} parent=1 // pred_region
      _
    $region25: #{pallas_forward.1} parent=1 // pred_fallthru
      _
    // Predicated region
    $region26: #{pallas_forward.1} parent=1 // pred_check
      _
    $region27: #{pallas_forward.1} parent=1 // pred_check_branch
      %43 = sbr.rel (0) target = $region29
    $region28: #{pallas_forward.1} parent=1 // pred_region
      _
    $region29: #{pallas_forward.1} parent=1 // pred_fallthru
      _
    // Predicated region
    $region30: #{pallas_forward.1} parent=1 // pred_check
      _
    $region31: #{pallas_forward.1} parent=1 // pred_check_branch
      %45 = sbr.rel (0) target = $region33
    $region32: #{pallas_forward.1} parent=1 // pred_region
      _
    $region33: #{pallas_forward.1} parent=1 // pred_fallthru
      _
    // Predicated region
    $region34: #{pallas_forward.1} parent=1 // pred_check
      _
    $region35: #{pallas_forward.1} parent=1 // pred_check_branch
      %47 = sbr.rel (0) target = $region37
    $region36: #{pallas_forward.1} parent=1 // pred_region
      _
    $region37: #{pallas_forward.1} parent=1 // pred_fallthru
      _
    // Predicated region
    $region38: #{pallas_forward.1} parent=1 // pred_check
      _
    $region39: #{pallas_forward.1} parent=1 // pred_check_branch
      %49 = sbr.rel (0) target = $region41
    $region40: #{pallas_forward.1} parent=1 // pred_region
      _
    $region41: #{pallas_forward.1} parent=1 // pred_fallthru
      _
    // Predicated region
    $region42: #{pallas_forward.1} parent=1 // pred_check
      _
    $region43: #{pallas_forward.1} parent=1 // pred_check_branch
      %51 = sbr.rel (0) target = $region45
    $region44: #{pallas_forward.1} parent=1 // pred_region
      _
    $region45: #{pallas_forward.1} parent=1 // pred_fallthru
      _
    // Predicated region
    $region46: #{pallas_forward.1} parent=1 // pred_check
      _
    $region47: #{pallas_forward.1} parent=1 // pred_check_branch
      %53 = sbr.rel (0) target = $region49
    $region48: #{pallas_forward.1} parent=1 // pred_region
      _
    $region49: #{pallas_forward.1} parent=1 // pred_fallthru
      _
    // Predicated region
    $region50: #{pallas_forward.1} parent=1 // pred_check
      _
    $region51: #{pallas_forward.1} parent=1 // pred_check_branch
      %55 = sbr.rel (0) target = $region53
    $region52: #{pallas_forward.1} parent=1 // pred_region
      _
    $region53: #{pallas_forward.1} parent=1 // pred_fallthru
      _
    // Predicated region
    $region54: #{pallas_forward.1} parent=1 // pred_check
      _
    $region55: #{pallas_forward.1} parent=1 // pred_check_branch
      %57 = sbr.rel (0) target = $region57
    $region56: #{pallas_forward.1} parent=1 // pred_region
      _
    $region57: #{pallas_forward.1} parent=1 // pred_fallthru
      _
    // Predicated region
    $region58: #{pallas_forward.1} parent=1 // pred_check
      _
    $region59: #{pallas_forward.1} parent=1 // pred_check_branch
      %59 = sbr.rel (0) target = $region61
    $region60: #{pallas_forward.1} parent=1 // pred_region
      _
    $region61: #{pallas_forward.1} parent=1 // pred_fallthru
      _
    // Predicated region
    $region62: #{pallas_forward.1} parent=1 // pred_check
      _
    $region63: #{pallas_forward.1} parent=1 // pred_check_branch
      %61 = sbr.rel (0) target = $region65
    $region64: #{pallas_forward.1} parent=1 // pred_region
      _
    $region65: #{pallas_forward.1} parent=1 // pred_fallthru
      _
    // Predicated region
    $region66: #{pallas_forward.1} parent=1 // pred_check
      _
    $region67: #{pallas_forward.1} parent=1 // pred_check_branch
      %63 = sbr.rel (0) target = $region69
    $region68: #{pallas_forward.1} parent=1 // pred_region
      _
    $region69: #{pallas_forward.1} parent=1 // pred_fallthru
      _
    // Predicated region
    $region70: #{pallas_forward.1} parent=1 // pred_check
      _
    $region71: #{pallas_forward.1} parent=1 // pred_check_branch
      %65 = sbr.rel (0) target = $region73
    $region72: #{pallas_forward.1} parent=1 // pred_region
      _
    $region73: #{pallas_forward.1} parent=1 // pred_fallthru
      _
    // Predicated region
    $region74: #{pallas_forward.1} parent=1 // pred_check
      _
    $region75: #{pallas_forward.1} parent=1 // pred_check_branch
      %67 = sbr.rel (0) target = $region77
    $region76: #{pallas_forward.1} parent=1 // pred_region
      _
    $region77: #{pallas_forward.1} parent=1 // pred_fallthru
      _
    // Predicated region
    $region78: #{pallas_forward.1} parent=1 // pred_check
      _
    $region79: #{pallas_forward.1} parent=1 // pred_check_branch
      %69 = sbr.rel (0) target = $region81
    $region80: #{pallas_forward.1} parent=1 // pred_region
      _
    $region81: #{pallas_forward.1} parent=1 // pred_fallthru
      _
    // Predicated region
    $region82: #{pallas_forward.1} parent=1 // pred_check
      _
    $region83: #{pallas_forward.1} parent=1 // pred_check_branch
      %71 = sbr.rel (0) target = $region85
    $region84: #{pallas_forward.1} parent=1 // pred_region
      _
    $region85: #{pallas_forward.1} parent=1 // pred_fallthru
      _
    // Predicated region
    $region86: #{pallas_forward.1} parent=1 // pred_check
      _
    $region87: #{pallas_forward.1} parent=1 // pred_check_branch
      %73 = sbr.rel (0) target = $region89
    $region88: #{pallas_forward.1} parent=1 // pred_region
      _
    $region89: #{pallas_forward.1} parent=1 // pred_fallthru
      _
    %v74 = vlaneseq
    %v75 = vshrl.u32 %v74, 7
    %v76 = vlaneseq
    %v77 = vand.u32 %v76, 127
    %vm78 = vcmp.lt.s32.totalorder %v75, 2
    %vm79 = vcmp.lt.s32.totalorder %v77, 32
    %vm80 = vmxor %vm78, %vm79
    %vm81 = vmxor %vm80, 1
    %v82 = vsel %vm81, 1.0, 0.0
    %vm83 = vcmask 523264
    %84 = vst.msk [vmem:[#allocation2] sm:$0xff] %vm83, 0.0
    %85 = vst.msk [vmem:[#allocation2 + $0x8] sm:$0xff] %vm83, 0.0
    %86 = vst.msk [vmem:[#allocation2 + $0x10] sm:$0xff] %vm83, 0.0
    %87 = vst.msk [vmem:[#allocation2 + $0x18] sm:$0xff] %vm83, 0.0
    %88 = vst.msk [vmem:[#allocation2 + $0x20] sm:$0xff] %vm83, 0.0
    %89 = vst.msk [vmem:[#allocation2 + $0x28] sm:$0xff] %vm83, 0.0
    %90 = vst.msk [vmem:[#allocation2 + $0x30] sm:$0xff] %vm83, 0.0
    %91 = vst.msk [vmem:[#allocation2 + $0x38] sm:$0xff] %vm83, 0.0
    %v92 = vld [vmem:[%s0] sm:$0xff]
    %v93 = vld [vmem:[%s0 + $0x8] sm:$0xff]
    %v94 = vld [vmem:[%s0 + $0x10] sm:$0xff]
    %v95 = vld [vmem:[%s0 + $0x18] sm:$0xff]
    %v96 = vld [vmem:[%s0 + $0x20] sm:$0xff]
    %v97 = vld [vmem:[%s0 + $0x28] sm:$0xff]
    %v98 = vld [vmem:[%s0 + $0x30] sm:$0xff]
    %v99 = vld [vmem:[%s0 + $0x38] sm:$0xff]
    %v100 = vld [vmem:[%s1] sm:$0x1f]
    %v101 = vld [vmem:[%s1 + $0x8] sm:$0x1f]
    %v102 = vld [vmem:[%s3] sm:$0x3]
    %v104 = vlaneseq
    %v105 = vshrl.u32 %v104, 7
    %v106 = vsub.s32 0, %v105
    %v107 = vrot.slane %v102, %v106
    %v108 = vlaneseq
    %v109 = vshrl.u32 %v108, 7
    %v110 = vsub.s32 1, %v109
    %v111 = vrot.slane %v102, %v110
    %vm114 = vcmask 39936
    %v116 = vsel %vm114, %v92, 0
    %v119 = vsel %vm114, %v93, 0
    %v122 = vsel %vm114, %v94, 0
    %v125 = vsel %vm114, %v95, 0
    %v128 = vsel %vm114, %v96, 0
    %v131 = vsel %vm114, %v97, 0
    %v134 = vsel %vm114, %v98, 0
    %v137 = vsel %vm114, %v99, 0
    %vm139 = vcmask 1044480
    %v141 = vsel %vm139, %v100, 0
    %v144 = vsel %vm139, %v101, 0
    %146 = vmatprep.subr.mxu0 %v144
    %147 = vmatpush1.msra.mxu0 %v141
    %148 = vmatprep.subr.mxu0 0.0
    %149 = vmatpush1.msra.mxu0 0.0
    %150 = vmatprep.subr.mxu0 0.0
    %151 = vmatpush1.msra.mxu0 0.0
    %152 = vmatprep.subr.mxu0 0.0
    %153 = vmatpush1.msra.mxu0 0.0
    %154 = vmatprep.subr.mxu0 0.0
    %155 = vmatpush1.msra.mxu0 0.0
    %156 = vmatprep.subr.mxu0 0.0
    %157 = vmatpush1.msra.mxu0 0.0
    %158 = vmatprep.subr.mxu0 0.0
    %159 = vmatpush1.msra.mxu0 0.0
    %160 = vmatprep.subr.mxu0 0.0
    %161 = vmatpush1.msra.mxu0 0.0
    %162 = vmatprep.subr.mxu0 0.0
    %163 = vmatpush1.msra.mxu0 0.0
    %164 = vmatprep.subr.mxu0 0.0
    %165 = vmatpush1.msra.mxu0 0.0
    %166 = vmatprep.subr.mxu0 0.0
    %167 = vmatpush1.msra.mxu0 0.0
    %168 = vmatprep.subr.mxu0 0.0
    %169 = vmatpush1.msra.mxu0 0.0
    %170 = vmatprep.subr.mxu0 0.0
    %171 = vmatpush1.msra.mxu0 0.0
    %172 = vmatprep.subr.mxu0 0.0
    %173 = vmatpush1.msra.mxu0 0.0
    %174 = vmatprep.subr.mxu0 0.0
    %175 = vmatpush1.msra.mxu0 0.0
    %176 = vmatprep.subr.mxu0 0.0
    %177 = vmatpush1.msra.mxu0 0.0
    %178 = vmatprep.subr.mxu0 0.0
    %179 = vmatpush1.msra.mxu0 0.0
    %180 = vmatprep.subr.mxu0 0.0
    %181 = vmatpush1.msra.mxu0 0.0
    %182 = vmatprep.subr.mxu0 0.0
    %183 = vmatpush1.msra.mxu0 0.0
    %184 = vmatprep.subr.mxu0 0.0
    %185 = vmatpush1.msra.mxu0 0.0
    %186 = vmatprep.subr.mxu0 0.0
    %187 = vmatpush1.msra.mxu0 0.0
    %188 = vmatprep.subr.mxu0 0.0
    %189 = vmatpush1.msra.mxu0 0.0
    %190 = vmatprep.subr.mxu0 0.0
    %191 = vmatpush1.msra.mxu0 0.0
    %192 = vmatprep.subr.mxu0 0.0
    %193 = vmatpush1.msra.mxu0 0.0
    %194 = vmatprep.subr.mxu0 0.0
    %195 = vmatpush1.msra.mxu0 0.0
    %196 = vmatprep.subr.mxu0 0.0
    %197 = vmatpush1.msra.mxu0 0.0
    %198 = vmatprep.subr.mxu0 0.0
    %199 = vmatpush1.msra.mxu0 0.0
    %200 = vmatprep.subr.mxu0 0.0
    %201 = vmatpush1.msra.mxu0 0.0
    %202 = vmatprep.subr.mxu0 0.0
    %203 = vmatpush1.msra.mxu0 0.0
    %204 = vmatprep.subr.mxu0 0.0
    %205 = vmatpush1.msra.mxu0 0.0
    %206 = vmatprep.subr.mxu0 0.0
    %207 = vmatpush1.msra.mxu0 0.0
    %208 = vmatprep.subr.mxu0 0.0
    %209 = vmatpush1.msra.mxu0 0.0
    %210 = vmatprep.mubr.f32.mxu0 0.0
    %211 = vmatmul.mubr.f32.gmra.mrb[0].mxu0 %v116
    %v212 = vpop.f32.mrb[0].mxu0
    %v213 = vadd.f32 %v107, %v212
    %v214 = vpop.f32.mrb[0].mxu0
    %v215 = vadd.f32 %v111, %v214
    %216 = vmatprep.mubr.f32.mxu0 0.0
    %217 = vmatmul.mubr.f32.gmra.mrb[0].mxu0 %v119
    %v218 = vpop.f32.mrb[0].mxu0
    %v219 = vadd.f32 %v107, %v218
    %v220 = vpop.f32.mrb[0].mxu0
    %v221 = vadd.f32 %v111, %v220
    %222 = vmatprep.mubr.f32.mxu0 0.0
    %223 = vmatmul.mubr.f32.gmra.mrb[0].mxu0 %v122
    %v224 = vpop.f32.mrb[0].mxu0
    %v225 = vadd.f32 %v107, %v224
    %v226 = vpop.f32.mrb[0].mxu0
    %v227 = vadd.f32 %v111, %v226
    %228 = vmatprep.mubr.f32.mxu0 0.0
    %229 = vmatmul.mubr.f32.gmra.mrb[0].mxu0 %v125
    %v230 = vpop.f32.mrb[0].mxu0
    %v231 = vadd.f32 %v107, %v230
    %v232 = vpop.f32.mrb[0].mxu0
    %v233 = vadd.f32 %v111, %v232
    %234 = vmatprep.mubr.f32.mxu0 0.0
    %235 = vmatmul.mubr.f32.gmra.mrb[0].mxu0 %v128
    %v236 = vpop.f32.mrb[0].mxu0
    %v237 = vadd.f32 %v107, %v236
    %v238 = vpop.f32.mrb[0].mxu0
    %v239 = vadd.f32 %v111, %v238
    %240 = vmatprep.mubr.f32.mxu0 0.0
    %241 = vmatmul.mubr.f32.gmra.mrb[0].mxu0 %v131
    %v242 = vpop.f32.mrb[0].mxu0
    %v243 = vadd.f32 %v107, %v242
    %v244 = vpop.f32.mrb[0].mxu0
    %v245 = vadd.f32 %v111, %v244
    %246 = vmatprep.mubr.f32.mxu0 0.0
    %247 = vmatmul.mubr.f32.gmra.mrb[0].mxu0 %v134
    %v248 = vpop.f32.mrb[0].mxu0
    %v249 = vadd.f32 %v107, %v248
    %v250 = vpop.f32.mrb[0].mxu0
    %v251 = vadd.f32 %v111, %v250
    %252 = vmatprep.mubr.f32.mxu0 0.0
    %253 = vmatmul.mubr.f32.gmra.mrb[0].mxu0 %v137
    %v254 = vpop.f32.mrb[0].mxu0
    %v255 = vadd.f32 %v107, %v254
    %v256 = vpop.f32.mrb[0].mxu0
    %v257 = vadd.f32 %v111, %v256
    %258 = vdwg.mxu0
    %v259 = vld [vmem:[%s2] sm:$0xff]
    %v260 = vld [vmem:[%s2 + $0x8] sm:$0xff]
    %v261 = vld [vmem:[%s2 + $0x10] sm:$0xff]
    %v262 = vld [vmem:[%s2 + $0x18] sm:$0xff]
    %v263 = vld [vmem:[%s2 + $0x20] sm:$0xff]
    %v264 = vld [vmem:[%s2 + $0x28] sm:$0xff]
    %v265 = vld [vmem:[%s2 + $0x30] sm:$0xff]
    %v266 = vld [vmem:[%s2 + $0x38] sm:$0xff]
    %v268 = vrot.slane %v257, 6
    %vm270 = vcmask 1041408
    %v271 = vsel %vm270, %v213, %v268
    %vm272 = vcmask 1043456
    %v273 = vsel %vm272, %v271, 0.0
    %v275 = vrot.slane %v251, 6
    %v277 = vsel %vm270, %v219, %v275
    %v278 = vsel %vm272, %v277, 0.0
    %v280 = vrot.slane %v245, 6
    %v282 = vsel %vm270, %v225, %v280
    %v283 = vsel %vm272, %v282, 0.0
    %v285 = vrot.slane %v239, 6
    %v287 = vsel %vm270, %v231, %v285
    %v288 = vsel %vm272, %v287, 0.0
    %v290 = vrot.slane %v233, 6
    %v292 = vsel %vm270, %v237, %v290
    %v293 = vsel %vm272, %v292, 0.0
    %v295 = vrot.slane %v227, 6
    %v297 = vsel %vm270, %v243, %v295
    %v298 = vsel %vm272, %v297, 0.0
    %v300 = vrot.slane %v221, 6
    %v302 = vsel %vm270, %v249, %v300
    %v303 = vsel %vm272, %v302, 0.0
    %v305 = vrot.slane %v215, 6
    %v307 = vsel %vm270, %v255, %v305
    %v308 = vsel %vm272, %v307, 0.0
    %v310 = vsel %vm83, 0.0, 0
    %312 = vmatprep.subr.mxu0 0.0
    %313 = vmatpush1.msra.mxu0 %v259
    %314 = vmatprep.subr.mxu0 0.0
    %315 = vmatpush1.msra.mxu0 %v260
    %316 = vmatprep.subr.mxu0 0.0
    %317 = vmatpush1.msra.mxu0 %v261
    %318 = vmatprep.subr.mxu0 0.0
    %319 = vmatpush1.msra.mxu0 %v262
    %320 = vmatprep.subr.mxu0 0.0
    %321 = vmatpush1.msra.mxu0 %v263
    %322 = vmatprep.subr.mxu0 0.0
    %323 = vmatpush1.msra.mxu0 %v264
    %324 = vmatprep.subr.mxu0 0.0
    %325 = vmatpush1.msra.mxu0 %v265
    %326 = vmatprep.subr.mxu0 0.0
    %327 = vmatpush1.msra.mxu0 %v266
    %328 = vmatprep.subr.mxu0 0.0
    %329 = vmatpush1.msra.mxu0 0.0
    %330 = vmatprep.subr.mxu0 0.0
    %331 = vmatpush1.msra.mxu0 0.0
    %332 = vmatprep.subr.mxu0 0.0
    %333 = vmatpush1.msra.mxu0 0.0
    %334 = vmatprep.subr.mxu0 0.0
    %335 = vmatpush1.msra.mxu0 0.0
    %336 = vmatprep.subr.mxu0 0.0
    %337 = vmatpush1.msra.mxu0 0.0
    %338 = vmatprep.subr.mxu0 0.0
    %339 = vmatpush1.msra.mxu0 0.0
    %340 = vmatprep.subr.mxu0 0.0
    %341 = vmatpush1.msra.mxu0 0.0
    %342 = vmatprep.subr.mxu0 0.0
    %343 = vmatpush1.msra.mxu0 0.0
    %344 = vmatprep.subr.mxu0 0.0
    %345 = vmatpush1.msra.mxu0 0.0
    %346 = vmatprep.subr.mxu0 0.0
    %347 = vmatpush1.msra.mxu0 0.0
    %348 = vmatprep.subr.mxu0 0.0
    %349 = vmatpush1.msra.mxu0 0.0
    %350 = vmatprep.subr.mxu0 0.0
    %351 = vmatpush1.msra.mxu0 0.0
    %352 = vmatprep.subr.mxu0 0.0
    %353 = vmatpush1.msra.mxu0 0.0
    %354 = vmatprep.subr.mxu0 0.0
    %355 = vmatpush1.msra.mxu0 0.0
    %356 = vmatprep.subr.mxu0 0.0
    %357 = vmatpush1.msra.mxu0 0.0
    %358 = vmatprep.subr.mxu0 0.0
    %359 = vmatpush1.msra.mxu0 0.0
    %360 = vmatprep.subr.mxu0 0.0
    %361 = vmatpush1.msra.mxu0 0.0
    %362 = vmatprep.subr.mxu0 0.0
    %363 = vmatpush1.msra.mxu0 0.0
    %364 = vmatprep.subr.mxu0 0.0
    %365 = vmatpush1.msra.mxu0 0.0
    %366 = vmatprep.subr.mxu0 0.0
    %367 = vmatpush1.msra.mxu0 0.0
    %368 = vmatprep.subr.mxu0 0.0
    %369 = vmatpush1.msra.mxu0 0.0
    %370 = vmatprep.subr.mxu0 0.0
    %371 = vmatpush1.msra.mxu0 0.0
    %372 = vmatprep.subr.mxu0 0.0
    %373 = vmatpush1.msra.mxu0 0.0
    %374 = vmatprep.subr.mxu0 0.0
    %375 = vmatpush1.msra.mxu0 0.0
    %376 = vmatprep.mubr.f32.mxu0 0.0
    %377 = vmatmul.mubr.f32.gmra.mrb[0].mxu0 %v310
    %v378 = vpop.f32.mrb[0].mxu0
    %v379 = vadd.f32 0.0, %v378
    %v380 = vpop.f32.mrb[0].mxu0
    %381 = vdwg.mxu0
    %v382 = vadd.f32 %v273, %v379
    %v383 = vtanh.pop %v382
    %v384 = vmul.f32 %v383, 0.5
    %v385 = vadd.f32 %v384, 0.5
    %v386 = vmul.f32 %v385, 0.0
    %388 = vrot.lane.b32.xlu0 %v383, 64
    %v389 = vpop.permute.xlu0 %388
    %v391 = vmul.f32 %v385, %v389
    %393 = vrot.lane.b32.xlu0 %v391, 32
    %v394 = vpop.permute.xlu0 %393
    %v396 = vadd.f32 %v386, %v394
    %v397 = vtanh.pop %v396
    %399 = vrot.lane.b32.xlu0 %v397, 64
    %v400 = vpop.permute.xlu0 %399
    %v402 = vmul.f32 %v385, %v400
    %404 = vrot.lane.b32.xlu0 %v402, 32
    %v405 = vpop.permute.xlu0 %404
    %407 = vrot.lane.b32.xlu0 %v402, 64
    %v408 = vpop.permute.xlu0 %407
    %vm410 = vcmask 261120
    %v411 = vsel %vm410, %v405, %v408
    %v412 = vmul.f32 %v411, %v82
    %vm413 = vcmask 254976
    %414 = vst.msk [vmem:[#allocation2] sm:$0x3] %vm413, %v405
    %vm415 = vcmask 519426
    %416 = vst.msk [vmem:[#allocation2 + $0x36] sm:$0xc] %vm415, %v408
    %v418 = vsel %vm83, %v412, 0
    %420 = vmatprep.subr.mxu0 0.0
    %421 = vmatpush1.msra.mxu0 %v259
    %422 = vmatprep.subr.mxu0 0.0
    %423 = vmatpush1.msra.mxu0 %v260
    %424 = vmatprep.subr.mxu0 0.0
    %425 = vmatpush1.msra.mxu0 %v261
    %426 = vmatprep.subr.mxu0 0.0
    %427 = vmatpush1.msra.mxu0 %v262
    %428 = vmatprep.subr.mxu0 0.0
    %429 = vmatpush1.msra.mxu0 %v263
    %430 = vmatprep.subr.mxu0 0.0
    %431 = vmatpush1.msra.mxu0 %v264
    %432 = vmatprep.subr.mxu0 0.0
    %433 = vmatpush1.msra.mxu0 %v265
    %434 = vmatprep.subr.mxu0 0.0
    %435 = vmatpush1.msra.mxu0 %v266
    %436 = vmatprep.subr.mxu0 0.0
    %437 = vmatpush1.msra.mxu0 0.0
    %438 = vmatprep.subr.mxu0 0.0
    %439 = vmatpush1.msra.mxu0 0.0
    %440 = vmatprep.subr.mxu0 0.0
    %441 = vmatpush1.msra.mxu0 0.0
    %442 = vmatprep.subr.mxu0 0.0
    %443 = vmatpush1.msra.mxu0 0.0
    %444 = vmatprep.subr.mxu0 0.0
    %445 = vmatpush1.msra.mxu0 0.0
    %446 = vmatprep.subr.mxu0 0.0
    %447 = vmatpush1.msra.mxu0 0.0
    %448 = vmatprep.subr.mxu0 0.0
    %449 = vmatpush1.msra.mxu0 0.0
    %450 = vmatprep.subr.mxu0 0.0
    %451 = vmatpush1.msra.mxu0 0.0
    %452 = vmatprep.subr.mxu0 0.0
    %453 = vmatpush1.msra.mxu0 0.0
    %454 = vmatprep.subr.mxu0 0.0
    %455 = vmatpush1.msra.mxu0 0.0
    %456 = vmatprep.subr.mxu0 0.0
    %457 = vmatpush1.msra.mxu0 0.0
    %458 = vmatprep.subr.mxu0 0.0
    %459 = vmatpush1.msra.mxu0 0.0
    %460 = vmatprep.subr.mxu0 0.0
    %461 = vmatpush1.msra.mxu0 0.0
    %462 = vmatprep.subr.mxu0 0.0
    %463 = vmatpush1.msra.mxu0 0.0
    %464 = vmatprep.subr.mxu0 0.0
    %465 = vmatpush1.msra.mxu0 0.0
    %466 = vmatprep.subr.mxu0 0.0
    %467 = vmatpush1.msra.mxu0 0.0
    %468 = vmatprep.subr.mxu0 0.0
    %469 = vmatpush1.msra.mxu0 0.0
    %470 = vmatprep.subr.mxu0 0.0
    %471 = vmatpush1.msra.mxu0 0.0
    %472 = vmatprep.subr.mxu0 0.0
    %473 = vmatpush1.msra.mxu0 0.0
    %474 = vmatprep.subr.mxu0 0.0
    %475 = vmatpush1.msra.mxu0 0.0
    %476 = vmatprep.subr.mxu0 0.0
    %477 = vmatpush1.msra.mxu0 0.0
    %478 = vmatprep.subr.mxu0 0.0
    %479 = vmatpush1.msra.mxu0 0.0
    %480 = vmatprep.subr.mxu0 0.0
    %481 = vmatpush1.msra.mxu0 0.0
    %482 = vmatprep.subr.mxu0 0.0
    %483 = vmatpush1.msra.mxu0 0.0
    %484 = vmatprep.mubr.f32.mxu0 0.0
    %485 = vmatmul.mubr.f32.gmra.mrb[0].mxu0 %v418
    %v486 = vpop.f32.mrb[0].mxu0
    %v487 = vadd.f32 0.0, %v486
    %v488 = vpop.f32.mrb[0].mxu0
    %489 = vdwg.mxu0
    %v490 = vadd.f32 %v278, %v487
    %v491 = vtanh.pop %v490
    %v492 = vmul.f32 %v491, 0.5
    %v493 = vadd.f32 %v492, 0.5
    %v494 = vmul.f32 %v493, %v396
    %496 = vrot.lane.b32.xlu0 %v491, 64
    %v497 = vpop.permute.xlu0 %496
    %v499 = vmul.f32 %v493, %v497
    %501 = vrot.lane.b32.xlu0 %v499, 32
    %v502 = vpop.permute.xlu0 %501
    %v504 = vadd.f32 %v494, %v502
    %v505 = vtanh.pop %v504
    %507 = vrot.lane.b32.xlu0 %v505, 64
    %v508 = vpop.permute.xlu0 %507
    %v510 = vmul.f32 %v493, %v508
    %512 = vrot.lane.b32.xlu0 %v510, 32
    %v513 = vpop.permute.xlu0 %512
    %515 = vrot.lane.b32.xlu0 %v510, 64
    %v516 = vpop.permute.xlu0 %515
    %v518 = vsel %vm410, %v513, %v516
    %v519 = vmul.f32 %v518, %v82
    %520 = vst.msk [vmem:[#allocation2 + $0x8] sm:$0x3] %vm413, %v513
    %521 = vst.msk [vmem:[#allocation2 + $0x2e] sm:$0xc] %vm415, %v516
    %v523 = vsel %vm83, %v519, 0
    %525 = vmatprep.subr.mxu0 0.0
    %526 = vmatpush1.msra.mxu0 %v259
    %527 = vmatprep.subr.mxu0 0.0
    %528 = vmatpush1.msra.mxu0 %v260
    %529 = vmatprep.subr.mxu0 0.0
    %530 = vmatpush1.msra.mxu0 %v261
    %531 = vmatprep.subr.mxu0 0.0
    %532 = vmatpush1.msra.mxu0 %v262
    %533 = vmatprep.subr.mxu0 0.0
    %534 = vmatpush1.msra.mxu0 %v263
    %535 = vmatprep.subr.mxu0 0.0
    %536 = vmatpush1.msra.mxu0 %v264
    %537 = vmatprep.subr.mxu0 0.0
    %538 = vmatpush1.msra.mxu0 %v265
    %539 = vmatprep.subr.mxu0 0.0
    %540 = vmatpush1.msra.mxu0 %v266
    %541 = vmatprep.subr.mxu0 0.0
    %542 = vmatpush1.msra.mxu0 0.0
    %543 = vmatprep.subr.mxu0 0.0
    %544 = vmatpush1.msra.mxu0 0.0
    %545 = vmatprep.subr.mxu0 0.0
    %546 = vmatpush1.msra.mxu0 0.0
    %547 = vmatprep.subr.mxu0 0.0
    %548 = vmatpush1.msra.mxu0 0.0
    %549 = vmatprep.subr.mxu0 0.0
    %550 = vmatpush1.msra.mxu0 0.0
    %551 = vmatprep.subr.mxu0 0.0
    %552 = vmatpush1.msra.mxu0 0.0
    %553 = vmatprep.subr.mxu0 0.0
    %554 = vmatpush1.msra.mxu0 0.0
    %555 = vmatprep.subr.mxu0 0.0
    %556 = vmatpush1.msra.mxu0 0.0
    %557 = vmatprep.subr.mxu0 0.0
    %558 = vmatpush1.msra.mxu0 0.0
    %559 = vmatprep.subr.mxu0 0.0
    %560 = vmatpush1.msra.mxu0 0.0
    %561 = vmatprep.subr.mxu0 0.0
    %562 = vmatpush1.msra.mxu0 0.0
    %563 = vmatprep.subr.mxu0 0.0
    %564 = vmatpush1.msra.mxu0 0.0
    %565 = vmatprep.subr.mxu0 0.0
    %566 = vmatpush1.msra.mxu0 0.0
    %567 = vmatprep.subr.mxu0 0.0
    %568 = vmatpush1.msra.mxu0 0.0
    %569 = vmatprep.subr.mxu0 0.0
    %570 = vmatpush1.msra.mxu0 0.0
    %571 = vmatprep.subr.mxu0 0.0
    %572 = vmatpush1.msra.mxu0 0.0
    %573 = vmatprep.subr.mxu0 0.0
    %574 = vmatpush1.msra.mxu0 0.0
    %575 = vmatprep.subr.mxu0 0.0
    %576 = vmatpush1.msra.mxu0 0.0
    %577 = vmatprep.subr.mxu0 0.0
    %578 = vmatpush1.msra.mxu0 0.0
    %579 = vmatprep.subr.mxu0 0.0
    %580 = vmatpush1.msra.mxu0 0.0
    %581 = vmatprep.subr.mxu0 0.0
    %582 = vmatpush1.msra.mxu0 0.0
    %583 = vmatprep.subr.mxu0 0.0
    %584 = vmatpush1.msra.mxu0 0.0
    %585 = vmatprep.subr.mxu0 0.0
    %586 = vmatpush1.msra.mxu0 0.0
    %587 = vmatprep.subr.mxu0 0.0
    %588 = vmatpush1.msra.mxu0 0.0
    %589 = vmatprep.mubr.f32.mxu0 0.0
    %590 = vmatmul.mubr.f32.gmra.mrb[0].mxu0 %v523
    %v591 = vpop.f32.mrb[0].mxu0
    %v592 = vadd.f32 0.0, %v591
    %v593 = vpop.f32.mrb[0].mxu0
    %594 = vdwg.mxu0
    %v595 = vadd.f32 %v283, %v592
    %v596 = vtanh.pop %v595
    %v597 = vmul.f32 %v596, 0.5
    %v598 = vadd.f32 %v597, 0.5
    %v599 = vmul.f32 %v598, %v504
    %601 = vrot.lane.b32.xlu0 %v596, 64
    %v602 = vpop.permute.xlu0 %601
    %v604 = vmul.f32 %v598, %v602
    %606 = vrot.lane.b32.xlu0 %v604, 32
    %v607 = vpop.permute.xlu0 %606
    %v609 = vadd.f32 %v599, %v607
    %v610 = vtanh.pop %v609
    %612 = vrot.lane.b32.xlu0 %v610, 64
    %v613 = vpop.permute.xlu0 %612
    %v615 = vmul.f32 %v598, %v613
    %617 = vrot.lane.b32.xlu0 %v615, 32
    %v618 = vpop.permute.xlu0 %617
    %620 = vrot.lane.b32.xlu0 %v615, 64
    %v621 = vpop.permute.xlu0 %620
    %v623 = vsel %vm410, %v618, %v621
    %v624 = vmul.f32 %v623, %v82
    %625 = vst.msk [vmem:[#allocation2 + $0x10] sm:$0x3] %vm413, %v618
    %626 = vst.msk [vmem:[#allocation2 + $0x26] sm:$0xc] %vm415, %v621
    %v628 = vsel %vm83, %v624, 0
    %630 = vmatprep.subr.mxu0 0.0
    %631 = vmatpush1.msra.mxu0 %v259
    %632 = vmatprep.subr.mxu0 0.0
    %633 = vmatpush1.msra.mxu0 %v260
    %634 = vmatprep.subr.mxu0 0.0
    %635 = vmatpush1.msra.mxu0 %v261
    %636 = vmatprep.subr.mxu0 0.0
    %637 = vmatpush1.msra.mxu0 %v262
    %638 = vmatprep.subr.mxu0 0.0
    %639 = vmatpush1.msra.mxu0 %v263
    %640 = vmatprep.subr.mxu0 0.0
    %641 = vmatpush1.msra.mxu0 %v264
    %642 = vmatprep.subr.mxu0 0.0
    %643 = vmatpush1.msra.mxu0 %v265
    %644 = vmatprep.subr.mxu0 0.0
    %645 = vmatpush1.msra.mxu0 %v266
    %646 = vmatprep.subr.mxu0 0.0
    %647 = vmatpush1.msra.mxu0 0.0
    %648 = vmatprep.subr.mxu0 0.0
    %649 = vmatpush1.msra.mxu0 0.0
    %650 = vmatprep.subr.mxu0 0.0
    %651 = vmatpush1.msra.mxu0 0.0
    %652 = vmatprep.subr.mxu0 0.0
    %653 = vmatpush1.msra.mxu0 0.0
    %654 = vmatprep.subr.mxu0 0.0
    %655 = vmatpush1.msra.mxu0 0.0
    %656 = vmatprep.subr.mxu0 0.0
    %657 = vmatpush1.msra.mxu0 0.0
    %658 = vmatprep.subr.mxu0 0.0
    %659 = vmatpush1.msra.mxu0 0.0
    %660 = vmatprep.subr.mxu0 0.0
    %661 = vmatpush1.msra.mxu0 0.0
    %662 = vmatprep.subr.mxu0 0.0
    %663 = vmatpush1.msra.mxu0 0.0
    %664 = vmatprep.subr.mxu0 0.0
    %665 = vmatpush1.msra.mxu0 0.0
    %666 = vmatprep.subr.mxu0 0.0
    %667 = vmatpush1.msra.mxu0 0.0
    %668 = vmatprep.subr.mxu0 0.0
    %669 = vmatpush1.msra.mxu0 0.0
    %670 = vmatprep.subr.mxu0 0.0
    %671 = vmatpush1.msra.mxu0 0.0
    %672 = vmatprep.subr.mxu0 0.0
    %673 = vmatpush1.msra.mxu0 0.0
    %674 = vmatprep.subr.mxu0 0.0
    %675 = vmatpush1.msra.mxu0 0.0
    %676 = vmatprep.subr.mxu0 0.0
    %677 = vmatpush1.msra.mxu0 0.0
    %678 = vmatprep.subr.mxu0 0.0
    %679 = vmatpush1.msra.mxu0 0.0
    %680 = vmatprep.subr.mxu0 0.0
    %681 = vmatpush1.msra.mxu0 0.0
    %682 = vmatprep.subr.mxu0 0.0
    %683 = vmatpush1.msra.mxu0 0.0
    %684 = vmatprep.subr.mxu0 0.0
    %685 = vmatpush1.msra.mxu0 0.0
    %686 = vmatprep.subr.mxu0 0.0
    %687 = vmatpush1.msra.mxu0 0.0
    %688 = vmatprep.subr.mxu0 0.0
    %689 = vmatpush1.msra.mxu0 0.0
    %690 = vmatprep.subr.mxu0 0.0
    %691 = vmatpush1.msra.mxu0 0.0
    %692 = vmatprep.subr.mxu0 0.0
    %693 = vmatpush1.msra.mxu0 0.0
    %694 = vmatprep.mubr.f32.mxu0 0.0
    %695 = vmatmul.mubr.f32.gmra.mrb[0].mxu0 %v628
    %v696 = vpop.f32.mrb[0].mxu0
    %v697 = vadd.f32 0.0, %v696
    %v698 = vpop.f32.mrb[0].mxu0
    %699 = vdwg.mxu0
    %v700 = vadd.f32 %v288, %v697
    %v701 = vtanh.pop %v700
    %v702 = vmul.f32 %v701, 0.5
    %v703 = vadd.f32 %v702, 0.5
    %v704 = vmul.f32 %v703, %v609
    %706 = vrot.lane.b32.xlu0 %v701, 64
    %v707 = vpop.permute.xlu0 %706
    %v709 = vmul.f32 %v703, %v707
    %711 = vrot.lane.b32.xlu0 %v709, 32
    %v712 = vpop.permute.xlu0 %711
    %v714 = vadd.f32 %v704, %v712
    %v715 = vtanh.pop %v714
    %717 = vrot.lane.b32.xlu0 %v715, 64
    %v718 = vpop.permute.xlu0 %717
    %v720 = vmul.f32 %v703, %v718
    %722 = vrot.lane.b32.xlu0 %v720, 32
    %v723 = vpop.permute.xlu0 %722
    %725 = vrot.lane.b32.xlu0 %v720, 64
    %v726 = vpop.permute.xlu0 %725
    %v728 = vsel %vm410, %v723, %v726
    %v729 = vmul.f32 %v728, %v82
    %730 = vst.msk [vmem:[#allocation2 + $0x18] sm:$0x3] %vm413, %v723
    %731 = vst.msk [vmem:[#allocation2 + $0x1e] sm:$0xc] %vm415, %v726
    %v733 = vsel %vm83, %v729, 0
    %735 = vmatprep.subr.mxu0 0.0
    %736 = vmatpush1.msra.mxu0 %v259
    %737 = vmatprep.subr.mxu0 0.0
    %738 = vmatpush1.msra.mxu0 %v260
    %739 = vmatprep.subr.mxu0 0.0
    %740 = vmatpush1.msra.mxu0 %v261
    %741 = vmatprep.subr.mxu0 0.0
    %742 = vmatpush1.msra.mxu0 %v262
    %743 = vmatprep.subr.mxu0 0.0
    %744 = vmatpush1.msra.mxu0 %v263
    %745 = vmatprep.subr.mxu0 0.0
    %746 = vmatpush1.msra.mxu0 %v264
    %747 = vmatprep.subr.mxu0 0.0
    %748 = vmatpush1.msra.mxu0 %v265
    %749 = vmatprep.subr.mxu0 0.0
    %750 = vmatpush1.msra.mxu0 %v266
    %751 = vmatprep.subr.mxu0 0.0
    %752 = vmatpush1.msra.mxu0 0.0
    %753 = vmatprep.subr.mxu0 0.0
    %754 = vmatpush1.msra.mxu0 0.0
    %755 = vmatprep.subr.mxu0 0.0
    %756 = vmatpush1.msra.mxu0 0.0
    %757 = vmatprep.subr.mxu0 0.0
    %758 = vmatpush1.msra.mxu0 0.0
    %759 = vmatprep.subr.mxu0 0.0
    %760 = vmatpush1.msra.mxu0 0.0
    %761 = vmatprep.subr.mxu0 0.0
    %762 = vmatpush1.msra.mxu0 0.0
    %763 = vmatprep.subr.mxu0 0.0
    %764 = vmatpush1.msra.mxu0 0.0
    %765 = vmatprep.subr.mxu0 0.0
    %766 = vmatpush1.msra.mxu0 0.0
    %767 = vmatprep.subr.mxu0 0.0
    %768 = vmatpush1.msra.mxu0 0.0
    %769 = vmatprep.subr.mxu0 0.0
    %770 = vmatpush1.msra.mxu0 0.0
    %771 = vmatprep.subr.mxu0 0.0
    %772 = vmatpush1.msra.mxu0 0.0
    %773 = vmatprep.subr.mxu0 0.0
    %774 = vmatpush1.msra.mxu0 0.0
    %775 = vmatprep.subr.mxu0 0.0
    %776 = vmatpush1.msra.mxu0 0.0
    %777 = vmatprep.subr.mxu0 0.0
    %778 = vmatpush1.msra.mxu0 0.0
    %779 = vmatprep.subr.mxu0 0.0
    %780 = vmatpush1.msra.mxu0 0.0
    %781 = vmatprep.subr.mxu0 0.0
    %782 = vmatpush1.msra.mxu0 0.0
    %783 = vmatprep.subr.mxu0 0.0
    %784 = vmatpush1.msra.mxu0 0.0
    %785 = vmatprep.subr.mxu0 0.0
    %786 = vmatpush1.msra.mxu0 0.0
    %787 = vmatprep.subr.mxu0 0.0
    %788 = vmatpush1.msra.mxu0 0.0
    %789 = vmatprep.subr.mxu0 0.0
    %790 = vmatpush1.msra.mxu0 0.0
    %791 = vmatprep.subr.mxu0 0.0
    %792 = vmatpush1.msra.mxu0 0.0
    %793 = vmatprep.subr.mxu0 0.0
    %794 = vmatpush1.msra.mxu0 0.0
    %795 = vmatprep.subr.mxu0 0.0
    %796 = vmatpush1.msra.mxu0 0.0
    %797 = vmatprep.subr.mxu0 0.0
    %798 = vmatpush1.msra.mxu0 0.0
    %799 = vmatprep.mubr.f32.mxu0 0.0
    %800 = vmatmul.mubr.f32.gmra.mrb[0].mxu0 %v733
    %v801 = vpop.f32.mrb[0].mxu0
    %v802 = vadd.f32 0.0, %v801
    %v803 = vpop.f32.mrb[0].mxu0
    %804 = vdwg.mxu0
    %v805 = vadd.f32 %v293, %v802
    %v806 = vtanh.pop %v805
    %v807 = vmul.f32 %v806, 0.5
    %v808 = vadd.f32 %v807, 0.5
    %v809 = vmul.f32 %v808, %v714
    %811 = vrot.lane.b32.xlu0 %v806, 64
    %v812 = vpop.permute.xlu0 %811
    %v814 = vmul.f32 %v808, %v812
    %816 = vrot.lane.b32.xlu0 %v814, 32
    %v817 = vpop.permute.xlu0 %816
    %v819 = vadd.f32 %v809, %v817
    %v820 = vtanh.pop %v819
    %822 = vrot.lane.b32.xlu0 %v820, 64
    %v823 = vpop.permute.xlu0 %822
    %v825 = vmul.f32 %v808, %v823
    %827 = vrot.lane.b32.xlu0 %v825, 32
    %v828 = vpop.permute.xlu0 %827
    %830 = vrot.lane.b32.xlu0 %v825, 64
    %v831 = vpop.permute.xlu0 %830
    %v833 = vsel %vm410, %v828, %v831
    %v834 = vmul.f32 %v833, %v82
    %835 = vst.msk [vmem:[#allocation2 + $0x20] sm:$0x3] %vm413, %v828
    %836 = vst.msk [vmem:[#allocation2 + $0x16] sm:$0xc] %vm415, %v831
    %v838 = vsel %vm83, %v834, 0
    %840 = vmatprep.subr.mxu0 0.0
    %841 = vmatpush1.msra.mxu0 %v259
    %842 = vmatprep.subr.mxu0 0.0
    %843 = vmatpush1.msra.mxu0 %v260
    %844 = vmatprep.subr.mxu0 0.0
    %845 = vmatpush1.msra.mxu0 %v261
    %846 = vmatprep.subr.mxu0 0.0
    %847 = vmatpush1.msra.mxu0 %v262
    %848 = vmatprep.subr.mxu0 0.0
    %849 = vmatpush1.msra.mxu0 %v263
    %850 = vmatprep.subr.mxu0 0.0
    %851 = vmatpush1.msra.mxu0 %v264
    %852 = vmatprep.subr.mxu0 0.0
    %853 = vmatpush1.msra.mxu0 %v265
    %854 = vmatprep.subr.mxu0 0.0
    %855 = vmatpush1.msra.mxu0 %v266
    %856 = vmatprep.subr.mxu0 0.0
    %857 = vmatpush1.msra.mxu0 0.0
    %858 = vmatprep.subr.mxu0 0.0
    %859 = vmatpush1.msra.mxu0 0.0
    %860 = vmatprep.subr.mxu0 0.0
    %861 = vmatpush1.msra.mxu0 0.0
    %862 = vmatprep.subr.mxu0 0.0
    %863 = vmatpush1.msra.mxu0 0.0
    %864 = vmatprep.subr.mxu0 0.0
    %865 = vmatpush1.msra.mxu0 0.0
    %866 = vmatprep.subr.mxu0 0.0
    %867 = vmatpush1.msra.mxu0 0.0
    %868 = vmatprep.subr.mxu0 0.0
    %869 = vmatpush1.msra.mxu0 0.0
    %870 = vmatprep.subr.mxu0 0.0
    %871 = vmatpush1.msra.mxu0 0.0
    %872 = vmatprep.subr.mxu0 0.0
    %873 = vmatpush1.msra.mxu0 0.0
    %874 = vmatprep.subr.mxu0 0.0
    %875 = vmatpush1.msra.mxu0 0.0
    %876 = vmatprep.subr.mxu0 0.0
    %877 = vmatpush1.msra.mxu0 0.0
    %878 = vmatprep.subr.mxu0 0.0
    %879 = vmatpush1.msra.mxu0 0.0
    %880 = vmatprep.subr.mxu0 0.0
    %881 = vmatpush1.msra.mxu0 0.0
    %882 = vmatprep.subr.mxu0 0.0
    %883 = vmatpush1.msra.mxu0 0.0
    %884 = vmatprep.subr.mxu0 0.0
    %885 = vmatpush1.msra.mxu0 0.0
    %886 = vmatprep.subr.mxu0 0.0
    %887 = vmatpush1.msra.mxu0 0.0
    %888 = vmatprep.subr.mxu0 0.0
    %889 = vmatpush1.msra.mxu0 0.0
    %890 = vmatprep.subr.mxu0 0.0
    %891 = vmatpush1.msra.mxu0 0.0
    %892 = vmatprep.subr.mxu0 0.0
    %893 = vmatpush1.msra.mxu0 0.0
    %894 = vmatprep.subr.mxu0 0.0
    %895 = vmatpush1.msra.mxu0 0.0
    %896 = vmatprep.subr.mxu0 0.0
    %897 = vmatpush1.msra.mxu0 0.0
    %898 = vmatprep.subr.mxu0 0.0
    %899 = vmatpush1.msra.mxu0 0.0
    %900 = vmatprep.subr.mxu0 0.0
    %901 = vmatpush1.msra.mxu0 0.0
    %902 = vmatprep.subr.mxu0 0.0
    %903 = vmatpush1.msra.mxu0 0.0
    %904 = vmatprep.mubr.f32.mxu0 0.0
    %905 = vmatmul.mubr.f32.gmra.mrb[0].mxu0 %v838
    %v906 = vpop.f32.mrb[0].mxu0
    %v907 = vadd.f32 0.0, %v906
    %v908 = vpop.f32.mrb[0].mxu0
    %909 = vdwg.mxu0
    %v910 = vadd.f32 %v298, %v907
    %v911 = vtanh.pop %v910
    %v912 = vmul.f32 %v911, 0.5
    %v913 = vadd.f32 %v912, 0.5
    %v914 = vmul.f32 %v913, %v819
    %916 = vrot.lane.b32.xlu0 %v911, 64
    %v917 = vpop.permute.xlu0 %916
    %v919 = vmul.f32 %v913, %v917
    %921 = vrot.lane.b32.xlu0 %v919, 32
    %v922 = vpop.permute.xlu0 %921
    %v924 = vadd.f32 %v914, %v922
    %v925 = vtanh.pop %v924
    %927 = vrot.lane.b32.xlu0 %v925, 64
    %v928 = vpop.permute.xlu0 %927
    %v930 = vmul.f32 %v913, %v928
    %932 = vrot.lane.b32.xlu0 %v930, 32
    %v933 = vpop.permute.xlu0 %932
    %935 = vrot.lane.b32.xlu0 %v930, 64
    %v936 = vpop.permute.xlu0 %935
    %v938 = vsel %vm410, %v933, %v936
    %v939 = vmul.f32 %v938, %v82
    %940 = vst.msk [vmem:[#allocation2 + $0x28] sm:$0x3] %vm413, %v933
    %941 = vst.msk [vmem:[#allocation2 + $0xe] sm:$0xc] %vm415, %v936
    %v943 = vsel %vm83, %v939, 0
    %945 = vmatprep.subr.mxu0 0.0
    %946 = vmatpush1.msra.mxu0 %v259
    %947 = vmatprep.subr.mxu0 0.0
    %948 = vmatpush1.msra.mxu0 %v260
    %949 = vmatprep.subr.mxu0 0.0
    %950 = vmatpush1.msra.mxu0 %v261
    %951 = vmatprep.subr.mxu0 0.0
    %952 = vmatpush1.msra.mxu0 %v262
    %953 = vmatprep.subr.mxu0 0.0
    %954 = vmatpush1.msra.mxu0 %v263
    %955 = vmatprep.subr.mxu0 0.0
    %956 = vmatpush1.msra.mxu0 %v264
    %957 = vmatprep.subr.mxu0 0.0
    %958 = vmatpush1.msra.mxu0 %v265
    %959 = vmatprep.subr.mxu0 0.0
    %960 = vmatpush1.msra.mxu0 %v266
    %961 = vmatprep.subr.mxu0 0.0
    %962 = vmatpush1.msra.mxu0 0.0
    %963 = vmatprep.subr.mxu0 0.0
    %964 = vmatpush1.msra.mxu0 0.0
    %965 = vmatprep.subr.mxu0 0.0
    %966 = vmatpush1.msra.mxu0 0.0
    %967 = vmatprep.subr.mxu0 0.0
    %968 = vmatpush1.msra.mxu0 0.0
    %969 = vmatprep.subr.mxu0 0.0
    %970 = vmatpush1.msra.mxu0 0.0
    %971 = vmatprep.subr.mxu0 0.0
    %972 = vmatpush1.msra.mxu0 0.0
    %973 = vmatprep.subr.mxu0 0.0
    %974 = vmatpush1.msra.mxu0 0.0
    %975 = vmatprep.subr.mxu0 0.0
    %976 = vmatpush1.msra.mxu0 0.0
    %977 = vmatprep.subr.mxu0 0.0
    %978 = vmatpush1.msra.mxu0 0.0
    %979 = vmatprep.subr.mxu0 0.0
    %980 = vmatpush1.msra.mxu0 0.0
    %981 = vmatprep.subr.mxu0 0.0
    %982 = vmatpush1.msra.mxu0 0.0
    %983 = vmatprep.subr.mxu0 0.0
    %984 = vmatpush1.msra.mxu0 0.0
    %985 = vmatprep.subr.mxu0 0.0
    %986 = vmatpush1.msra.mxu0 0.0
    %987 = vmatprep.subr.mxu0 0.0
    %988 = vmatpush1.msra.mxu0 0.0
    %989 = vmatprep.subr.mxu0 0.0
    %990 = vmatpush1.msra.mxu0 0.0
    %991 = vmatprep.subr.mxu0 0.0
    %992 = vmatpush1.msra.mxu0 0.0
    %993 = vmatprep.subr.mxu0 0.0
    %994 = vmatpush1.msra.mxu0 0.0
    %995 = vmatprep.subr.mxu0 0.0
    %996 = vmatpush1.msra.mxu0 0.0
    %997 = vmatprep.subr.mxu0 0.0
    %998 = vmatpush1.msra.mxu0 0.0
    %999 = vmatprep.subr.mxu0 0.0
    %1000 = vmatpush1.msra.mxu0 0.0
    %1001 = vmatprep.subr.mxu0 0.0
    %1002 = vmatpush1.msra.mxu0 0.0
    %1003 = vmatprep.subr.mxu0 0.0
    %1004 = vmatpush1.msra.mxu0 0.0
    %1005 = vmatprep.subr.mxu0 0.0
    %1006 = vmatpush1.msra.mxu0 0.0
    %1007 = vmatprep.subr.mxu0 0.0
    %1008 = vmatpush1.msra.mxu0 0.0
    %1009 = vmatprep.mubr.f32.mxu0 0.0
    %1010 = vmatmul.mubr.f32.gmra.mrb[0].mxu0 %v943
    %v1011 = vpop.f32.mrb[0].mxu0
    %v1012 = vadd.f32 0.0, %v1011
    %v1013 = vpop.f32.mrb[0].mxu0
    %1014 = vdwg.mxu0
    %v1015 = vadd.f32 %v303, %v1012
    %v1016 = vtanh.pop %v1015
    %v1017 = vmul.f32 %v1016, 0.5
    %v1018 = vadd.f32 %v1017, 0.5
    %v1019 = vmul.f32 %v1018, %v924
    %1021 = vrot.lane.b32.xlu0 %v1016, 64
    %v1022 = vpop.permute.xlu0 %1021
    %v1024 = vmul.f32 %v1018, %v1022
    %1026 = vrot.lane.b32.xlu0 %v1024, 32
    %v1027 = vpop.permute.xlu0 %1026
    %v1029 = vadd.f32 %v1019, %v1027
    %v1030 = vtanh.pop %v1029
    %1032 = vrot.lane.b32.xlu0 %v1030, 64
    %v1033 = vpop.permute.xlu0 %1032
    %v1035 = vmul.f32 %v1018, %v1033
    %1037 = vrot.lane.b32.xlu0 %v1035, 32
    %v1038 = vpop.permute.xlu0 %1037
    %1040 = vrot.lane.b32.xlu0 %v1035, 64
    %v1041 = vpop.permute.xlu0 %1040
    %v1043 = vsel %vm410, %v1038, %v1041
    %v1044 = vmul.f32 %v1043, %v82
    %1045 = vst.msk [vmem:[#allocation2 + $0x30] sm:$0x3] %vm413, %v1038
    %1046 = vst.msk [vmem:[#allocation2 + $0x6] sm:$0xc] %vm415, %v1041
    %v1048 = vsel %vm83, %v1044, 0
    %1050 = vmatprep.subr.mxu0 0.0
    %1051 = vmatpush1.msra.mxu0 %v259
    %1052 = vmatprep.subr.mxu0 0.0
    %1053 = vmatpush1.msra.mxu0 %v260
    %1054 = vmatprep.subr.mxu0 0.0
    %1055 = vmatpush1.msra.mxu0 %v261
    %1056 = vmatprep.subr.mxu0 0.0
    %1057 = vmatpush1.msra.mxu0 %v262
    %1058 = vmatprep.subr.mxu0 0.0
    %1059 = vmatpush1.msra.mxu0 %v263
    %1060 = vmatprep.subr.mxu0 0.0
    %1061 = vmatpush1.msra.mxu0 %v264
    %1062 = vmatprep.subr.mxu0 0.0
    %1063 = vmatpush1.msra.mxu0 %v265
    %1064 = vmatprep.subr.mxu0 0.0
    %1065 = vmatpush1.msra.mxu0 %v266
    %1066 = vmatprep.subr.mxu0 0.0
    %1067 = vmatpush1.msra.mxu0 0.0
    %1068 = vmatprep.subr.mxu0 0.0
    %1069 = vmatpush1.msra.mxu0 0.0
    %1070 = vmatprep.subr.mxu0 0.0
    %1071 = vmatpush1.msra.mxu0 0.0
    %1072 = vmatprep.subr.mxu0 0.0
    %1073 = vmatpush1.msra.mxu0 0.0
    %1074 = vmatprep.subr.mxu0 0.0
    %1075 = vmatpush1.msra.mxu0 0.0
    %1076 = vmatprep.subr.mxu0 0.0
    %1077 = vmatpush1.msra.mxu0 0.0
    %1078 = vmatprep.subr.mxu0 0.0
    %1079 = vmatpush1.msra.mxu0 0.0
    %1080 = vmatprep.subr.mxu0 0.0
    %1081 = vmatpush1.msra.mxu0 0.0
    %1082 = vmatprep.subr.mxu0 0.0
    %1083 = vmatpush1.msra.mxu0 0.0
    %1084 = vmatprep.subr.mxu0 0.0
    %1085 = vmatpush1.msra.mxu0 0.0
    %1086 = vmatprep.subr.mxu0 0.0
    %1087 = vmatpush1.msra.mxu0 0.0
    %1088 = vmatprep.subr.mxu0 0.0
    %1089 = vmatpush1.msra.mxu0 0.0
    %1090 = vmatprep.subr.mxu0 0.0
    %1091 = vmatpush1.msra.mxu0 0.0
    %1092 = vmatprep.subr.mxu0 0.0
    %1093 = vmatpush1.msra.mxu0 0.0
    %1094 = vmatprep.subr.mxu0 0.0
    %1095 = vmatpush1.msra.mxu0 0.0
    %1096 = vmatprep.subr.mxu0 0.0
    %1097 = vmatpush1.msra.mxu0 0.0
    %1098 = vmatprep.subr.mxu0 0.0
    %1099 = vmatpush1.msra.mxu0 0.0
    %1100 = vmatprep.subr.mxu0 0.0
    %1101 = vmatpush1.msra.mxu0 0.0
    %1102 = vmatprep.subr.mxu0 0.0
    %1103 = vmatpush1.msra.mxu0 0.0
    %1104 = vmatprep.subr.mxu0 0.0
    %1105 = vmatpush1.msra.mxu0 0.0
    %1106 = vmatprep.subr.mxu0 0.0
    %1107 = vmatpush1.msra.mxu0 0.0
    %1108 = vmatprep.subr.mxu0 0.0
    %1109 = vmatpush1.msra.mxu0 0.0
    %1110 = vmatprep.subr.mxu0 0.0
    %1111 = vmatpush1.msra.mxu0 0.0
    %1112 = vmatprep.subr.mxu0 0.0
    %1113 = vmatpush1.msra.mxu0 0.0
    %1114 = vmatprep.mubr.f32.mxu0 0.0
    %1115 = vmatmul.mubr.f32.gmra.mrb[0].mxu0 %v1048
    %v1116 = vpop.f32.mrb[0].mxu0
    %v1117 = vadd.f32 0.0, %v1116
    %v1118 = vpop.f32.mrb[0].mxu0
    %1119 = vdwg.mxu0
    %v1120 = vadd.f32 %v308, %v1117
    %v1121 = vtanh.pop %v1120
    %v1122 = vmul.f32 %v1121, 0.5
    %v1123 = vadd.f32 %v1122, 0.5
    %v1124 = vmul.f32 %v1123, %v1029
    %1126 = vrot.lane.b32.xlu0 %v1121, 64
    %v1127 = vpop.permute.xlu0 %1126
    %v1129 = vmul.f32 %v1123, %v1127
    %1131 = vrot.lane.b32.xlu0 %v1129, 32
    %v1132 = vpop.permute.xlu0 %1131
    %v1134 = vadd.f32 %v1124, %v1132
    %v1135 = vtanh.pop %v1134
    %1137 = vrot.lane.b32.xlu0 %v1135, 64
    %v1138 = vpop.permute.xlu0 %1137
    %v1140 = vmul.f32 %v1123, %v1138
    %1142 = vrot.lane.b32.xlu0 %v1140, 32
    %v1143 = vpop.permute.xlu0 %1142
    %1145 = vst.msk [vmem:[#allocation2 + $0x38] sm:$0x3] %vm413, %v1143
    %1146 = vrot.lane.b32.xlu0 %v1140, 64
    %v1147 = vpop.permute.xlu0 %1146
    %1149 = vst.msk [vmem:[#allocation2 - $0x2] sm:$0xc] %vm415, %v1147
    %v1150 = vld [vmem:[#allocation2] sm:$0xff]
    %v1151 = vld [vmem:[#allocation2 + $0x8] sm:$0xff]
    %v1152 = vld [vmem:[#allocation2 + $0x10] sm:$0xff]
    %v1153 = vld [vmem:[#allocation2 + $0x18] sm:$0xff]
    %v1154 = vld [vmem:[#allocation2 + $0x20] sm:$0xff]
    %v1155 = vld [vmem:[#allocation2 + $0x28] sm:$0xff]
    %v1156 = vld [vmem:[#allocation2 + $0x30] sm:$0xff]
    %v1157 = vld [vmem:[#allocation2 + $0x38] sm:$0xff]
    %v1158 = vld [vmem:[%s4] sm:$0xff]
    %v1159 = vld [vmem:[%s4 + $0x8] sm:$0xff]
    %v1160 = vld [vmem:[%s4 + $0x10] sm:$0xff]
    %v1161 = vld [vmem:[%s4 + $0x18] sm:$0xff]
    %v1162 = vld [vmem:[%s4 + $0x20] sm:$0xff]
    %v1163 = vld [vmem:[%s4 + $0x28] sm:$0xff]
    %v1164 = vld [vmem:[%s4 + $0x30] sm:$0xff]
    %v1165 = vld [vmem:[%s4 + $0x38] sm:$0xff]
    %v1166 = vld [vmem:[%s4 + $0x40] sm:$0xff]
    %v1167 = vld [vmem:[%s4 + $0x48] sm:$0xff]
    %v1168 = vld [vmem:[%s4 + $0x50] sm:$0xff]
    %v1169 = vld [vmem:[%s4 + $0x58] sm:$0xff]
    %v1170 = vld [vmem:[%s4 + $0x60] sm:$0xff]
    %v1171 = vld [vmem:[%s4 + $0x68] sm:$0xff]
    %v1172 = vld [vmem:[%s4 + $0x70] sm:$0xff]
    %v1173 = vld [vmem:[%s4 + $0x78] sm:$0xff]
    %v1174 = vld [vmem:[%s6] sm:$0x3]
    %v1176 = vlaneseq
    %v1177 = vshrl.u32 %v1176, 7
    %v1178 = vsub.s32 0, %v1177
    %v1179 = vrot.slane %v1174, %v1178
    %v1180 = vlaneseq
    %v1181 = vshrl.u32 %v1180, 7
    %v1182 = vsub.s32 1, %v1181
    %v1183 = vrot.slane %v1174, %v1182
    %v1187 = vsel %vm83, %v1150, 0
    %v1190 = vsel %vm83, %v1151, 0
    %v1193 = vsel %vm83, %v1152, 0
    %v1196 = vsel %vm83, %v1153, 0
    %v1199 = vsel %vm83, %v1154, 0
    %v1202 = vsel %vm83, %v1155, 0
    %v1205 = vsel %vm83, %v1156, 0
    %v1208 = vsel %vm83, %v1157, 0
    %1210 = vmatprep.subr.mxu0 %v1159
    %1211 = vmatpush1.msra.mxu0 %v1158
    %1212 = vmatprep.subr.mxu0 %v1161
    %1213 = vmatpush1.msra.mxu0 %v1160
    %1214 = vmatprep.subr.mxu0 %v1163
    %1215 = vmatpush1.msra.mxu0 %v1162
    %1216 = vmatprep.subr.mxu0 %v1165
    %1217 = vmatpush1.msra.mxu0 %v1164
    %1218 = vmatprep.subr.mxu0 %v1167
    %1219 = vmatpush1.msra.mxu0 %v1166
    %1220 = vmatprep.subr.mxu0 %v1169
    %1221 = vmatpush1.msra.mxu0 %v1168
    %1222 = vmatprep.subr.mxu0 %v1171
    %1223 = vmatpush1.msra.mxu0 %v1170
    %1224 = vmatprep.subr.mxu0 %v1173
    %1225 = vmatpush1.msra.mxu0 %v1172
    %1226 = vmatprep.subr.mxu0 0.0
    %1227 = vmatpush1.msra.mxu0 0.0
    %1228 = vmatprep.subr.mxu0 0.0
    %1229 = vmatpush1.msra.mxu0 0.0
    %1230 = vmatprep.subr.mxu0 0.0
    %1231 = vmatpush1.msra.mxu0 0.0
    %1232 = vmatprep.subr.mxu0 0.0
    %1233 = vmatpush1.msra.mxu0 0.0
    %1234 = vmatprep.subr.mxu0 0.0
    %1235 = vmatpush1.msra.mxu0 0.0
    %1236 = vmatprep.subr.mxu0 0.0
    %1237 = vmatpush1.msra.mxu0 0.0
    %1238 = vmatprep.subr.mxu0 0.0
    %1239 = vmatpush1.msra.mxu0 0.0
    %1240 = vmatprep.subr.mxu0 0.0
    %1241 = vmatpush1.msra.mxu0 0.0
    %1242 = vmatprep.subr.mxu0 0.0
    %1243 = vmatpush1.msra.mxu0 0.0
    %1244 = vmatprep.subr.mxu0 0.0
    %1245 = vmatpush1.msra.mxu0 0.0
    %1246 = vmatprep.subr.mxu0 0.0
    %1247 = vmatpush1.msra.mxu0 0.0
    %1248 = vmatprep.subr.mxu0 0.0
    %1249 = vmatpush1.msra.mxu0 0.0
    %1250 = vmatprep.subr.mxu0 0.0
    %1251 = vmatpush1.msra.mxu0 0.0
    %1252 = vmatprep.subr.mxu0 0.0
    %1253 = vmatpush1.msra.mxu0 0.0
    %1254 = vmatprep.subr.mxu0 0.0
    %1255 = vmatpush1.msra.mxu0 0.0
    %1256 = vmatprep.subr.mxu0 0.0
    %1257 = vmatpush1.msra.mxu0 0.0
    %1258 = vmatprep.subr.mxu0 0.0
    %1259 = vmatpush1.msra.mxu0 0.0
    %1260 = vmatprep.subr.mxu0 0.0
    %1261 = vmatpush1.msra.mxu0 0.0
    %1262 = vmatprep.subr.mxu0 0.0
    %1263 = vmatpush1.msra.mxu0 0.0
    %1264 = vmatprep.subr.mxu0 0.0
    %1265 = vmatpush1.msra.mxu0 0.0
    %1266 = vmatprep.subr.mxu0 0.0
    %1267 = vmatpush1.msra.mxu0 0.0
    %1268 = vmatprep.subr.mxu0 0.0
    %1269 = vmatpush1.msra.mxu0 0.0
    %1270 = vmatprep.subr.mxu0 0.0
    %1271 = vmatpush1.msra.mxu0 0.0
    %1272 = vmatprep.subr.mxu0 0.0
    %1273 = vmatpush1.msra.mxu0 0.0
    %1274 = vmatprep.mubr.f32.mxu0 0.0
    %1275 = vmatmul.mubr.f32.gmra.mrb[0].mxu0 %v1187
    %v1276 = vpop.f32.mrb[0].mxu0
    %v1277 = vadd.f32 %v1179, %v1276
    %v1278 = vpop.f32.mrb[0].mxu0
    %v1279 = vadd.f32 %v1183, %v1278
    %1280 = vmatprep.mubr.f32.mxu0 0.0
    %1281 = vmatmul.mubr.f32.gmra.mrb[0].mxu0 %v1190
    %v1282 = vpop.f32.mrb[0].mxu0
    %v1283 = vadd.f32 %v1179, %v1282
    %v1284 = vpop.f32.mrb[0].mxu0
    %v1285 = vadd.f32 %v1183, %v1284
    %1286 = vmatprep.mubr.f32.mxu0 0.0
    %1287 = vmatmul.mubr.f32.gmra.mrb[0].mxu0 %v1193
    %v1288 = vpop.f32.mrb[0].mxu0
    %v1289 = vadd.f32 %v1179, %v1288
    %v1290 = vpop.f32.mrb[0].mxu0
    %v1291 = vadd.f32 %v1183, %v1290
    %1292 = vmatprep.mubr.f32.mxu0 0.0
    %1293 = vmatmul.mubr.f32.gmra.mrb[0].mxu0 %v1196
    %v1294 = vpop.f32.mrb[0].mxu0
    %v1295 = vadd.f32 %v1179, %v1294
    %v1296 = vpop.f32.mrb[0].mxu0
    %v1297 = vadd.f32 %v1183, %v1296
    %1298 = vmatprep.mubr.f32.mxu0 0.0
    %1299 = vmatmul.mubr.f32.gmra.mrb[0].mxu0 %v1199
    %v1300 = vpop.f32.mrb[0].mxu0
    %v1301 = vadd.f32 %v1179, %v1300
    %v1302 = vpop.f32.mrb[0].mxu0
    %v1303 = vadd.f32 %v1183, %v1302
    %1304 = vmatprep.mubr.f32.mxu0 0.0
    %1305 = vmatmul.mubr.f32.gmra.mrb[0].mxu0 %v1202
    %v1306 = vpop.f32.mrb[0].mxu0
    %v1307 = vadd.f32 %v1179, %v1306
    %v1308 = vpop.f32.mrb[0].mxu0
    %v1309 = vadd.f32 %v1183, %v1308
    %1310 = vmatprep.mubr.f32.mxu0 0.0
    %1311 = vmatmul.mubr.f32.gmra.mrb[0].mxu0 %v1205
    %v1312 = vpop.f32.mrb[0].mxu0
    %v1313 = vadd.f32 %v1179, %v1312
    %v1314 = vpop.f32.mrb[0].mxu0
    %v1315 = vadd.f32 %v1183, %v1314
    %1316 = vmatprep.mubr.f32.mxu0 0.0
    %1317 = vmatmul.mubr.f32.gmra.mrb[0].mxu0 %v1208
    %v1318 = vpop.f32.mrb[0].mxu0
    %v1319 = vadd.f32 %v1179, %v1318
    %v1320 = vpop.f32.mrb[0].mxu0
    %v1321 = vadd.f32 %v1183, %v1320
    %1322 = vdwg.mxu0
    %v1323 = vld [vmem:[%s5] sm:$0xff]
    %v1324 = vld [vmem:[%s5 + $0x8] sm:$0xff]
    %v1325 = vld [vmem:[%s5 + $0x10] sm:$0xff]
    %v1326 = vld [vmem:[%s5 + $0x18] sm:$0xff]
    %v1327 = vld [vmem:[%s5 + $0x20] sm:$0xff]
    %v1328 = vld [vmem:[%s5 + $0x28] sm:$0xff]
    %v1329 = vld [vmem:[%s5 + $0x30] sm:$0xff]
    %v1330 = vld [vmem:[%s5 + $0x38] sm:$0xff]
    %v1332 = vrot.slane %v1321, 6
    %v1334 = vsel %vm270, %v1277, %v1332
    %v1335 = vsel %vm272, %v1334, 0.0
    %v1337 = vrot.slane %v1315, 6
    %v1339 = vsel %vm270, %v1283, %v1337
    %v1340 = vsel %vm272, %v1339, 0.0
    %v1342 = vrot.slane %v1309, 6
    %v1344 = vsel %vm270, %v1289, %v1342
    %v1345 = vsel %vm272, %v1344, 0.0
    %v1347 = vrot.slane %v1303, 6
    %v1349 = vsel %vm270, %v1295, %v1347
    %v1350 = vsel %vm272, %v1349, 0.0
    %v1352 = vrot.slane %v1297, 6
    %v1354 = vsel %vm270, %v1301, %v1352
    %v1355 = vsel %vm272, %v1354, 0.0
    %v1357 = vrot.slane %v1291, 6
    %v1359 = vsel %vm270, %v1307, %v1357
    %v1360 = vsel %vm272, %v1359, 0.0
    %v1362 = vrot.slane %v1285, 6
    %v1364 = vsel %vm270, %v1313, %v1362
    %v1365 = vsel %vm272, %v1364, 0.0
    %v1367 = vrot.slane %v1279, 6
    %v1369 = vsel %vm270, %v1319, %v1367
    %v1370 = vsel %vm272, %v1369, 0.0
    %1371 = vmatprep.subr.mxu0 0.0
    %1372 = vmatpush1.msra.mxu0 %v1323
    %1373 = vmatprep.subr.mxu0 0.0
    %1374 = vmatpush1.msra.mxu0 %v1324
    %1375 = vmatprep.subr.mxu0 0.0
    %1376 = vmatpush1.msra.mxu0 %v1325
    %1377 = vmatprep.subr.mxu0 0.0
    %1378 = vmatpush1.msra.mxu0 %v1326
    %1379 = vmatprep.subr.mxu0 0.0
    %1380 = vmatpush1.msra.mxu0 %v1327
    %1381 = vmatprep.subr.mxu0 0.0
    %1382 = vmatpush1.msra.mxu0 %v1328
    %1383 = vmatprep.subr.mxu0 0.0
    %1384 = vmatpush1.msra.mxu0 %v1329
    %1385 = vmatprep.subr.mxu0 0.0
    %1386 = vmatpush1.msra.mxu0 %v1330
    %1387 = vmatprep.subr.mxu0 0.0
    %1388 = vmatpush1.msra.mxu0 0.0
    %1389 = vmatprep.subr.mxu0 0.0
    %1390 = vmatpush1.msra.mxu0 0.0
    %1391 = vmatprep.subr.mxu0 0.0
    %1392 = vmatpush1.msra.mxu0 0.0
    %1393 = vmatprep.subr.mxu0 0.0
    %1394 = vmatpush1.msra.mxu0 0.0
    %1395 = vmatprep.subr.mxu0 0.0
    %1396 = vmatpush1.msra.mxu0 0.0
    %1397 = vmatprep.subr.mxu0 0.0
    %1398 = vmatpush1.msra.mxu0 0.0
    %1399 = vmatprep.subr.mxu0 0.0
    %1400 = vmatpush1.msra.mxu0 0.0
    %1401 = vmatprep.subr.mxu0 0.0
    %1402 = vmatpush1.msra.mxu0 0.0
    %1403 = vmatprep.subr.mxu0 0.0
    %1404 = vmatpush1.msra.mxu0 0.0
    %1405 = vmatprep.subr.mxu0 0.0
    %1406 = vmatpush1.msra.mxu0 0.0
    %1407 = vmatprep.subr.mxu0 0.0
    %1408 = vmatpush1.msra.mxu0 0.0
    %1409 = vmatprep.subr.mxu0 0.0
    %1410 = vmatpush1.msra.mxu0 0.0
    %1411 = vmatprep.subr.mxu0 0.0
    %1412 = vmatpush1.msra.mxu0 0.0
    %1413 = vmatprep.subr.mxu0 0.0
    %1414 = vmatpush1.msra.mxu0 0.0
    %1415 = vmatprep.subr.mxu0 0.0
    %1416 = vmatpush1.msra.mxu0 0.0
    %1417 = vmatprep.subr.mxu0 0.0
    %1418 = vmatpush1.msra.mxu0 0.0
    %1419 = vmatprep.subr.mxu0 0.0
    %1420 = vmatpush1.msra.mxu0 0.0
    %1421 = vmatprep.subr.mxu0 0.0
    %1422 = vmatpush1.msra.mxu0 0.0
    %1423 = vmatprep.subr.mxu0 0.0
    %1424 = vmatpush1.msra.mxu0 0.0
    %1425 = vmatprep.subr.mxu0 0.0
    %1426 = vmatpush1.msra.mxu0 0.0
    %1427 = vmatprep.subr.mxu0 0.0
    %1428 = vmatpush1.msra.mxu0 0.0
    %1429 = vmatprep.subr.mxu0 0.0
    %1430 = vmatpush1.msra.mxu0 0.0
    %1431 = vmatprep.subr.mxu0 0.0
    %1432 = vmatpush1.msra.mxu0 0.0
    %1433 = vmatprep.subr.mxu0 0.0
    %1434 = vmatpush1.msra.mxu0 0.0
    %1435 = vmatprep.mubr.f32.mxu0 0.0
    %1436 = vmatmul.mubr.f32.gmra.mrb[0].mxu0 %v310
    %v1437 = vpop.f32.mrb[0].mxu0
    %v1438 = vadd.f32 0.0, %v1437
    %v1439 = vpop.f32.mrb[0].mxu0
    %1440 = vdwg.mxu0
    %v1441 = vadd.f32 %v1335, %v1438
    %v1442 = vtanh.pop %v1441
    %v1443 = vmul.f32 %v1442, 0.5
    %v1444 = vadd.f32 %v1443, 0.5
    %v1445 = vmul.f32 %v1444, 0.0
    %1447 = vrot.lane.b32.xlu0 %v1442, 64
    %v1448 = vpop.permute.xlu0 %1447
    %v1450 = vmul.f32 %v1444, %v1448
    %1452 = vrot.lane.b32.xlu0 %v1450, 32
    %v1453 = vpop.permute.xlu0 %1452
    %v1455 = vadd.f32 %v1445, %v1453
    %v1456 = vtanh.pop %v1455
    %1458 = vrot.lane.b32.xlu0 %v1456, 64
    %v1459 = vpop.permute.xlu0 %1458
    %v1461 = vmul.f32 %v1444, %v1459
    %1463 = vrot.lane.b32.xlu0 %v1461, 32
    %v1464 = vpop.permute.xlu0 %1463
    %1466 = vrot.lane.b32.xlu0 %v1461, 64
    %v1467 = vpop.permute.xlu0 %1466
    %v1469 = vsel %vm410, %v1464, %v1467
    %v1470 = vmul.f32 %v1469, %v82
    %1471 = vst.msk [vmem:[#allocation2] sm:$0x3] %vm413, %v1464
    %1472 = vst.msk [vmem:[#allocation2 + $0x36] sm:$0xc] %vm415, %v1467
    %v1474 = vsel %vm83, %v1470, 0
    %1476 = vmatprep.subr.mxu0 0.0
    %1477 = vmatpush1.msra.mxu0 %v1323
    %1478 = vmatprep.subr.mxu0 0.0
    %1479 = vmatpush1.msra.mxu0 %v1324
    %1480 = vmatprep.subr.mxu0 0.0
    %1481 = vmatpush1.msra.mxu0 %v1325
    %1482 = vmatprep.subr.mxu0 0.0
    %1483 = vmatpush1.msra.mxu0 %v1326
    %1484 = vmatprep.subr.mxu0 0.0
    %1485 = vmatpush1.msra.mxu0 %v1327
    %1486 = vmatprep.subr.mxu0 0.0
    %1487 = vmatpush1.msra.mxu0 %v1328
    %1488 = vmatprep.subr.mxu0 0.0
    %1489 = vmatpush1.msra.mxu0 %v1329
    %1490 = vmatprep.subr.mxu0 0.0
    %1491 = vmatpush1.msra.mxu0 %v1330
    %1492 = vmatprep.subr.mxu0 0.0
    %1493 = vmatpush1.msra.mxu0 0.0
    %1494 = vmatprep.subr.mxu0 0.0
    %1495 = vmatpush1.msra.mxu0 0.0
    %1496 = vmatprep.subr.mxu0 0.0
    %1497 = vmatpush1.msra.mxu0 0.0
    %1498 = vmatprep.subr.mxu0 0.0
    %1499 = vmatpush1.msra.mxu0 0.0
    %1500 = vmatprep.subr.mxu0 0.0
    %1501 = vmatpush1.msra.mxu0 0.0
    %1502 = vmatprep.subr.mxu0 0.0
    %1503 = vmatpush1.msra.mxu0 0.0
    %1504 = vmatprep.subr.mxu0 0.0
    %1505 = vmatpush1.msra.mxu0 0.0
    %1506 = vmatprep.subr.mxu0 0.0
    %1507 = vmatpush1.msra.mxu0 0.0
    %1508 = vmatprep.subr.mxu0 0.0
    %1509 = vmatpush1.msra.mxu0 0.0
    %1510 = vmatprep.subr.mxu0 0.0
    %1511 = vmatpush1.msra.mxu0 0.0
    %1512 = vmatprep.subr.mxu0 0.0
    %1513 = vmatpush1.msra.mxu0 0.0
    %1514 = vmatprep.subr.mxu0 0.0
    %1515 = vmatpush1.msra.mxu0 0.0
    %1516 = vmatprep.subr.mxu0 0.0
    %1517 = vmatpush1.msra.mxu0 0.0
    %1518 = vmatprep.subr.mxu0 0.0
    %1519 = vmatpush1.msra.mxu0 0.0
    %1520 = vmatprep.subr.mxu0 0.0
    %1521 = vmatpush1.msra.mxu0 0.0
    %1522 = vmatprep.subr.mxu0 0.0
    %1523 = vmatpush1.msra.mxu0 0.0
    %1524 = vmatprep.subr.mxu0 0.0
    %1525 = vmatpush1.msra.mxu0 0.0
    %1526 = vmatprep.subr.mxu0 0.0
    %1527 = vmatpush1.msra.mxu0 0.0
    %1528 = vmatprep.subr.mxu0 0.0
    %1529 = vmatpush1.msra.mxu0 0.0
    %1530 = vmatprep.subr.mxu0 0.0
    %1531 = vmatpush1.msra.mxu0 0.0
    %1532 = vmatprep.subr.mxu0 0.0
    %1533 = vmatpush1.msra.mxu0 0.0
    %1534 = vmatprep.subr.mxu0 0.0
    %1535 = vmatpush1.msra.mxu0 0.0
    %1536 = vmatprep.subr.mxu0 0.0
    %1537 = vmatpush1.msra.mxu0 0.0
    %1538 = vmatprep.subr.mxu0 0.0
    %1539 = vmatpush1.msra.mxu0 0.0
    %1540 = vmatprep.mubr.f32.mxu0 0.0
    %1541 = vmatmul.mubr.f32.gmra.mrb[0].mxu0 %v1474
    %v1542 = vpop.f32.mrb[0].mxu0
    %v1543 = vadd.f32 0.0, %v1542
    %v1544 = vpop.f32.mrb[0].mxu0
    %1545 = vdwg.mxu0
    %v1546 = vadd.f32 %v1340, %v1543
    %v1547 = vtanh.pop %v1546
    %v1548 = vmul.f32 %v1547, 0.5
    %v1549 = vadd.f32 %v1548, 0.5
    %v1550 = vmul.f32 %v1549, %v1455
    %1552 = vrot.lane.b32.xlu0 %v1547, 64
    %v1553 = vpop.permute.xlu0 %1552
    %v1555 = vmul.f32 %v1549, %v1553
    %1557 = vrot.lane.b32.xlu0 %v1555, 32
    %v1558 = vpop.permute.xlu0 %1557
    %v1560 = vadd.f32 %v1550, %v1558
    %v1561 = vtanh.pop %v1560
    %1563 = vrot.lane.b32.xlu0 %v1561, 64
    %v1564 = vpop.permute.xlu0 %1563
    %v1566 = vmul.f32 %v1549, %v1564
    %1568 = vrot.lane.b32.xlu0 %v1566, 32
    %v1569 = vpop.permute.xlu0 %1568
    %1571 = vrot.lane.b32.xlu0 %v1566, 64
    %v1572 = vpop.permute.xlu0 %1571
    %v1574 = vsel %vm410, %v1569, %v1572
    %v1575 = vmul.f32 %v1574, %v82
    %1576 = vst.msk [vmem:[#allocation2 + $0x8] sm:$0x3] %vm413, %v1569
    %1577 = vst.msk [vmem:[#allocation2 + $0x2e] sm:$0xc] %vm415, %v1572
    %v1579 = vsel %vm83, %v1575, 0
    %1581 = vmatprep.subr.mxu0 0.0
    %1582 = vmatpush1.msra.mxu0 %v1323
    %1583 = vmatprep.subr.mxu0 0.0
    %1584 = vmatpush1.msra.mxu0 %v1324
    %1585 = vmatprep.subr.mxu0 0.0
    %1586 = vmatpush1.msra.mxu0 %v1325
    %1587 = vmatprep.subr.mxu0 0.0
    %1588 = vmatpush1.msra.mxu0 %v1326
    %1589 = vmatprep.subr.mxu0 0.0
    %1590 = vmatpush1.msra.mxu0 %v1327
    %1591 = vmatprep.subr.mxu0 0.0
    %1592 = vmatpush1.msra.mxu0 %v1328
    %1593 = vmatprep.subr.mxu0 0.0
    %1594 = vmatpush1.msra.mxu0 %v1329
    %1595 = vmatprep.subr.mxu0 0.0
    %1596 = vmatpush1.msra.mxu0 %v1330
    %1597 = vmatprep.subr.mxu0 0.0
    %1598 = vmatpush1.msra.mxu0 0.0
    %1599 = vmatprep.subr.mxu0 0.0
    %1600 = vmatpush1.msra.mxu0 0.0
    %1601 = vmatprep.subr.mxu0 0.0
    %1602 = vmatpush1.msra.mxu0 0.0
    %1603 = vmatprep.subr.mxu0 0.0
    %1604 = vmatpush1.msra.mxu0 0.0
    %1605 = vmatprep.subr.mxu0 0.0
    %1606 = vmatpush1.msra.mxu0 0.0
    %1607 = vmatprep.subr.mxu0 0.0
    %1608 = vmatpush1.msra.mxu0 0.0
    %1609 = vmatprep.subr.mxu0 0.0
    %1610 = vmatpush1.msra.mxu0 0.0
    %1611 = vmatprep.subr.mxu0 0.0
    %1612 = vmatpush1.msra.mxu0 0.0
    %1613 = vmatprep.subr.mxu0 0.0
    %1614 = vmatpush1.msra.mxu0 0.0
    %1615 = vmatprep.subr.mxu0 0.0
    %1616 = vmatpush1.msra.mxu0 0.0
    %1617 = vmatprep.subr.mxu0 0.0
    %1618 = vmatpush1.msra.mxu0 0.0
    %1619 = vmatprep.subr.mxu0 0.0
    %1620 = vmatpush1.msra.mxu0 0.0
    %1621 = vmatprep.subr.mxu0 0.0
    %1622 = vmatpush1.msra.mxu0 0.0
    %1623 = vmatprep.subr.mxu0 0.0
    %1624 = vmatpush1.msra.mxu0 0.0
    %1625 = vmatprep.subr.mxu0 0.0
    %1626 = vmatpush1.msra.mxu0 0.0
    %1627 = vmatprep.subr.mxu0 0.0
    %1628 = vmatpush1.msra.mxu0 0.0
    %1629 = vmatprep.subr.mxu0 0.0
    %1630 = vmatpush1.msra.mxu0 0.0
    %1631 = vmatprep.subr.mxu0 0.0
    %1632 = vmatpush1.msra.mxu0 0.0
    %1633 = vmatprep.subr.mxu0 0.0
    %1634 = vmatpush1.msra.mxu0 0.0
    %1635 = vmatprep.subr.mxu0 0.0
    %1636 = vmatpush1.msra.mxu0 0.0
    %1637 = vmatprep.subr.mxu0 0.0
    %1638 = vmatpush1.msra.mxu0 0.0
    %1639 = vmatprep.subr.mxu0 0.0
    %1640 = vmatpush1.msra.mxu0 0.0
    %1641 = vmatprep.subr.mxu0 0.0
    %1642 = vmatpush1.msra.mxu0 0.0
    %1643 = vmatprep.subr.mxu0 0.0
    %1644 = vmatpush1.msra.mxu0 0.0
    %1645 = vmatprep.mubr.f32.mxu0 0.0
    %1646 = vmatmul.mubr.f32.gmra.mrb[0].mxu0 %v1579
    %v1647 = vpop.f32.mrb[0].mxu0
    %v1648 = vadd.f32 0.0, %v1647
    %v1649 = vpop.f32.mrb[0].mxu0
    %1650 = vdwg.mxu0
    %v1651 = vadd.f32 %v1345, %v1648
    %v1652 = vtanh.pop %v1651
    %v1653 = vmul.f32 %v1652, 0.5
    %v1654 = vadd.f32 %v1653, 0.5
    %v1655 = vmul.f32 %v1654, %v1560
    %1657 = vrot.lane.b32.xlu0 %v1652, 64
    %v1658 = vpop.permute.xlu0 %1657
    %v1660 = vmul.f32 %v1654, %v1658
    %1662 = vrot.lane.b32.xlu0 %v1660, 32
    %v1663 = vpop.permute.xlu0 %1662
    %v1665 = vadd.f32 %v1655, %v1663
    %v1666 = vtanh.pop %v1665
    %1668 = vrot.lane.b32.xlu0 %v1666, 64
    %v1669 = vpop.permute.xlu0 %1668
    %v1671 = vmul.f32 %v1654, %v1669
    %1673 = vrot.lane.b32.xlu0 %v1671, 32
    %v1674 = vpop.permute.xlu0 %1673
    %1676 = vrot.lane.b32.xlu0 %v1671, 64
    %v1677 = vpop.permute.xlu0 %1676
    %v1679 = vsel %vm410, %v1674, %v1677
    %v1680 = vmul.f32 %v1679, %v82
    %1681 = vst.msk [vmem:[#allocation2 + $0x10] sm:$0x3] %vm413, %v1674
    %1682 = vst.msk [vmem:[#allocation2 + $0x26] sm:$0xc] %vm415, %v1677
    %v1684 = vsel %vm83, %v1680, 0
    %1686 = vmatprep.subr.mxu0 0.0
    %1687 = vmatpush1.msra.mxu0 %v1323
    %1688 = vmatprep.subr.mxu0 0.0
    %1689 = vmatpush1.msra.mxu0 %v1324
    %1690 = vmatprep.subr.mxu0 0.0
    %1691 = vmatpush1.msra.mxu0 %v1325
    %1692 = vmatprep.subr.mxu0 0.0
    %1693 = vmatpush1.msra.mxu0 %v1326
    %1694 = vmatprep.subr.mxu0 0.0
    %1695 = vmatpush1.msra.mxu0 %v1327
    %1696 = vmatprep.subr.mxu0 0.0
    %1697 = vmatpush1.msra.mxu0 %v1328
    %1698 = vmatprep.subr.mxu0 0.0
    %1699 = vmatpush1.msra.mxu0 %v1329
    %1700 = vmatprep.subr.mxu0 0.0
    %1701 = vmatpush1.msra.mxu0 %v1330
    %1702 = vmatprep.subr.mxu0 0.0
    %1703 = vmatpush1.msra.mxu0 0.0
    %1704 = vmatprep.subr.mxu0 0.0
    %1705 = vmatpush1.msra.mxu0 0.0
    %1706 = vmatprep.subr.mxu0 0.0
    %1707 = vmatpush1.msra.mxu0 0.0
    %1708 = vmatprep.subr.mxu0 0.0
    %1709 = vmatpush1.msra.mxu0 0.0
    %1710 = vmatprep.subr.mxu0 0.0
    %1711 = vmatpush1.msra.mxu0 0.0
    %1712 = vmatprep.subr.mxu0 0.0
    %1713 = vmatpush1.msra.mxu0 0.0
    %1714 = vmatprep.subr.mxu0 0.0
    %1715 = vmatpush1.msra.mxu0 0.0
    %1716 = vmatprep.subr.mxu0 0.0
    %1717 = vmatpush1.msra.mxu0 0.0
    %1718 = vmatprep.subr.mxu0 0.0
    %1719 = vmatpush1.msra.mxu0 0.0
    %1720 = vmatprep.subr.mxu0 0.0
    %1721 = vmatpush1.msra.mxu0 0.0
    %1722 = vmatprep.subr.mxu0 0.0
    %1723 = vmatpush1.msra.mxu0 0.0
    %1724 = vmatprep.subr.mxu0 0.0
    %1725 = vmatpush1.msra.mxu0 0.0
    %1726 = vmatprep.subr.mxu0 0.0
    %1727 = vmatpush1.msra.mxu0 0.0
    %1728 = vmatprep.subr.mxu0 0.0
    %1729 = vmatpush1.msra.mxu0 0.0
    %1730 = vmatprep.subr.mxu0 0.0
    %1731 = vmatpush1.msra.mxu0 0.0
    %1732 = vmatprep.subr.mxu0 0.0
    %1733 = vmatpush1.msra.mxu0 0.0
    %1734 = vmatprep.subr.mxu0 0.0
    %1735 = vmatpush1.msra.mxu0 0.0
    %1736 = vmatprep.subr.mxu0 0.0
    %1737 = vmatpush1.msra.mxu0 0.0
    %1738 = vmatprep.subr.mxu0 0.0
    %1739 = vmatpush1.msra.mxu0 0.0
    %1740 = vmatprep.subr.mxu0 0.0
    %1741 = vmatpush1.msra.mxu0 0.0
    %1742 = vmatprep.subr.mxu0 0.0
    %1743 = vmatpush1.msra.mxu0 0.0
    %1744 = vmatprep.subr.mxu0 0.0
    %1745 = vmatpush1.msra.mxu0 0.0
    %1746 = vmatprep.subr.mxu0 0.0
    %1747 = vmatpush1.msra.mxu0 0.0
    %1748 = vmatprep.subr.mxu0 0.0
    %1749 = vmatpush1.msra.mxu0 0.0
    %1750 = vmatprep.mubr.f32.mxu0 0.0
    %1751 = vmatmul.mubr.f32.gmra.mrb[0].mxu0 %v1684
    %v1752 = vpop.f32.mrb[0].mxu0
    %v1753 = vadd.f32 0.0, %v1752
    %v1754 = vpop.f32.mrb[0].mxu0
    %1755 = vdwg.mxu0
    %v1756 = vadd.f32 %v1350, %v1753
    %v1757 = vtanh.pop %v1756
    %v1758 = vmul.f32 %v1757, 0.5
    %v1759 = vadd.f32 %v1758, 0.5
    %v1760 = vmul.f32 %v1759, %v1665
    %1762 = vrot.lane.b32.xlu0 %v1757, 64
    %v1763 = vpop.permute.xlu0 %1762
    %v1765 = vmul.f32 %v1759, %v1763
    %1767 = vrot.lane.b32.xlu0 %v1765, 32
    %v1768 = vpop.permute.xlu0 %1767
    %v1770 = vadd.f32 %v1760, %v1768
    %v1771 = vtanh.pop %v1770
    %1773 = vrot.lane.b32.xlu0 %v1771, 64
    %v1774 = vpop.permute.xlu0 %1773
    %v1776 = vmul.f32 %v1759, %v1774
    %1778 = vrot.lane.b32.xlu0 %v1776, 32
    %v1779 = vpop.permute.xlu0 %1778
    %1781 = vrot.lane.b32.xlu0 %v1776, 64
    %v1782 = vpop.permute.xlu0 %1781
    %v1784 = vsel %vm410, %v1779, %v1782
    %v1785 = vmul.f32 %v1784, %v82
    %1786 = vst.msk [vmem:[#allocation2 + $0x18] sm:$0x3] %vm413, %v1779
    %1787 = vst.msk [vmem:[#allocation2 + $0x1e] sm:$0xc] %vm415, %v1782
    %v1789 = vsel %vm83, %v1785, 0
    %1791 = vmatprep.subr.mxu0 0.0
    %1792 = vmatpush1.msra.mxu0 %v1323
    %1793 = vmatprep.subr.mxu0 0.0
    %1794 = vmatpush1.msra.mxu0 %v1324
    %1795 = vmatprep.subr.mxu0 0.0
    %1796 = vmatpush1.msra.mxu0 %v1325
    %1797 = vmatprep.subr.mxu0 0.0
    %1798 = vmatpush1.msra.mxu0 %v1326
    %1799 = vmatprep.subr.mxu0 0.0
    %1800 = vmatpush1.msra.mxu0 %v1327
    %1801 = vmatprep.subr.mxu0 0.0
    %1802 = vmatpush1.msra.mxu0 %v1328
    %1803 = vmatprep.subr.mxu0 0.0
    %1804 = vmatpush1.msra.mxu0 %v1329
    %1805 = vmatprep.subr.mxu0 0.0
    %1806 = vmatpush1.msra.mxu0 %v1330
    %1807 = vmatprep.subr.mxu0 0.0
    %1808 = vmatpush1.msra.mxu0 0.0
    %1809 = vmatprep.subr.mxu0 0.0
    %1810 = vmatpush1.msra.mxu0 0.0
    %1811 = vmatprep.subr.mxu0 0.0
    %1812 = vmatpush1.msra.mxu0 0.0
    %1813 = vmatprep.subr.mxu0 0.0
    %1814 = vmatpush1.msra.mxu0 0.0
    %1815 = vmatprep.subr.mxu0 0.0
    %1816 = vmatpush1.msra.mxu0 0.0
    %1817 = vmatprep.subr.mxu0 0.0
    %1818 = vmatpush1.msra.mxu0 0.0
    %1819 = vmatprep.subr.mxu0 0.0
    %1820 = vmatpush1.msra.mxu0 0.0
    %1821 = vmatprep.subr.mxu0 0.0
    %1822 = vmatpush1.msra.mxu0 0.0
    %1823 = vmatprep.subr.mxu0 0.0
    %1824 = vmatpush1.msra.mxu0 0.0
    %1825 = vmatprep.subr.mxu0 0.0
    %1826 = vmatpush1.msra.mxu0 0.0
    %1827 = vmatprep.subr.mxu0 0.0
    %1828 = vmatpush1.msra.mxu0 0.0
    %1829 = vmatprep.subr.mxu0 0.0
    %1830 = vmatpush1.msra.mxu0 0.0
    %1831 = vmatprep.subr.mxu0 0.0
    %1832 = vmatpush1.msra.mxu0 0.0
    %1833 = vmatprep.subr.mxu0 0.0
    %1834 = vmatpush1.msra.mxu0 0.0
    %1835 = vmatprep.subr.mxu0 0.0
    %1836 = vmatpush1.msra.mxu0 0.0
    %1837 = vmatprep.subr.mxu0 0.0
    %1838 = vmatpush1.msra.mxu0 0.0
    %1839 = vmatprep.subr.mxu0 0.0
    %1840 = vmatpush1.msra.mxu0 0.0
    %1841 = vmatprep.subr.mxu0 0.0
    %1842 = vmatpush1.msra.mxu0 0.0
    %1843 = vmatprep.subr.mxu0 0.0
    %1844 = vmatpush1.msra.mxu0 0.0
    %1845 = vmatprep.subr.mxu0 0.0
    %1846 = vmatpush1.msra.mxu0 0.0
    %1847 = vmatprep.subr.mxu0 0.0
    %1848 = vmatpush1.msra.mxu0 0.0
    %1849 = vmatprep.subr.mxu0 0.0
    %1850 = vmatpush1.msra.mxu0 0.0
    %1851 = vmatprep.subr.mxu0 0.0
    %1852 = vmatpush1.msra.mxu0 0.0
    %1853 = vmatprep.subr.mxu0 0.0
    %1854 = vmatpush1.msra.mxu0 0.0
    %1855 = vmatprep.mubr.f32.mxu0 0.0
    %1856 = vmatmul.mubr.f32.gmra.mrb[0].mxu0 %v1789
    %v1857 = vpop.f32.mrb[0].mxu0
    %v1858 = vadd.f32 0.0, %v1857
    %v1859 = vpop.f32.mrb[0].mxu0
    %1860 = vdwg.mxu0
    %v1861 = vadd.f32 %v1355, %v1858
    %v1862 = vtanh.pop %v1861
    %v1863 = vmul.f32 %v1862, 0.5
    %v1864 = vadd.f32 %v1863, 0.5
    %v1865 = vmul.f32 %v1864, %v1770
    %1867 = vrot.lane.b32.xlu0 %v1862, 64
    %v1868 = vpop.permute.xlu0 %1867
    %v1870 = vmul.f32 %v1864, %v1868
    %1872 = vrot.lane.b32.xlu0 %v1870, 32
    %v1873 = vpop.permute.xlu0 %1872
    %v1875 = vadd.f32 %v1865, %v1873
    %v1876 = vtanh.pop %v1875
    %1878 = vrot.lane.b32.xlu0 %v1876, 64
    %v1879 = vpop.permute.xlu0 %1878
    %v1881 = vmul.f32 %v1864, %v1879
    %1883 = vrot.lane.b32.xlu0 %v1881, 32
    %v1884 = vpop.permute.xlu0 %1883
    %1886 = vrot.lane.b32.xlu0 %v1881, 64
    %v1887 = vpop.permute.xlu0 %1886
    %v1889 = vsel %vm410, %v1884, %v1887
    %v1890 = vmul.f32 %v1889, %v82
    %1891 = vst.msk [vmem:[#allocation2 + $0x20] sm:$0x3] %vm413, %v1884
    %1892 = vst.msk [vmem:[#allocation2 + $0x16] sm:$0xc] %vm415, %v1887
    %v1894 = vsel %vm83, %v1890, 0
    %1896 = vmatprep.subr.mxu0 0.0
    %1897 = vmatpush1.msra.mxu0 %v1323
    %1898 = vmatprep.subr.mxu0 0.0
    %1899 = vmatpush1.msra.mxu0 %v1324
    %1900 = vmatprep.subr.mxu0 0.0
    %1901 = vmatpush1.msra.mxu0 %v1325
    %1902 = vmatprep.subr.mxu0 0.0
    %1903 = vmatpush1.msra.mxu0 %v1326
    %1904 = vmatprep.subr.mxu0 0.0
    %1905 = vmatpush1.msra.mxu0 %v1327
    %1906 = vmatprep.subr.mxu0 0.0
    %1907 = vmatpush1.msra.mxu0 %v1328
    %1908 = vmatprep.subr.mxu0 0.0
    %1909 = vmatpush1.msra.mxu0 %v1329
    %1910 = vmatprep.subr.mxu0 0.0
    %1911 = vmatpush1.msra.mxu0 %v1330
    %1912 = vmatprep.subr.mxu0 0.0
    %1913 = vmatpush1.msra.mxu0 0.0
    %1914 = vmatprep.subr.mxu0 0.0
    %1915 = vmatpush1.msra.mxu0 0.0
    %1916 = vmatprep.subr.mxu0 0.0
    %1917 = vmatpush1.msra.mxu0 0.0
    %1918 = vmatprep.subr.mxu0 0.0
    %1919 = vmatpush1.msra.mxu0 0.0
    %1920 = vmatprep.subr.mxu0 0.0
    %1921 = vmatpush1.msra.mxu0 0.0
    %1922 = vmatprep.subr.mxu0 0.0
    %1923 = vmatpush1.msra.mxu0 0.0
    %1924 = vmatprep.subr.mxu0 0.0
    %1925 = vmatpush1.msra.mxu0 0.0
    %1926 = vmatprep.subr.mxu0 0.0
    %1927 = vmatpush1.msra.mxu0 0.0
    %1928 = vmatprep.subr.mxu0 0.0
    %1929 = vmatpush1.msra.mxu0 0.0
    %1930 = vmatprep.subr.mxu0 0.0
    %1931 = vmatpush1.msra.mxu0 0.0
    %1932 = vmatprep.subr.mxu0 0.0
    %1933 = vmatpush1.msra.mxu0 0.0
    %1934 = vmatprep.subr.mxu0 0.0
    %1935 = vmatpush1.msra.mxu0 0.0
    %1936 = vmatprep.subr.mxu0 0.0
    %1937 = vmatpush1.msra.mxu0 0.0
    %1938 = vmatprep.subr.mxu0 0.0
    %1939 = vmatpush1.msra.mxu0 0.0
    %1940 = vmatprep.subr.mxu0 0.0
    %1941 = vmatpush1.msra.mxu0 0.0
    %1942 = vmatprep.subr.mxu0 0.0
    %1943 = vmatpush1.msra.mxu0 0.0
    %1944 = vmatprep.subr.mxu0 0.0
    %1945 = vmatpush1.msra.mxu0 0.0
    %1946 = vmatprep.subr.mxu0 0.0
    %1947 = vmatpush1.msra.mxu0 0.0
    %1948 = vmatprep.subr.mxu0 0.0
    %1949 = vmatpush1.msra.mxu0 0.0
    %1950 = vmatprep.subr.mxu0 0.0
    %1951 = vmatpush1.msra.mxu0 0.0
    %1952 = vmatprep.subr.mxu0 0.0
    %1953 = vmatpush1.msra.mxu0 0.0
    %1954 = vmatprep.subr.mxu0 0.0
    %1955 = vmatpush1.msra.mxu0 0.0
    %1956 = vmatprep.subr.mxu0 0.0
    %1957 = vmatpush1.msra.mxu0 0.0
    %1958 = vmatprep.subr.mxu0 0.0
    %1959 = vmatpush1.msra.mxu0 0.0
    %1960 = vmatprep.mubr.f32.mxu0 0.0
    %1961 = vmatmul.mubr.f32.gmra.mrb[0].mxu0 %v1894
    %v1962 = vpop.f32.mrb[0].mxu0
    %v1963 = vadd.f32 0.0, %v1962
    %v1964 = vpop.f32.mrb[0].mxu0
    %1965 = vdwg.mxu0
    %v1966 = vadd.f32 %v1360, %v1963
    %v1967 = vtanh.pop %v1966
    %v1968 = vmul.f32 %v1967, 0.5
    %v1969 = vadd.f32 %v1968, 0.5
    %v1970 = vmul.f32 %v1969, %v1875
    %1972 = vrot.lane.b32.xlu0 %v1967, 64
    %v1973 = vpop.permute.xlu0 %1972
    %v1975 = vmul.f32 %v1969, %v1973
    %1977 = vrot.lane.b32.xlu0 %v1975, 32
    %v1978 = vpop.permute.xlu0 %1977
    %v1980 = vadd.f32 %v1970, %v1978
    %v1981 = vtanh.pop %v1980
    %1983 = vrot.lane.b32.xlu0 %v1981, 64
    %v1984 = vpop.permute.xlu0 %1983
    %v1986 = vmul.f32 %v1969, %v1984
    %1988 = vrot.lane.b32.xlu0 %v1986, 32
    %v1989 = vpop.permute.xlu0 %1988
    %1991 = vrot.lane.b32.xlu0 %v1986, 64
    %v1992 = vpop.permute.xlu0 %1991
    %v1994 = vsel %vm410, %v1989, %v1992
    %v1995 = vmul.f32 %v1994, %v82
    %1996 = vst.msk [vmem:[#allocation2 + $0x28] sm:$0x3] %vm413, %v1989
    %1997 = vst.msk [vmem:[#allocation2 + $0xe] sm:$0xc] %vm415, %v1992
    %v1999 = vsel %vm83, %v1995, 0
    %2001 = vmatprep.subr.mxu0 0.0
    %2002 = vmatpush1.msra.mxu0 %v1323
    %2003 = vmatprep.subr.mxu0 0.0
    %2004 = vmatpush1.msra.mxu0 %v1324
    %2005 = vmatprep.subr.mxu0 0.0
    %2006 = vmatpush1.msra.mxu0 %v1325
    %2007 = vmatprep.subr.mxu0 0.0
    %2008 = vmatpush1.msra.mxu0 %v1326
    %2009 = vmatprep.subr.mxu0 0.0
    %2010 = vmatpush1.msra.mxu0 %v1327
    %2011 = vmatprep.subr.mxu0 0.0
    %2012 = vmatpush1.msra.mxu0 %v1328
    %2013 = vmatprep.subr.mxu0 0.0
    %2014 = vmatpush1.msra.mxu0 %v1329
    %2015 = vmatprep.subr.mxu0 0.0
    %2016 = vmatpush1.msra.mxu0 %v1330
    %2017 = vmatprep.subr.mxu0 0.0
    %2018 = vmatpush1.msra.mxu0 0.0
    %2019 = vmatprep.subr.mxu0 0.0
    %2020 = vmatpush1.msra.mxu0 0.0
    %2021 = vmatprep.subr.mxu0 0.0
    %2022 = vmatpush1.msra.mxu0 0.0
    %2023 = vmatprep.subr.mxu0 0.0
    %2024 = vmatpush1.msra.mxu0 0.0
    %2025 = vmatprep.subr.mxu0 0.0
    %2026 = vmatpush1.msra.mxu0 0.0
    %2027 = vmatprep.subr.mxu0 0.0
    %2028 = vmatpush1.msra.mxu0 0.0
    %2029 = vmatprep.subr.mxu0 0.0
    %2030 = vmatpush1.msra.mxu0 0.0
    %2031 = vmatprep.subr.mxu0 0.0
    %2032 = vmatpush1.msra.mxu0 0.0
    %2033 = vmatprep.subr.mxu0 0.0
    %2034 = vmatpush1.msra.mxu0 0.0
    %2035 = vmatprep.subr.mxu0 0.0
    %2036 = vmatpush1.msra.mxu0 0.0
    %2037 = vmatprep.subr.mxu0 0.0
    %2038 = vmatpush1.msra.mxu0 0.0
    %2039 = vmatprep.subr.mxu0 0.0
    %2040 = vmatpush1.msra.mxu0 0.0
    %2041 = vmatprep.subr.mxu0 0.0
    %2042 = vmatpush1.msra.mxu0 0.0
    %2043 = vmatprep.subr.mxu0 0.0
    %2044 = vmatpush1.msra.mxu0 0.0
    %2045 = vmatprep.subr.mxu0 0.0
    %2046 = vmatpush1.msra.mxu0 0.0
    %2047 = vmatprep.subr.mxu0 0.0
    %2048 = vmatpush1.msra.mxu0 0.0
    %2049 = vmatprep.subr.mxu0 0.0
    %2050 = vmatpush1.msra.mxu0 0.0
    %2051 = vmatprep.subr.mxu0 0.0
    %2052 = vmatpush1.msra.mxu0 0.0
    %2053 = vmatprep.subr.mxu0 0.0
    %2054 = vmatpush1.msra.mxu0 0.0
    %2055 = vmatprep.subr.mxu0 0.0
    %2056 = vmatpush1.msra.mxu0 0.0
    %2057 = vmatprep.subr.mxu0 0.0
    %2058 = vmatpush1.msra.mxu0 0.0
    %2059 = vmatprep.subr.mxu0 0.0
    %2060 = vmatpush1.msra.mxu0 0.0
    %2061 = vmatprep.subr.mxu0 0.0
    %2062 = vmatpush1.msra.mxu0 0.0
    %2063 = vmatprep.subr.mxu0 0.0
    %2064 = vmatpush1.msra.mxu0 0.0
    %2065 = vmatprep.mubr.f32.mxu0 0.0
    %2066 = vmatmul.mubr.f32.gmra.mrb[0].mxu0 %v1999
    %v2067 = vpop.f32.mrb[0].mxu0
    %v2068 = vadd.f32 0.0, %v2067
    %v2069 = vpop.f32.mrb[0].mxu0
    %2070 = vdwg.mxu0
    %v2071 = vadd.f32 %v1365, %v2068
    %v2072 = vtanh.pop %v2071
    %v2073 = vmul.f32 %v2072, 0.5
    %v2074 = vadd.f32 %v2073, 0.5
    %v2075 = vmul.f32 %v2074, %v1980
    %2077 = vrot.lane.b32.xlu0 %v2072, 64
    %v2078 = vpop.permute.xlu0 %2077
    %v2080 = vmul.f32 %v2074, %v2078
    %2082 = vrot.lane.b32.xlu0 %v2080, 32
    %v2083 = vpop.permute.xlu0 %2082
    %v2085 = vadd.f32 %v2075, %v2083
    %v2086 = vtanh.pop %v2085
    %2088 = vrot.lane.b32.xlu0 %v2086, 64
    %v2089 = vpop.permute.xlu0 %2088
    %v2091 = vmul.f32 %v2074, %v2089
    %2093 = vrot.lane.b32.xlu0 %v2091, 32
    %v2094 = vpop.permute.xlu0 %2093
    %2096 = vrot.lane.b32.xlu0 %v2091, 64
    %v2097 = vpop.permute.xlu0 %2096
    %v2099 = vsel %vm410, %v2094, %v2097
    %v2100 = vmul.f32 %v2099, %v82
    %2101 = vst.msk [vmem:[#allocation2 + $0x30] sm:$0x3] %vm413, %v2094
    %2102 = vst.msk [vmem:[#allocation2 + $0x6] sm:$0xc] %vm415, %v2097
    %v2104 = vsel %vm83, %v2100, 0
    %2106 = vmatprep.subr.mxu0 0.0
    %2107 = vmatpush1.msra.mxu0 %v1323
    %2108 = vmatprep.subr.mxu0 0.0
    %2109 = vmatpush1.msra.mxu0 %v1324
    %2110 = vmatprep.subr.mxu0 0.0
    %2111 = vmatpush1.msra.mxu0 %v1325
    %2112 = vmatprep.subr.mxu0 0.0
    %2113 = vmatpush1.msra.mxu0 %v1326
    %2114 = vmatprep.subr.mxu0 0.0
    %2115 = vmatpush1.msra.mxu0 %v1327
    %2116 = vmatprep.subr.mxu0 0.0
    %2117 = vmatpush1.msra.mxu0 %v1328
    %2118 = vmatprep.subr.mxu0 0.0
    %2119 = vmatpush1.msra.mxu0 %v1329
    %2120 = vmatprep.subr.mxu0 0.0
    %2121 = vmatpush1.msra.mxu0 %v1330
    %2122 = vmatprep.subr.mxu0 0.0
    %2123 = vmatpush1.msra.mxu0 0.0
    %2124 = vmatprep.subr.mxu0 0.0
    %2125 = vmatpush1.msra.mxu0 0.0
    %2126 = vmatprep.subr.mxu0 0.0
    %2127 = vmatpush1.msra.mxu0 0.0
    %2128 = vmatprep.subr.mxu0 0.0
    %2129 = vmatpush1.msra.mxu0 0.0
    %2130 = vmatprep.subr.mxu0 0.0
    %2131 = vmatpush1.msra.mxu0 0.0
    %2132 = vmatprep.subr.mxu0 0.0
    %2133 = vmatpush1.msra.mxu0 0.0
    %2134 = vmatprep.subr.mxu0 0.0
    %2135 = vmatpush1.msra.mxu0 0.0
    %2136 = vmatprep.subr.mxu0 0.0
    %2137 = vmatpush1.msra.mxu0 0.0
    %2138 = vmatprep.subr.mxu0 0.0
    %2139 = vmatpush1.msra.mxu0 0.0
    %2140 = vmatprep.subr.mxu0 0.0
    %2141 = vmatpush1.msra.mxu0 0.0
    %2142 = vmatprep.subr.mxu0 0.0
    %2143 = vmatpush1.msra.mxu0 0.0
    %2144 = vmatprep.subr.mxu0 0.0
    %2145 = vmatpush1.msra.mxu0 0.0
    %2146 = vmatprep.subr.mxu0 0.0
    %2147 = vmatpush1.msra.mxu0 0.0
    %2148 = vmatprep.subr.mxu0 0.0
    %2149 = vmatpush1.msra.mxu0 0.0
    %2150 = vmatprep.subr.mxu0 0.0
    %2151 = vmatpush1.msra.mxu0 0.0
    %2152 = vmatprep.subr.mxu0 0.0
    %2153 = vmatpush1.msra.mxu0 0.0
    %2154 = vmatprep.subr.mxu0 0.0
    %2155 = vmatpush1.msra.mxu0 0.0
    %2156 = vmatprep.subr.mxu0 0.0
    %2157 = vmatpush1.msra.mxu0 0.0
    %2158 = vmatprep.subr.mxu0 0.0
    %2159 = vmatpush1.msra.mxu0 0.0
    %2160 = vmatprep.subr.mxu0 0.0
    %2161 = vmatpush1.msra.mxu0 0.0
    %2162 = vmatprep.subr.mxu0 0.0
    %2163 = vmatpush1.msra.mxu0 0.0
    %2164 = vmatprep.subr.mxu0 0.0
    %2165 = vmatpush1.msra.mxu0 0.0
    %2166 = vmatprep.subr.mxu0 0.0
    %2167 = vmatpush1.msra.mxu0 0.0
    %2168 = vmatprep.subr.mxu0 0.0
    %2169 = vmatpush1.msra.mxu0 0.0
    %2170 = vmatprep.mubr.f32.mxu0 0.0
    %2171 = vmatmul.mubr.f32.gmra.mrb[0].mxu0 %v2104
    %v2172 = vpop.f32.mrb[0].mxu0
    %v2173 = vadd.f32 0.0, %v2172
    %v2174 = vpop.f32.mrb[0].mxu0
    %2175 = vdwg.mxu0
    %v2176 = vadd.f32 %v1370, %v2173
    %v2177 = vtanh.pop %v2176
    %v2178 = vmul.f32 %v2177, 0.5
    %v2179 = vadd.f32 %v2178, 0.5
    %v2180 = vmul.f32 %v2179, %v2085
    %2182 = vrot.lane.b32.xlu0 %v2177, 64
    %v2183 = vpop.permute.xlu0 %2182
    %v2185 = vmul.f32 %v2179, %v2183
    %2187 = vrot.lane.b32.xlu0 %v2185, 32
    %v2188 = vpop.permute.xlu0 %2187
    %v2190 = vadd.f32 %v2180, %v2188
    %v2191 = vtanh.pop %v2190
    %2193 = vrot.lane.b32.xlu0 %v2191, 64
    %v2194 = vpop.permute.xlu0 %2193
    %v2196 = vmul.f32 %v2179, %v2194
    %2198 = vrot.lane.b32.xlu0 %v2196, 32
    %v2199 = vpop.permute.xlu0 %2198
    %2201 = vst.msk [vmem:[#allocation2 + $0x38] sm:$0x3] %vm413, %v2199
    %2202 = vrot.lane.b32.xlu0 %v2196, 64
    %v2203 = vpop.permute.xlu0 %2202
    %2205 = vst.msk [vmem:[#allocation2 - $0x2] sm:$0xc] %vm415, %v2203
    %v2206 = vld [vmem:[#allocation2] sm:$0xff]
    %v2207 = vld [vmem:[#allocation2 + $0x8] sm:$0xff]
    %v2208 = vld [vmem:[#allocation2 + $0x10] sm:$0xff]
    %v2209 = vld [vmem:[#allocation2 + $0x18] sm:$0xff]
    %v2210 = vld [vmem:[#allocation2 + $0x20] sm:$0xff]
    %v2211 = vld [vmem:[#allocation2 + $0x28] sm:$0xff]
    %v2212 = vld [vmem:[#allocation2 + $0x30] sm:$0xff]
    %v2213 = vld [vmem:[#allocation2 + $0x38] sm:$0xff]
    %v2214 = vld [vmem:[%s7] sm:$0xff]
    %v2215 = vld [vmem:[%s7 + $0x8] sm:$0xff]
    %v2216 = vld [vmem:[%s7 + $0x10] sm:$0xff]
    %v2217 = vld [vmem:[%s7 + $0x18] sm:$0xff]
    %v2218 = vld [vmem:[%s7 + $0x20] sm:$0xff]
    %v2219 = vld [vmem:[%s7 + $0x28] sm:$0xff]
    %v2220 = vld [vmem:[%s7 + $0x30] sm:$0xff]
    %v2221 = vld [vmem:[%s7 + $0x38] sm:$0xff]
    %v2222 = vld [vmem:[%s7 + $0x40] sm:$0xff]
    %v2223 = vld [vmem:[%s7 + $0x48] sm:$0xff]
    %v2224 = vld [vmem:[%s7 + $0x50] sm:$0xff]
    %v2225 = vld [vmem:[%s7 + $0x58] sm:$0xff]
    %v2226 = vld [vmem:[%s7 + $0x60] sm:$0xff]
    %v2227 = vld [vmem:[%s7 + $0x68] sm:$0xff]
    %v2228 = vld [vmem:[%s7 + $0x70] sm:$0xff]
    %v2229 = vld [vmem:[%s7 + $0x78] sm:$0xff]
    %v2230 = vld [vmem:[%s9] sm:$0x3]
    %v2232 = vlaneseq
    %v2233 = vshrl.u32 %v2232, 7
    %v2234 = vsub.s32 0, %v2233
    %v2235 = vrot.slane %v2230, %v2234
    %v2236 = vlaneseq
    %v2237 = vshrl.u32 %v2236, 7
    %v2238 = vsub.s32 1, %v2237
    %v2239 = vrot.slane %v2230, %v2238
    %v2243 = vsel %vm83, %v2206, 0
    %v2246 = vsel %vm83, %v2207, 0
    %v2249 = vsel %vm83, %v2208, 0
    %v2252 = vsel %vm83, %v2209, 0
    %v2255 = vsel %vm83, %v2210, 0
    %v2258 = vsel %vm83, %v2211, 0
    %v2261 = vsel %vm83, %v2212, 0
    %v2264 = vsel %vm83, %v2213, 0
    %2266 = vmatprep.subr.mxu0 %v2215
    %2267 = vmatpush1.msra.mxu0 %v2214
    %2268 = vmatprep.subr.mxu0 %v2217
    %2269 = vmatpush1.msra.mxu0 %v2216
    %2270 = vmatprep.subr.mxu0 %v2219
    %2271 = vmatpush1.msra.mxu0 %v2218
    %2272 = vmatprep.subr.mxu0 %v2221
    %2273 = vmatpush1.msra.mxu0 %v2220
    %2274 = vmatprep.subr.mxu0 %v2223
    %2275 = vmatpush1.msra.mxu0 %v2222
    %2276 = vmatprep.subr.mxu0 %v2225
    %2277 = vmatpush1.msra.mxu0 %v2224
    %2278 = vmatprep.subr.mxu0 %v2227
    %2279 = vmatpush1.msra.mxu0 %v2226
    %2280 = vmatprep.subr.mxu0 %v2229
    %2281 = vmatpush1.msra.mxu0 %v2228
    %2282 = vmatprep.subr.mxu0 0.0
    %2283 = vmatpush1.msra.mxu0 0.0
    %2284 = vmatprep.subr.mxu0 0.0
    %2285 = vmatpush1.msra.mxu0 0.0
    %2286 = vmatprep.subr.mxu0 0.0
    %2287 = vmatpush1.msra.mxu0 0.0
    %2288 = vmatprep.subr.mxu0 0.0
    %2289 = vmatpush1.msra.mxu0 0.0
    %2290 = vmatprep.subr.mxu0 0.0
    %2291 = vmatpush1.msra.mxu0 0.0
    %2292 = vmatprep.subr.mxu0 0.0
    %2293 = vmatpush1.msra.mxu0 0.0
    %2294 = vmatprep.subr.mxu0 0.0
    %2295 = vmatpush1.msra.mxu0 0.0
    %2296 = vmatprep.subr.mxu0 0.0
    %2297 = vmatpush1.msra.mxu0 0.0
    %2298 = vmatprep.subr.mxu0 0.0
    %2299 = vmatpush1.msra.mxu0 0.0
    %2300 = vmatprep.subr.mxu0 0.0
    %2301 = vmatpush1.msra.mxu0 0.0
    %2302 = vmatprep.subr.mxu0 0.0
    %2303 = vmatpush1.msra.mxu0 0.0
    %2304 = vmatprep.subr.mxu0 0.0
    %2305 = vmatpush1.msra.mxu0 0.0
    %2306 = vmatprep.subr.mxu0 0.0
    %2307 = vmatpush1.msra.mxu0 0.0
    %2308 = vmatprep.subr.mxu0 0.0
    %2309 = vmatpush1.msra.mxu0 0.0
    %2310 = vmatprep.subr.mxu0 0.0
    %2311 = vmatpush1.msra.mxu0 0.0
    %2312 = vmatprep.subr.mxu0 0.0
    %2313 = vmatpush1.msra.mxu0 0.0
    %2314 = vmatprep.subr.mxu0 0.0
    %2315 = vmatpush1.msra.mxu0 0.0
    %2316 = vmatprep.subr.mxu0 0.0
    %2317 = vmatpush1.msra.mxu0 0.0
    %2318 = vmatprep.subr.mxu0 0.0
    %2319 = vmatpush1.msra.mxu0 0.0
    %2320 = vmatprep.subr.mxu0 0.0
    %2321 = vmatpush1.msra.mxu0 0.0
    %2322 = vmatprep.subr.mxu0 0.0
    %2323 = vmatpush1.msra.mxu0 0.0
    %2324 = vmatprep.subr.mxu0 0.0
    %2325 = vmatpush1.msra.mxu0 0.0
    %2326 = vmatprep.subr.mxu0 0.0
    %2327 = vmatpush1.msra.mxu0 0.0
    %2328 = vmatprep.subr.mxu0 0.0
    %2329 = vmatpush1.msra.mxu0 0.0
    %2330 = vmatprep.mubr.f32.mxu0 0.0
    %2331 = vmatmul.mubr.f32.gmra.mrb[0].mxu0 %v2243
    %v2332 = vpop.f32.mrb[0].mxu0
    %v2333 = vadd.f32 %v2235, %v2332
    %v2334 = vpop.f32.mrb[0].mxu0
    %v2335 = vadd.f32 %v2239, %v2334
    %2336 = vmatprep.mubr.f32.mxu0 0.0
    %2337 = vmatmul.mubr.f32.gmra.mrb[0].mxu0 %v2246
    %v2338 = vpop.f32.mrb[0].mxu0
    %v2339 = vadd.f32 %v2235, %v2338
    %v2340 = vpop.f32.mrb[0].mxu0
    %v2341 = vadd.f32 %v2239, %v2340
    %2342 = vmatprep.mubr.f32.mxu0 0.0
    %2343 = vmatmul.mubr.f32.gmra.mrb[0].mxu0 %v2249
    %v2344 = vpop.f32.mrb[0].mxu0
    %v2345 = vadd.f32 %v2235, %v2344
    %v2346 = vpop.f32.mrb[0].mxu0
    %v2347 = vadd.f32 %v2239, %v2346
    %2348 = vmatprep.mubr.f32.mxu0 0.0
    %2349 = vmatmul.mubr.f32.gmra.mrb[0].mxu0 %v2252
    %v2350 = vpop.f32.mrb[0].mxu0
    %v2351 = vadd.f32 %v2235, %v2350
    %v2352 = vpop.f32.mrb[0].mxu0
    %v2353 = vadd.f32 %v2239, %v2352
    %2354 = vmatprep.mubr.f32.mxu0 0.0
    %2355 = vmatmul.mubr.f32.gmra.mrb[0].mxu0 %v2255
    %v2356 = vpop.f32.mrb[0].mxu0
    %v2357 = vadd.f32 %v2235, %v2356
    %v2358 = vpop.f32.mrb[0].mxu0
    %v2359 = vadd.f32 %v2239, %v2358
    %2360 = vmatprep.mubr.f32.mxu0 0.0
    %2361 = vmatmul.mubr.f32.gmra.mrb[0].mxu0 %v2258
    %v2362 = vpop.f32.mrb[0].mxu0
    %v2363 = vadd.f32 %v2235, %v2362
    %v2364 = vpop.f32.mrb[0].mxu0
    %v2365 = vadd.f32 %v2239, %v2364
    %2366 = vmatprep.mubr.f32.mxu0 0.0
    %2367 = vmatmul.mubr.f32.gmra.mrb[0].mxu0 %v2261
    %v2368 = vpop.f32.mrb[0].mxu0
    %v2369 = vadd.f32 %v2235, %v2368
    %v2370 = vpop.f32.mrb[0].mxu0
    %v2371 = vadd.f32 %v2239, %v2370
    %2372 = vmatprep.mubr.f32.mxu0 0.0
    %2373 = vmatmul.mubr.f32.gmra.mrb[0].mxu0 %v2264
    %v2374 = vpop.f32.mrb[0].mxu0
    %v2375 = vadd.f32 %v2235, %v2374
    %v2376 = vpop.f32.mrb[0].mxu0
    %v2377 = vadd.f32 %v2239, %v2376
    %2378 = vdwg.mxu0
    %v2379 = vld [vmem:[%s8] sm:$0xff]
    %v2380 = vld [vmem:[%s8 + $0x8] sm:$0xff]
    %v2381 = vld [vmem:[%s8 + $0x10] sm:$0xff]
    %v2382 = vld [vmem:[%s8 + $0x18] sm:$0xff]
    %v2383 = vld [vmem:[%s8 + $0x20] sm:$0xff]
    %v2384 = vld [vmem:[%s8 + $0x28] sm:$0xff]
    %v2385 = vld [vmem:[%s8 + $0x30] sm:$0xff]
    %v2386 = vld [vmem:[%s8 + $0x38] sm:$0xff]
    %v2388 = vrot.slane %v2377, 6
    %v2390 = vsel %vm270, %v2333, %v2388
    %v2391 = vsel %vm272, %v2390, 0.0
    %v2393 = vrot.slane %v2371, 6
    %v2395 = vsel %vm270, %v2339, %v2393
    %v2396 = vsel %vm272, %v2395, 0.0
    %v2398 = vrot.slane %v2365, 6
    %v2400 = vsel %vm270, %v2345, %v2398
    %v2401 = vsel %vm272, %v2400, 0.0
    %v2403 = vrot.slane %v2359, 6
    %v2405 = vsel %vm270, %v2351, %v2403
    %v2406 = vsel %vm272, %v2405, 0.0
    %v2408 = vrot.slane %v2353, 6
    %v2410 = vsel %vm270, %v2357, %v2408
    %v2411 = vsel %vm272, %v2410, 0.0
    %v2413 = vrot.slane %v2347, 6
    %v2415 = vsel %vm270, %v2363, %v2413
    %v2416 = vsel %vm272, %v2415, 0.0
    %v2418 = vrot.slane %v2341, 6
    %v2420 = vsel %vm270, %v2369, %v2418
    %v2421 = vsel %vm272, %v2420, 0.0
    %v2423 = vrot.slane %v2335, 6
    %v2425 = vsel %vm270, %v2375, %v2423
    %v2426 = vsel %vm272, %v2425, 0.0
    %2427 = vmatprep.subr.mxu0 0.0
    %2428 = vmatpush1.msra.mxu0 %v2379
    %2429 = vmatprep.subr.mxu0 0.0
    %2430 = vmatpush1.msra.mxu0 %v2380
    %2431 = vmatprep.subr.mxu0 0.0
    %2432 = vmatpush1.msra.mxu0 %v2381
    %2433 = vmatprep.subr.mxu0 0.0
    %2434 = vmatpush1.msra.mxu0 %v2382
    %2435 = vmatprep.subr.mxu0 0.0
    %2436 = vmatpush1.msra.mxu0 %v2383
    %2437 = vmatprep.subr.mxu0 0.0
    %2438 = vmatpush1.msra.mxu0 %v2384
    %2439 = vmatprep.subr.mxu0 0.0
    %2440 = vmatpush1.msra.mxu0 %v2385
    %2441 = vmatprep.subr.mxu0 0.0
    %2442 = vmatpush1.msra.mxu0 %v2386
    %2443 = vmatprep.subr.mxu0 0.0
    %2444 = vmatpush1.msra.mxu0 0.0
    %2445 = vmatprep.subr.mxu0 0.0
    %2446 = vmatpush1.msra.mxu0 0.0
    %2447 = vmatprep.subr.mxu0 0.0
    %2448 = vmatpush1.msra.mxu0 0.0
    %2449 = vmatprep.subr.mxu0 0.0
    %2450 = vmatpush1.msra.mxu0 0.0
    %2451 = vmatprep.subr.mxu0 0.0
    %2452 = vmatpush1.msra.mxu0 0.0
    %2453 = vmatprep.subr.mxu0 0.0
    %2454 = vmatpush1.msra.mxu0 0.0
    %2455 = vmatprep.subr.mxu0 0.0
    %2456 = vmatpush1.msra.mxu0 0.0
    %2457 = vmatprep.subr.mxu0 0.0
    %2458 = vmatpush1.msra.mxu0 0.0
    %2459 = vmatprep.subr.mxu0 0.0
    %2460 = vmatpush1.msra.mxu0 0.0
    %2461 = vmatprep.subr.mxu0 0.0
    %2462 = vmatpush1.msra.mxu0 0.0
    %2463 = vmatprep.subr.mxu0 0.0
    %2464 = vmatpush1.msra.mxu0 0.0
    %2465 = vmatprep.subr.mxu0 0.0
    %2466 = vmatpush1.msra.mxu0 0.0
    %2467 = vmatprep.subr.mxu0 0.0
    %2468 = vmatpush1.msra.mxu0 0.0
    %2469 = vmatprep.subr.mxu0 0.0
    %2470 = vmatpush1.msra.mxu0 0.0
    %2471 = vmatprep.subr.mxu0 0.0
    %2472 = vmatpush1.msra.mxu0 0.0
    %2473 = vmatprep.subr.mxu0 0.0
    %2474 = vmatpush1.msra.mxu0 0.0
    %2475 = vmatprep.subr.mxu0 0.0
    %2476 = vmatpush1.msra.mxu0 0.0
    %2477 = vmatprep.subr.mxu0 0.0
    %2478 = vmatpush1.msra.mxu0 0.0
    %2479 = vmatprep.subr.mxu0 0.0
    %2480 = vmatpush1.msra.mxu0 0.0
    %2481 = vmatprep.subr.mxu0 0.0
    %2482 = vmatpush1.msra.mxu0 0.0
    %2483 = vmatprep.subr.mxu0 0.0
    %2484 = vmatpush1.msra.mxu0 0.0
    %2485 = vmatprep.subr.mxu0 0.0
    %2486 = vmatpush1.msra.mxu0 0.0
    %2487 = vmatprep.subr.mxu0 0.0
    %2488 = vmatpush1.msra.mxu0 0.0
    %2489 = vmatprep.subr.mxu0 0.0
    %2490 = vmatpush1.msra.mxu0 0.0
    %2491 = vmatprep.mubr.f32.mxu0 0.0
    %2492 = vmatmul.mubr.f32.gmra.mrb[0].mxu0 %v310
    %v2493 = vpop.f32.mrb[0].mxu0
    %v2494 = vadd.f32 0.0, %v2493
    %v2495 = vpop.f32.mrb[0].mxu0
    %2496 = vdwg.mxu0
    %v2497 = vadd.f32 %v2391, %v2494
    %v2498 = vtanh.pop %v2497
    %v2499 = vmul.f32 %v2498, 0.5
    %v2500 = vadd.f32 %v2499, 0.5
    %v2501 = vmul.f32 %v2500, 0.0
    %2503 = vrot.lane.b32.xlu0 %v2498, 64
    %v2504 = vpop.permute.xlu0 %2503
    %v2506 = vmul.f32 %v2500, %v2504
    %2508 = vrot.lane.b32.xlu0 %v2506, 32
    %v2509 = vpop.permute.xlu0 %2508
    %v2511 = vadd.f32 %v2501, %v2509
    %v2512 = vtanh.pop %v2511
    %2514 = vrot.lane.b32.xlu0 %v2512, 64
    %v2515 = vpop.permute.xlu0 %2514
    %v2517 = vmul.f32 %v2500, %v2515
    %2519 = vrot.lane.b32.xlu0 %v2517, 32
    %v2520 = vpop.permute.xlu0 %2519
    %2522 = vrot.lane.b32.xlu0 %v2517, 64
    %v2523 = vpop.permute.xlu0 %2522
    %v2525 = vsel %vm410, %v2520, %v2523
    %v2526 = vmul.f32 %v2525, %v82
    %vm2527 = vcmask 253952
    %2528 = vst.msk [vmem:[#allocation3] sm:$0x1] %vm2527, %v2520
    %vm2529 = vcmask 518402
    %2530 = vst.msk [vmem:[#allocation3 + $0x5] sm:$0x4] %vm2529, %v2523
    %vm2531 = vcmask 254977
    %2532 = vst.msk [vmem:[#allocation3 + $0x7] sm:$0x2] %vm2531, %v2520
    %vm2533 = vcmask 519427
    %2534 = vst.msk [vmem:[#allocation3 + $0xc] sm:$0x8] %vm2533, %v2523
    %v2536 = vsel %vm83, %v2526, 0
    %2538 = vmatprep.subr.mxu0 0.0
    %2539 = vmatpush1.msra.mxu0 %v2379
    %2540 = vmatprep.subr.mxu0 0.0
    %2541 = vmatpush1.msra.mxu0 %v2380
    %2542 = vmatprep.subr.mxu0 0.0
    %2543 = vmatpush1.msra.mxu0 %v2381
    %2544 = vmatprep.subr.mxu0 0.0
    %2545 = vmatpush1.msra.mxu0 %v2382
    %2546 = vmatprep.subr.mxu0 0.0
    %2547 = vmatpush1.msra.mxu0 %v2383
    %2548 = vmatprep.subr.mxu0 0.0
    %2549 = vmatpush1.msra.mxu0 %v2384
    %2550 = vmatprep.subr.mxu0 0.0
    %2551 = vmatpush1.msra.mxu0 %v2385
    %2552 = vmatprep.subr.mxu0 0.0
    %2553 = vmatpush1.msra.mxu0 %v2386
    %2554 = vmatprep.subr.mxu0 0.0
    %2555 = vmatpush1.msra.mxu0 0.0
    %2556 = vmatprep.subr.mxu0 0.0
    %2557 = vmatpush1.msra.mxu0 0.0
    %2558 = vmatprep.subr.mxu0 0.0
    %2559 = vmatpush1.msra.mxu0 0.0
    %2560 = vmatprep.subr.mxu0 0.0
    %2561 = vmatpush1.msra.mxu0 0.0
    %2562 = vmatprep.subr.mxu0 0.0
    %2563 = vmatpush1.msra.mxu0 0.0
    %2564 = vmatprep.subr.mxu0 0.0
    %2565 = vmatpush1.msra.mxu0 0.0
    %2566 = vmatprep.subr.mxu0 0.0
    %2567 = vmatpush1.msra.mxu0 0.0
    %2568 = vmatprep.subr.mxu0 0.0
    %2569 = vmatpush1.msra.mxu0 0.0
    %2570 = vmatprep.subr.mxu0 0.0
    %2571 = vmatpush1.msra.mxu0 0.0
    %2572 = vmatprep.subr.mxu0 0.0
    %2573 = vmatpush1.msra.mxu0 0.0
    %2574 = vmatprep.subr.mxu0 0.0
    %2575 = vmatpush1.msra.mxu0 0.0
    %2576 = vmatprep.subr.mxu0 0.0
    %2577 = vmatpush1.msra.mxu0 0.0
    %2578 = vmatprep.subr.mxu0 0.0
    %2579 = vmatpush1.msra.mxu0 0.0
    %2580 = vmatprep.subr.mxu0 0.0
    %2581 = vmatpush1.msra.mxu0 0.0
    %2582 = vmatprep.subr.mxu0 0.0
    %2583 = vmatpush1.msra.mxu0 0.0
    %2584 = vmatprep.subr.mxu0 0.0
    %2585 = vmatpush1.msra.mxu0 0.0
    %2586 = vmatprep.subr.mxu0 0.0
    %2587 = vmatpush1.msra.mxu0 0.0
    %2588 = vmatprep.subr.mxu0 0.0
    %2589 = vmatpush1.msra.mxu0 0.0
    %2590 = vmatprep.subr.mxu0 0.0
    %2591 = vmatpush1.msra.mxu0 0.0
    %2592 = vmatprep.subr.mxu0 0.0
    %2593 = vmatpush1.msra.mxu0 0.0
    %2594 = vmatprep.subr.mxu0 0.0
    %2595 = vmatpush1.msra.mxu0 0.0
    %2596 = vmatprep.subr.mxu0 0.0
    %2597 = vmatpush1.msra.mxu0 0.0
    %2598 = vmatprep.subr.mxu0 0.0
    %2599 = vmatpush1.msra.mxu0 0.0
    %2600 = vmatprep.subr.mxu0 0.0
    %2601 = vmatpush1.msra.mxu0 0.0
    %2602 = vmatprep.mubr.f32.mxu0 0.0
    %2603 = vmatmul.mubr.f32.gmra.mrb[0].mxu0 %v2536
    %v2604 = vpop.f32.mrb[0].mxu0
    %v2605 = vadd.f32 0.0, %v2604
    %v2606 = vpop.f32.mrb[0].mxu0
    %2607 = vdwg.mxu0
    %v2608 = vadd.f32 %v2396, %v2605
    %v2609 = vtanh.pop %v2608
    %v2610 = vmul.f32 %v2609, 0.5
    %v2611 = vadd.f32 %v2610, 0.5
    %v2612 = vmul.f32 %v2611, %v2511
    %2614 = vrot.lane.b32.xlu0 %v2609, 64
    %v2615 = vpop.permute.xlu0 %2614
    %v2617 = vmul.f32 %v2611, %v2615
    %2619 = vrot.lane.b32.xlu0 %v2617, 32
    %v2620 = vpop.permute.xlu0 %2619
    %v2622 = vadd.f32 %v2612, %v2620
    %v2623 = vtanh.pop %v2622
    %2625 = vrot.lane.b32.xlu0 %v2623, 64
    %v2626 = vpop.permute.xlu0 %2625
    %v2628 = vmul.f32 %v2611, %v2626
    %2630 = vrot.lane.b32.xlu0 %v2628, 32
    %v2631 = vpop.permute.xlu0 %2630
    %2633 = vrot.lane.b32.xlu0 %v2628, 64
    %v2634 = vpop.permute.xlu0 %2633
    %v2636 = vsel %vm410, %v2631, %v2634
    %v2637 = vmul.f32 %v2636, %v82
    %2638 = vst.msk [vmem:[#allocation3 + $0x1] sm:$0x1] %vm2527, %v2631
    %2639 = vst.msk [vmem:[#allocation3 + $0x4] sm:$0x4] %vm2529, %v2634
    %2640 = vst.msk [vmem:[#allocation3 + $0x8] sm:$0x2] %vm2531, %v2631
    %2641 = vst.msk [vmem:[#allocation3 + $0xb] sm:$0x8] %vm2533, %v2634
    %v2643 = vsel %vm83, %v2637, 0
    %2645 = vmatprep.subr.mxu0 0.0
    %2646 = vmatpush1.msra.mxu0 %v2379
    %2647 = vmatprep.subr.mxu0 0.0
    %2648 = vmatpush1.msra.mxu0 %v2380
    %2649 = vmatprep.subr.mxu0 0.0
    %2650 = vmatpush1.msra.mxu0 %v2381
    %2651 = vmatprep.subr.mxu0 0.0
    %2652 = vmatpush1.msra.mxu0 %v2382
    %2653 = vmatprep.subr.mxu0 0.0
    %2654 = vmatpush1.msra.mxu0 %v2383
    %2655 = vmatprep.subr.mxu0 0.0
    %2656 = vmatpush1.msra.mxu0 %v2384
    %2657 = vmatprep.subr.mxu0 0.0
    %2658 = vmatpush1.msra.mxu0 %v2385
    %2659 = vmatprep.subr.mxu0 0.0
    %2660 = vmatpush1.msra.mxu0 %v2386
    %2661 = vmatprep.subr.mxu0 0.0
    %2662 = vmatpush1.msra.mxu0 0.0
    %2663 = vmatprep.subr.mxu0 0.0
    %2664 = vmatpush1.msra.mxu0 0.0
    %2665 = vmatprep.subr.mxu0 0.0
    %2666 = vmatpush1.msra.mxu0 0.0
    %2667 = vmatprep.subr.mxu0 0.0
    %2668 = vmatpush1.msra.mxu0 0.0
    %2669 = vmatprep.subr.mxu0 0.0
    %2670 = vmatpush1.msra.mxu0 0.0
    %2671 = vmatprep.subr.mxu0 0.0
    %2672 = vmatpush1.msra.mxu0 0.0
    %2673 = vmatprep.subr.mxu0 0.0
    %2674 = vmatpush1.msra.mxu0 0.0
    %2675 = vmatprep.subr.mxu0 0.0
    %2676 = vmatpush1.msra.mxu0 0.0
    %2677 = vmatprep.subr.mxu0 0.0
    %2678 = vmatpush1.msra.mxu0 0.0
    %2679 = vmatprep.subr.mxu0 0.0
    %2680 = vmatpush1.msra.mxu0 0.0
    %2681 = vmatprep.subr.mxu0 0.0
    %2682 = vmatpush1.msra.mxu0 0.0
    %2683 = vmatprep.subr.mxu0 0.0
    %2684 = vmatpush1.msra.mxu0 0.0
    %2685 = vmatprep.subr.mxu0 0.0
    %2686 = vmatpush1.msra.mxu0 0.0
    %2687 = vmatprep.subr.mxu0 0.0
    %2688 = vmatpush1.msra.mxu0 0.0
    %2689 = vmatprep.subr.mxu0 0.0
    %2690 = vmatpush1.msra.mxu0 0.0
    %2691 = vmatprep.subr.mxu0 0.0
    %2692 = vmatpush1.msra.mxu0 0.0
    %2693 = vmatprep.subr.mxu0 0.0
    %2694 = vmatpush1.msra.mxu0 0.0
    %2695 = vmatprep.subr.mxu0 0.0
    %2696 = vmatpush1.msra.mxu0 0.0
    %2697 = vmatprep.subr.mxu0 0.0
    %2698 = vmatpush1.msra.mxu0 0.0
    %2699 = vmatprep.subr.mxu0 0.0
    %2700 = vmatpush1.msra.mxu0 0.0
    %2701 = vmatprep.subr.mxu0 0.0
    %2702 = vmatpush1.msra.mxu0 0.0
    %2703 = vmatprep.subr.mxu0 0.0
    %2704 = vmatpush1.msra.mxu0 0.0
    %2705 = vmatprep.subr.mxu0 0.0
    %2706 = vmatpush1.msra.mxu0 0.0
    %2707 = vmatprep.subr.mxu0 0.0
    %2708 = vmatpush1.msra.mxu0 0.0
    %2709 = vmatprep.mubr.f32.mxu0 0.0
    %2710 = vmatmul.mubr.f32.gmra.mrb[0].mxu0 %v2643
    %v2711 = vpop.f32.mrb[0].mxu0
    %v2712 = vadd.f32 0.0, %v2711
    %v2713 = vpop.f32.mrb[0].mxu0
    %2714 = vdwg.mxu0
    %v2715 = vadd.f32 %v2401, %v2712
    %v2716 = vtanh.pop %v2715
    %v2717 = vmul.f32 %v2716, 0.5
    %v2718 = vadd.f32 %v2717, 0.5
    %v2719 = vmul.f32 %v2718, %v2622
    %2721 = vrot.lane.b32.xlu0 %v2716, 64
    %v2722 = vpop.permute.xlu0 %2721
    %v2724 = vmul.f32 %v2718, %v2722
    %2726 = vrot.lane.b32.xlu0 %v2724, 32
    %v2727 = vpop.permute.xlu0 %2726
    %v2729 = vadd.f32 %v2719, %v2727
    %v2730 = vtanh.pop %v2729
    %2732 = vrot.lane.b32.xlu0 %v2730, 64
    %v2733 = vpop.permute.xlu0 %2732
    %v2735 = vmul.f32 %v2718, %v2733
    %2737 = vrot.lane.b32.xlu0 %v2735, 32
    %v2738 = vpop.permute.xlu0 %2737
    %2740 = vrot.lane.b32.xlu0 %v2735, 64
    %v2741 = vpop.permute.xlu0 %2740
    %v2743 = vsel %vm410, %v2738, %v2741
    %v2744 = vmul.f32 %v2743, %v82
    %2745 = vst.msk [vmem:[#allocation3 + $0x2] sm:$0x1] %vm2527, %v2738
    %2746 = vst.msk [vmem:[#allocation3 + $0x3] sm:$0x4] %vm2529, %v2741
    %2747 = vst.msk [vmem:[#allocation3 + $0x9] sm:$0x2] %vm2531, %v2738
    %2748 = vst.msk [vmem:[#allocation3 + $0xa] sm:$0x8] %vm2533, %v2741
    %v2750 = vsel %vm83, %v2744, 0
    %2752 = vmatprep.subr.mxu0 0.0
    %2753 = vmatpush1.msra.mxu0 %v2379
    %2754 = vmatprep.subr.mxu0 0.0
    %2755 = vmatpush1.msra.mxu0 %v2380
    %2756 = vmatprep.subr.mxu0 0.0
    %2757 = vmatpush1.msra.mxu0 %v2381
    %2758 = vmatprep.subr.mxu0 0.0
    %2759 = vmatpush1.msra.mxu0 %v2382
    %2760 = vmatprep.subr.mxu0 0.0
    %2761 = vmatpush1.msra.mxu0 %v2383
    %2762 = vmatprep.subr.mxu0 0.0
    %2763 = vmatpush1.msra.mxu0 %v2384
    %2764 = vmatprep.subr.mxu0 0.0
    %2765 = vmatpush1.msra.mxu0 %v2385
    %2766 = vmatprep.subr.mxu0 0.0
    %2767 = vmatpush1.msra.mxu0 %v2386
    %2768 = vmatprep.subr.mxu0 0.0
    %2769 = vmatpush1.msra.mxu0 0.0
    %2770 = vmatprep.subr.mxu0 0.0
    %2771 = vmatpush1.msra.mxu0 0.0
    %2772 = vmatprep.subr.mxu0 0.0
    %2773 = vmatpush1.msra.mxu0 0.0
    %2774 = vmatprep.subr.mxu0 0.0
    %2775 = vmatpush1.msra.mxu0 0.0
    %2776 = vmatprep.subr.mxu0 0.0
    %2777 = vmatpush1.msra.mxu0 0.0
    %2778 = vmatprep.subr.mxu0 0.0
    %2779 = vmatpush1.msra.mxu0 0.0
    %2780 = vmatprep.subr.mxu0 0.0
    %2781 = vmatpush1.msra.mxu0 0.0
    %2782 = vmatprep.subr.mxu0 0.0
    %2783 = vmatpush1.msra.mxu0 0.0
    %2784 = vmatprep.subr.mxu0 0.0
    %2785 = vmatpush1.msra.mxu0 0.0
    %2786 = vmatprep.subr.mxu0 0.0
    %2787 = vmatpush1.msra.mxu0 0.0
    %2788 = vmatprep.subr.mxu0 0.0
    %2789 = vmatpush1.msra.mxu0 0.0
    %2790 = vmatprep.subr.mxu0 0.0
    %2791 = vmatpush1.msra.mxu0 0.0
    %2792 = vmatprep.subr.mxu0 0.0
    %2793 = vmatpush1.msra.mxu0 0.0
    %2794 = vmatprep.subr.mxu0 0.0
    %2795 = vmatpush1.msra.mxu0 0.0
    %2796 = vmatprep.subr.mxu0 0.0
    %2797 = vmatpush1.msra.mxu0 0.0
    %2798 = vmatprep.subr.mxu0 0.0
    %2799 = vmatpush1.msra.mxu0 0.0
    %2800 = vmatprep.subr.mxu0 0.0
    %2801 = vmatpush1.msra.mxu0 0.0
    %2802 = vmatprep.subr.mxu0 0.0
    %2803 = vmatpush1.msra.mxu0 0.0
    %2804 = vmatprep.subr.mxu0 0.0
    %2805 = vmatpush1.msra.mxu0 0.0
    %2806 = vmatprep.subr.mxu0 0.0
    %2807 = vmatpush1.msra.mxu0 0.0
    %2808 = vmatprep.subr.mxu0 0.0
    %2809 = vmatpush1.msra.mxu0 0.0
    %2810 = vmatprep.subr.mxu0 0.0
    %2811 = vmatpush1.msra.mxu0 0.0
    %2812 = vmatprep.subr.mxu0 0.0
    %2813 = vmatpush1.msra.mxu0 0.0
    %2814 = vmatprep.subr.mxu0 0.0
    %2815 = vmatpush1.msra.mxu0 0.0
    %2816 = vmatprep.mubr.f32.mxu0 0.0
    %2817 = vmatmul.mubr.f32.gmra.mrb[0].mxu0 %v2750
    %v2818 = vpop.f32.mrb[0].mxu0
    %v2819 = vadd.f32 0.0, %v2818
    %v2820 = vpop.f32.mrb[0].mxu0
    %2821 = vdwg.mxu0
    %v2822 = vadd.f32 %v2406, %v2819
    %v2823 = vtanh.pop %v2822
    %v2824 = vmul.f32 %v2823, 0.5
    %v2825 = vadd.f32 %v2824, 0.5
    %v2826 = vmul.f32 %v2825, %v2729
    %2828 = vrot.lane.b32.xlu0 %v2823, 64
    %v2829 = vpop.permute.xlu0 %2828
    %v2831 = vmul.f32 %v2825, %v2829
    %2833 = vrot.lane.b32.xlu0 %v2831, 32
    %v2834 = vpop.permute.xlu0 %2833
    %v2836 = vadd.f32 %v2826, %v2834
    %v2837 = vtanh.pop %v2836
    %2839 = vrot.lane.b32.xlu0 %v2837, 64
    %v2840 = vpop.permute.xlu0 %2839
    %v2842 = vmul.f32 %v2825, %v2840
    %2844 = vrot.lane.b32.xlu0 %v2842, 32
    %v2845 = vpop.permute.xlu0 %2844
    %2847 = vrot.lane.b32.xlu0 %v2842, 64
    %v2848 = vpop.permute.xlu0 %2847
    %v2850 = vsel %vm410, %v2845, %v2848
    %v2851 = vmul.f32 %v2850, %v82
    %2852 = vst.msk [vmem:[#allocation3 + $0x3] sm:$0x1] %vm2527, %v2845
    %2853 = vst.msk [vmem:[#allocation3 + $0x2] sm:$0x4] %vm2529, %v2848
    %2854 = vst.msk [vmem:[#allocation3 + $0xa] sm:$0x2] %vm2531, %v2845
    %2855 = vst.msk [vmem:[#allocation3 + $0x9] sm:$0x8] %vm2533, %v2848
    %v2857 = vsel %vm83, %v2851, 0
    %2859 = vmatprep.subr.mxu0 0.0
    %2860 = vmatpush1.msra.mxu0 %v2379
    %2861 = vmatprep.subr.mxu0 0.0
    %2862 = vmatpush1.msra.mxu0 %v2380
    %2863 = vmatprep.subr.mxu0 0.0
    %2864 = vmatpush1.msra.mxu0 %v2381
    %2865 = vmatprep.subr.mxu0 0.0
    %2866 = vmatpush1.msra.mxu0 %v2382
    %2867 = vmatprep.subr.mxu0 0.0
    %2868 = vmatpush1.msra.mxu0 %v2383
    %2869 = vmatprep.subr.mxu0 0.0
    %2870 = vmatpush1.msra.mxu0 %v2384
    %2871 = vmatprep.subr.mxu0 0.0
    %2872 = vmatpush1.msra.mxu0 %v2385
    %2873 = vmatprep.subr.mxu0 0.0
    %2874 = vmatpush1.msra.mxu0 %v2386
    %2875 = vmatprep.subr.mxu0 0.0
    %2876 = vmatpush1.msra.mxu0 0.0
    %2877 = vmatprep.subr.mxu0 0.0
    %2878 = vmatpush1.msra.mxu0 0.0
    %2879 = vmatprep.subr.mxu0 0.0
    %2880 = vmatpush1.msra.mxu0 0.0
    %2881 = vmatprep.subr.mxu0 0.0
    %2882 = vmatpush1.msra.mxu0 0.0
    %2883 = vmatprep.subr.mxu0 0.0
    %2884 = vmatpush1.msra.mxu0 0.0
    %2885 = vmatprep.subr.mxu0 0.0
    %2886 = vmatpush1.msra.mxu0 0.0
    %2887 = vmatprep.subr.mxu0 0.0
    %2888 = vmatpush1.msra.mxu0 0.0
    %2889 = vmatprep.subr.mxu0 0.0
    %2890 = vmatpush1.msra.mxu0 0.0
    %2891 = vmatprep.subr.mxu0 0.0
    %2892 = vmatpush1.msra.mxu0 0.0
    %2893 = vmatprep.subr.mxu0 0.0
    %2894 = vmatpush1.msra.mxu0 0.0
    %2895 = vmatprep.subr.mxu0 0.0
    %2896 = vmatpush1.msra.mxu0 0.0
    %2897 = vmatprep.subr.mxu0 0.0
    %2898 = vmatpush1.msra.mxu0 0.0
    %2899 = vmatprep.subr.mxu0 0.0
    %2900 = vmatpush1.msra.mxu0 0.0
    %2901 = vmatprep.subr.mxu0 0.0
    %2902 = vmatpush1.msra.mxu0 0.0
    %2903 = vmatprep.subr.mxu0 0.0
    %2904 = vmatpush1.msra.mxu0 0.0
    %2905 = vmatprep.subr.mxu0 0.0
    %2906 = vmatpush1.msra.mxu0 0.0
    %2907 = vmatprep.subr.mxu0 0.0
    %2908 = vmatpush1.msra.mxu0 0.0
    %2909 = vmatprep.subr.mxu0 0.0
    %2910 = vmatpush1.msra.mxu0 0.0
    %2911 = vmatprep.subr.mxu0 0.0
    %2912 = vmatpush1.msra.mxu0 0.0
    %2913 = vmatprep.subr.mxu0 0.0
    %2914 = vmatpush1.msra.mxu0 0.0
    %2915 = vmatprep.subr.mxu0 0.0
    %2916 = vmatpush1.msra.mxu0 0.0
    %2917 = vmatprep.subr.mxu0 0.0
    %2918 = vmatpush1.msra.mxu0 0.0
    %2919 = vmatprep.subr.mxu0 0.0
    %2920 = vmatpush1.msra.mxu0 0.0
    %2921 = vmatprep.subr.mxu0 0.0
    %2922 = vmatpush1.msra.mxu0 0.0
    %2923 = vmatprep.mubr.f32.mxu0 0.0
    %2924 = vmatmul.mubr.f32.gmra.mrb[0].mxu0 %v2857
    %v2925 = vpop.f32.mrb[0].mxu0
    %v2926 = vadd.f32 0.0, %v2925
    %v2927 = vpop.f32.mrb[0].mxu0
    %2928 = vdwg.mxu0
    %v2929 = vadd.f32 %v2411, %v2926
    %v2930 = vtanh.pop %v2929
    %v2931 = vmul.f32 %v2930, 0.5
    %v2932 = vadd.f32 %v2931, 0.5
    %v2933 = vmul.f32 %v2932, %v2836
    %2935 = vrot.lane.b32.xlu0 %v2930, 64
    %v2936 = vpop.permute.xlu0 %2935
    %v2938 = vmul.f32 %v2932, %v2936
    %2940 = vrot.lane.b32.xlu0 %v2938, 32
    %v2941 = vpop.permute.xlu0 %2940
    %v2943 = vadd.f32 %v2933, %v2941
    %v2944 = vtanh.pop %v2943
    %2946 = vrot.lane.b32.xlu0 %v2944, 64
    %v2947 = vpop.permute.xlu0 %2946
    %v2949 = vmul.f32 %v2932, %v2947
    %2951 = vrot.lane.b32.xlu0 %v2949, 32
    %v2952 = vpop.permute.xlu0 %2951
    %2954 = vrot.lane.b32.xlu0 %v2949, 64
    %v2955 = vpop.permute.xlu0 %2954
    %v2957 = vsel %vm410, %v2952, %v2955
    %v2958 = vmul.f32 %v2957, %v82
    %2959 = vst.msk [vmem:[#allocation3 + $0x4] sm:$0x1] %vm2527, %v2952
    %2960 = vst.msk [vmem:[#allocation3 + $0x1] sm:$0x4] %vm2529, %v2955
    %2961 = vst.msk [vmem:[#allocation3 + $0xb] sm:$0x2] %vm2531, %v2952
    %2962 = vst.msk [vmem:[#allocation3 + $0x8] sm:$0x8] %vm2533, %v2955
    %v2964 = vsel %vm83, %v2958, 0
    %2966 = vmatprep.subr.mxu0 0.0
    %2967 = vmatpush1.msra.mxu0 %v2379
    %2968 = vmatprep.subr.mxu0 0.0
    %2969 = vmatpush1.msra.mxu0 %v2380
    %2970 = vmatprep.subr.mxu0 0.0
    %2971 = vmatpush1.msra.mxu0 %v2381
    %2972 = vmatprep.subr.mxu0 0.0
    %2973 = vmatpush1.msra.mxu0 %v2382
    %2974 = vmatprep.subr.mxu0 0.0
    %2975 = vmatpush1.msra.mxu0 %v2383
    %2976 = vmatprep.subr.mxu0 0.0
    %2977 = vmatpush1.msra.mxu0 %v2384
    %2978 = vmatprep.subr.mxu0 0.0
    %2979 = vmatpush1.msra.mxu0 %v2385
    %2980 = vmatprep.subr.mxu0 0.0
    %2981 = vmatpush1.msra.mxu0 %v2386
    %2982 = vmatprep.subr.mxu0 0.0
    %2983 = vmatpush1.msra.mxu0 0.0
    %2984 = vmatprep.subr.mxu0 0.0
    %2985 = vmatpush1.msra.mxu0 0.0
    %2986 = vmatprep.subr.mxu0 0.0
    %2987 = vmatpush1.msra.mxu0 0.0
    %2988 = vmatprep.subr.mxu0 0.0
    %2989 = vmatpush1.msra.mxu0 0.0
    %2990 = vmatprep.subr.mxu0 0.0
    %2991 = vmatpush1.msra.mxu0 0.0
    %2992 = vmatprep.subr.mxu0 0.0
    %2993 = vmatpush1.msra.mxu0 0.0
    %2994 = vmatprep.subr.mxu0 0.0
    %2995 = vmatpush1.msra.mxu0 0.0
    %2996 = vmatprep.subr.mxu0 0.0
    %2997 = vmatpush1.msra.mxu0 0.0
    %2998 = vmatprep.subr.mxu0 0.0
    %2999 = vmatpush1.msra.mxu0 0.0
    %3000 = vmatprep.subr.mxu0 0.0
    %3001 = vmatpush1.msra.mxu0 0.0
    %3002 = vmatprep.subr.mxu0 0.0
    %3003 = vmatpush1.msra.mxu0 0.0
    %3004 = vmatprep.subr.mxu0 0.0
    %3005 = vmatpush1.msra.mxu0 0.0
    %3006 = vmatprep.subr.mxu0 0.0
    %3007 = vmatpush1.msra.mxu0 0.0
    %3008 = vmatprep.subr.mxu0 0.0
    %3009 = vmatpush1.msra.mxu0 0.0
    %3010 = vmatprep.subr.mxu0 0.0
    %3011 = vmatpush1.msra.mxu0 0.0
    %3012 = vmatprep.subr.mxu0 0.0
    %3013 = vmatpush1.msra.mxu0 0.0
    %3014 = vmatprep.subr.mxu0 0.0
    %3015 = vmatpush1.msra.mxu0 0.0
    %3016 = vmatprep.subr.mxu0 0.0
    %3017 = vmatpush1.msra.mxu0 0.0
    %3018 = vmatprep.subr.mxu0 0.0
    %3019 = vmatpush1.msra.mxu0 0.0
    %3020 = vmatprep.subr.mxu0 0.0
    %3021 = vmatpush1.msra.mxu0 0.0
    %3022 = vmatprep.subr.mxu0 0.0
    %3023 = vmatpush1.msra.mxu0 0.0
    %3024 = vmatprep.subr.mxu0 0.0
    %3025 = vmatpush1.msra.mxu0 0.0
    %3026 = vmatprep.subr.mxu0 0.0
    %3027 = vmatpush1.msra.mxu0 0.0
    %3028 = vmatprep.subr.mxu0 0.0
    %3029 = vmatpush1.msra.mxu0 0.0
    %3030 = vmatprep.mubr.f32.mxu0 0.0
    %3031 = vmatmul.mubr.f32.gmra.mrb[0].mxu0 %v2964
    %v3032 = vpop.f32.mrb[0].mxu0
    %v3033 = vadd.f32 0.0, %v3032
    %v3034 = vpop.f32.mrb[0].mxu0
    %3035 = vdwg.mxu0
    %v3036 = vadd.f32 %v2416, %v3033
    %v3037 = vtanh.pop %v3036
    %v3038 = vmul.f32 %v3037, 0.5
    %v3039 = vadd.f32 %v3038, 0.5
    %v3040 = vmul.f32 %v3039, %v2943
    %3042 = vrot.lane.b32.xlu0 %v3037, 64
    %v3043 = vpop.permute.xlu0 %3042
    %v3045 = vmul.f32 %v3039, %v3043
    %3047 = vrot.lane.b32.xlu0 %v3045, 32
    %v3048 = vpop.permute.xlu0 %3047
    %v3050 = vadd.f32 %v3040, %v3048
    %v3051 = vtanh.pop %v3050
    %3053 = vrot.lane.b32.xlu0 %v3051, 64
    %v3054 = vpop.permute.xlu0 %3053
    %v3056 = vmul.f32 %v3039, %v3054
    %3058 = vrot.lane.b32.xlu0 %v3056, 32
    %v3059 = vpop.permute.xlu0 %3058
    %3061 = vrot.lane.b32.xlu0 %v3056, 64
    %v3062 = vpop.permute.xlu0 %3061
    %v3064 = vsel %vm410, %v3059, %v3062
    %v3065 = vmul.f32 %v3064, %v82
    %3066 = vst.msk [vmem:[#allocation3 + $0x5] sm:$0x1] %vm2527, %v3059
    %3067 = vst.msk [vmem:[#allocation3] sm:$0x4] %vm2529, %v3062
    %3068 = vst.msk [vmem:[#allocation3 + $0xc] sm:$0x2] %vm2531, %v3059
    %3069 = vst.msk [vmem:[#allocation3 + $0x7] sm:$0x8] %vm2533, %v3062
    %v3071 = vsel %vm83, %v3065, 0
    %3073 = vmatprep.subr.mxu0 0.0
    %3074 = vmatpush1.msra.mxu0 %v2379
    %3075 = vmatprep.subr.mxu0 0.0
    %3076 = vmatpush1.msra.mxu0 %v2380
    %3077 = vmatprep.subr.mxu0 0.0
    %3078 = vmatpush1.msra.mxu0 %v2381
    %3079 = vmatprep.subr.mxu0 0.0
    %3080 = vmatpush1.msra.mxu0 %v2382
    %3081 = vmatprep.subr.mxu0 0.0
    %3082 = vmatpush1.msra.mxu0 %v2383
    %3083 = vmatprep.subr.mxu0 0.0
    %3084 = vmatpush1.msra.mxu0 %v2384
    %3085 = vmatprep.subr.mxu0 0.0
    %3086 = vmatpush1.msra.mxu0 %v2385
    %3087 = vmatprep.subr.mxu0 0.0
    %3088 = vmatpush1.msra.mxu0 %v2386
    %3089 = vmatprep.subr.mxu0 0.0
    %3090 = vmatpush1.msra.mxu0 0.0
    %3091 = vmatprep.subr.mxu0 0.0
    %3092 = vmatpush1.msra.mxu0 0.0
    %3093 = vmatprep.subr.mxu0 0.0
    %3094 = vmatpush1.msra.mxu0 0.0
    %3095 = vmatprep.subr.mxu0 0.0
    %3096 = vmatpush1.msra.mxu0 0.0
    %3097 = vmatprep.subr.mxu0 0.0
    %3098 = vmatpush1.msra.mxu0 0.0
    %3099 = vmatprep.subr.mxu0 0.0
    %3100 = vmatpush1.msra.mxu0 0.0
    %3101 = vmatprep.subr.mxu0 0.0
    %3102 = vmatpush1.msra.mxu0 0.0
    %3103 = vmatprep.subr.mxu0 0.0
    %3104 = vmatpush1.msra.mxu0 0.0
    %3105 = vmatprep.subr.mxu0 0.0
    %3106 = vmatpush1.msra.mxu0 0.0
    %3107 = vmatprep.subr.mxu0 0.0
    %3108 = vmatpush1.msra.mxu0 0.0
    %3109 = vmatprep.subr.mxu0 0.0
    %3110 = vmatpush1.msra.mxu0 0.0
    %3111 = vmatprep.subr.mxu0 0.0
    %3112 = vmatpush1.msra.mxu0 0.0
    %3113 = vmatprep.subr.mxu0 0.0
    %3114 = vmatpush1.msra.mxu0 0.0
    %3115 = vmatprep.subr.mxu0 0.0
    %3116 = vmatpush1.msra.mxu0 0.0
    %3117 = vmatprep.subr.mxu0 0.0
    %3118 = vmatpush1.msra.mxu0 0.0
    %3119 = vmatprep.subr.mxu0 0.0
    %3120 = vmatpush1.msra.mxu0 0.0
    %3121 = vmatprep.subr.mxu0 0.0
    %3122 = vmatpush1.msra.mxu0 0.0
    %3123 = vmatprep.subr.mxu0 0.0
    %3124 = vmatpush1.msra.mxu0 0.0
    %3125 = vmatprep.subr.mxu0 0.0
    %3126 = vmatpush1.msra.mxu0 0.0
    %3127 = vmatprep.subr.mxu0 0.0
    %3128 = vmatpush1.msra.mxu0 0.0
    %3129 = vmatprep.subr.mxu0 0.0
    %3130 = vmatpush1.msra.mxu0 0.0
    %3131 = vmatprep.subr.mxu0 0.0
    %3132 = vmatpush1.msra.mxu0 0.0
    %3133 = vmatprep.subr.mxu0 0.0
    %3134 = vmatpush1.msra.mxu0 0.0
    %3135 = vmatprep.subr.mxu0 0.0
    %3136 = vmatpush1.msra.mxu0 0.0
    %3137 = vmatprep.mubr.f32.mxu0 0.0
    %3138 = vmatmul.mubr.f32.gmra.mrb[0].mxu0 %v3071
    %v3139 = vpop.f32.mrb[0].mxu0
    %v3140 = vadd.f32 0.0, %v3139
    %v3141 = vpop.f32.mrb[0].mxu0
    %3142 = vdwg.mxu0
    %v3143 = vadd.f32 %v2421, %v3140
    %v3144 = vtanh.pop %v3143
    %v3145 = vmul.f32 %v3144, 0.5
    %v3146 = vadd.f32 %v3145, 0.5
    %v3147 = vmul.f32 %v3146, %v3050
    %3149 = vrot.lane.b32.xlu0 %v3144, 64
    %v3150 = vpop.permute.xlu0 %3149
    %v3152 = vmul.f32 %v3146, %v3150
    %3154 = vrot.lane.b32.xlu0 %v3152, 32
    %v3155 = vpop.permute.xlu0 %3154
    %v3157 = vadd.f32 %v3147, %v3155
    %v3158 = vtanh.pop %v3157
    %3160 = vrot.lane.b32.xlu0 %v3158, 64
    %v3161 = vpop.permute.xlu0 %3160
    %v3163 = vmul.f32 %v3146, %v3161
    %3165 = vrot.lane.b32.xlu0 %v3163, 32
    %v3166 = vpop.permute.xlu0 %3165
    %3168 = vrot.lane.b32.xlu0 %v3163, 64
    %v3169 = vpop.permute.xlu0 %3168
    %v3171 = vsel %vm410, %v3166, %v3169
    %v3172 = vmul.f32 %v3171, %v82
    %3173 = vst.msk [vmem:[#allocation3 + $0x6] sm:$0x1] %vm2527, %v3166
    %3174 = vst.msk [vmem:[#allocation3 - $0x1] sm:$0x4] %vm2529, %v3169
    %3175 = vst.msk [vmem:[#allocation3 + $0xd] sm:$0x2] %vm2531, %v3166
    %3176 = vst.msk [vmem:[#allocation3 + $0x6] sm:$0x8] %vm2533, %v3169
    %v3178 = vsel %vm83, %v3172, 0
    %3180 = vmatprep.subr.mxu0 0.0
    %3181 = vmatpush1.msra.mxu0 %v2379
    %3182 = vmatprep.subr.mxu0 0.0
    %3183 = vmatpush1.msra.mxu0 %v2380
    %3184 = vmatprep.subr.mxu0 0.0
    %3185 = vmatpush1.msra.mxu0 %v2381
    %3186 = vmatprep.subr.mxu0 0.0
    %3187 = vmatpush1.msra.mxu0 %v2382
    %3188 = vmatprep.subr.mxu0 0.0
    %3189 = vmatpush1.msra.mxu0 %v2383
    %3190 = vmatprep.subr.mxu0 0.0
    %3191 = vmatpush1.msra.mxu0 %v2384
    %3192 = vmatprep.subr.mxu0 0.0
    %3193 = vmatpush1.msra.mxu0 %v2385
    %3194 = vmatprep.subr.mxu0 0.0
    %3195 = vmatpush1.msra.mxu0 %v2386
    %3196 = vmatprep.subr.mxu0 0.0
    %3197 = vmatpush1.msra.mxu0 0.0
    %3198 = vmatprep.subr.mxu0 0.0
    %3199 = vmatpush1.msra.mxu0 0.0
    %3200 = vmatprep.subr.mxu0 0.0
    %3201 = vmatpush1.msra.mxu0 0.0
    %3202 = vmatprep.subr.mxu0 0.0
    %3203 = vmatpush1.msra.mxu0 0.0
    %3204 = vmatprep.subr.mxu0 0.0
    %3205 = vmatpush1.msra.mxu0 0.0
    %3206 = vmatprep.subr.mxu0 0.0
    %3207 = vmatpush1.msra.mxu0 0.0
    %3208 = vmatprep.subr.mxu0 0.0
    %3209 = vmatpush1.msra.mxu0 0.0
    %3210 = vmatprep.subr.mxu0 0.0
    %3211 = vmatpush1.msra.mxu0 0.0
    %3212 = vmatprep.subr.mxu0 0.0
    %3213 = vmatpush1.msra.mxu0 0.0
    %3214 = vmatprep.subr.mxu0 0.0
    %3215 = vmatpush1.msra.mxu0 0.0
    %3216 = vmatprep.subr.mxu0 0.0
    %3217 = vmatpush1.msra.mxu0 0.0
    %3218 = vmatprep.subr.mxu0 0.0
    %3219 = vmatpush1.msra.mxu0 0.0
    %3220 = vmatprep.subr.mxu0 0.0
    %3221 = vmatpush1.msra.mxu0 0.0
    %3222 = vmatprep.subr.mxu0 0.0
    %3223 = vmatpush1.msra.mxu0 0.0
    %3224 = vmatprep.subr.mxu0 0.0
    %3225 = vmatpush1.msra.mxu0 0.0
    %3226 = vmatprep.subr.mxu0 0.0
    %3227 = vmatpush1.msra.mxu0 0.0
    %3228 = vmatprep.subr.mxu0 0.0
    %3229 = vmatpush1.msra.mxu0 0.0
    %3230 = vmatprep.subr.mxu0 0.0
    %3231 = vmatpush1.msra.mxu0 0.0
    %3232 = vmatprep.subr.mxu0 0.0
    %3233 = vmatpush1.msra.mxu0 0.0
    %3234 = vmatprep.subr.mxu0 0.0
    %3235 = vmatpush1.msra.mxu0 0.0
    %3236 = vmatprep.subr.mxu0 0.0
    %3237 = vmatpush1.msra.mxu0 0.0
    %3238 = vmatprep.subr.mxu0 0.0
    %3239 = vmatpush1.msra.mxu0 0.0
    %3240 = vmatprep.subr.mxu0 0.0
    %3241 = vmatpush1.msra.mxu0 0.0
    %3242 = vmatprep.subr.mxu0 0.0
    %3243 = vmatpush1.msra.mxu0 0.0
    %3244 = vmatprep.mubr.f32.mxu0 0.0
    %3245 = vmatmul.mubr.f32.gmra.mrb[0].mxu0 %v3178
    %v3246 = vpop.f32.mrb[0].mxu0
    %v3247 = vadd.f32 0.0, %v3246
    %v3248 = vpop.f32.mrb[0].mxu0
    %3249 = vdwg.mxu0
    %v3250 = vadd.f32 %v2426, %v3247
    %v3251 = vtanh.pop %v3250
    %v3252 = vmul.f32 %v3251, 0.5
    %v3253 = vadd.f32 %v3252, 0.5
    %v3254 = vmul.f32 %v3253, %v3157
    %3256 = vrot.lane.b32.xlu0 %v3251, 64
    %v3257 = vpop.permute.xlu0 %3256
    %v3259 = vmul.f32 %v3253, %v3257
    %3261 = vrot.lane.b32.xlu0 %v3259, 32
    %v3262 = vpop.permute.xlu0 %3261
    %v3264 = vadd.f32 %v3254, %v3262
    %v3265 = vtanh.pop %v3264
    %3267 = vrot.lane.b32.xlu0 %v3265, 64
    %v3268 = vpop.permute.xlu0 %3267
    %v3270 = vmul.f32 %v3253, %v3268
    %3272 = vrot.lane.b32.xlu0 %v3270, 32
    %v3273 = vpop.permute.xlu0 %3272
    %3275 = vst.msk [vmem:[#allocation3 + $0x7] sm:$0x1] %vm2527, %v3273
    %3276 = vrot.lane.b32.xlu0 %v3270, 64
    %v3277 = vpop.permute.xlu0 %3276
    %3279 = vst.msk [vmem:[#allocation3 - $0x2] sm:$0x4] %vm2529, %v3277
    %3280 = vst.msk [vmem:[#allocation3 + $0xe] sm:$0x2] %vm2531, %v3273
    %3281 = vst.msk [vmem:[#allocation3 + $0x5] sm:$0x8] %vm2533, %v3277
    %v3282 = vld [vmem:[#allocation3] sm:$0xff]
    %v3283 = vld [vmem:[#allocation3 + $0x8] sm:$0xff]
    %v3284 = vsel %vm83, %v3282, 0.0
    %3285 = vadd.xlane.f32.xlu0 %v3284
    %v3286 = vpop.xlane.xlu0 %3285
    %v3287 = vsel %vm83, %v3283, 0.0
    %3288 = vadd.xlane.f32.xlu0 %v3287
    %v3289 = vpop.xlane.xlu0 %3288
    %v3290 = vrcp.pop 64.0
    %v3291 = vmul.f32 %v3286, %v3290
    %v3292 = vmul.f32 %v3289, %v3290
    %v3293 = vsub.f32 %v3282, %v3291
    %v3294 = vsub.f32 %v3283, %v3292
    %v3295 = vmul.f32 %v3293, %v3293
    %v3296 = vmul.f32 %v3294, %v3294
    %v3297 = vsel %vm83, %v3295, 0.0
    %3298 = vadd.xlane.f32.xlu0 %v3297
    %v3299 = vpop.xlane.xlu0 %3298
    %v3300 = vsel %vm83, %v3296, 0.0
    %3301 = vadd.xlane.f32.xlu0 %v3300
    %v3302 = vpop.xlane.xlu0 %3301
    %v3303 = vmul.f32 %v3299, %v3290
    %v3304 = vmul.f32 %v3302, %v3290
    %v3305 = vadd.f32 %v3303, 1e-05
    %v3306 = vadd.f32 %v3304, 1e-05
    %v3307 = vrsqrt.pop %v3305
    %v3308 = vrsqrt.pop %v3306
    %v3309 = vmul.f32 %v3293, %v3307
    %v3310 = vmul.f32 %v3294, %v3308
    %v3311 = vld [vmem:[%s10] sm:$0x1]
    %v3313 = vlaneseq
    %v3314 = vshrl.u32 %v3313, 7
    %v3315 = vsub.s32 0, %v3314
    %v3316 = vrot.slane %v3311, %v3315
    %v3318 = vmul.f32 %v3309, %v3316
    %v3319 = vmul.f32 %v3310, %v3316
    %v3320 = vld [vmem:[%s11] sm:$0x1]
    %v3322 = vlaneseq
    %v3323 = vshrl.u32 %v3322, 7
    %v3324 = vsub.s32 0, %v3323
    %v3325 = vrot.slane %v3320, %v3324
    %v3327 = vadd.f32 %v3318, %v3325
    %v3328 = vadd.f32 %v3319, %v3325
    %v3329 = vld [vmem:[%s12] sm:$0xff]
    %v3330 = vld [vmem:[%s12 + $0x8] sm:$0xff]
    %v3331 = vld [vmem:[%s12 + $0x10] sm:$0xff]
    %v3332 = vld [vmem:[%s12 + $0x18] sm:$0xff]
    %v3333 = vld [vmem:[%s12 + $0x20] sm:$0xff]
    %v3334 = vld [vmem:[%s12 + $0x28] sm:$0xff]
    %v3335 = vld [vmem:[%s12 + $0x30] sm:$0xff]
    %v3336 = vld [vmem:[%s12 + $0x38] sm:$0xff]
    %v3337 = vld [vmem:[%s13] sm:$0x1]
    %v3339 = vlaneseq
    %v3340 = vshrl.u32 %v3339, 7
    %v3341 = vsub.s32 0, %v3340
    %v3342 = vrot.slane %v3337, %v3341
    %v3345 = vsel %vm83, %v3327, 0
    %v3348 = vsel %vm83, %v3328, 0
    %3350 = vmatprep.subr.mxu0 0.0
    %3351 = vmatpush1.msra.mxu0 %v3329
    %3352 = vmatprep.subr.mxu0 0.0
    %3353 = vmatpush1.msra.mxu0 %v3330
    %3354 = vmatprep.subr.mxu0 0.0
    %3355 = vmatpush1.msra.mxu0 %v3331
    %3356 = vmatprep.subr.mxu0 0.0
    %3357 = vmatpush1.msra.mxu0 %v3332
    %3358 = vmatprep.subr.mxu0 0.0
    %3359 = vmatpush1.msra.mxu0 %v3333
    %3360 = vmatprep.subr.mxu0 0.0
    %3361 = vmatpush1.msra.mxu0 %v3334
    %3362 = vmatprep.subr.mxu0 0.0
    %3363 = vmatpush1.msra.mxu0 %v3335
    %3364 = vmatprep.subr.mxu0 0.0
    %3365 = vmatpush1.msra.mxu0 %v3336
    %3366 = vmatprep.subr.mxu0 0.0
    %3367 = vmatpush1.msra.mxu0 0.0
    %3368 = vmatprep.subr.mxu0 0.0
    %3369 = vmatpush1.msra.mxu0 0.0
    %3370 = vmatprep.subr.mxu0 0.0
    %3371 = vmatpush1.msra.mxu0 0.0
    %3372 = vmatprep.subr.mxu0 0.0
    %3373 = vmatpush1.msra.mxu0 0.0
    %3374 = vmatprep.subr.mxu0 0.0
    %3375 = vmatpush1.msra.mxu0 0.0
    %3376 = vmatprep.subr.mxu0 0.0
    %3377 = vmatpush1.msra.mxu0 0.0
    %3378 = vmatprep.subr.mxu0 0.0
    %3379 = vmatpush1.msra.mxu0 0.0
    %3380 = vmatprep.subr.mxu0 0.0
    %3381 = vmatpush1.msra.mxu0 0.0
    %3382 = vmatprep.subr.mxu0 0.0
    %3383 = vmatpush1.msra.mxu0 0.0
    %3384 = vmatprep.subr.mxu0 0.0
    %3385 = vmatpush1.msra.mxu0 0.0
    %3386 = vmatprep.subr.mxu0 0.0
    %3387 = vmatpush1.msra.mxu0 0.0
    %3388 = vmatprep.subr.mxu0 0.0
    %3389 = vmatpush1.msra.mxu0 0.0
    %3390 = vmatprep.subr.mxu0 0.0
    %3391 = vmatpush1.msra.mxu0 0.0
    %3392 = vmatprep.subr.mxu0 0.0
    %3393 = vmatpush1.msra.mxu0 0.0
    %3394 = vmatprep.subr.mxu0 0.0
    %3395 = vmatpush1.msra.mxu0 0.0
    %3396 = vmatprep.subr.mxu0 0.0
    %3397 = vmatpush1.msra.mxu0 0.0
    %3398 = vmatprep.subr.mxu0 0.0
    %3399 = vmatpush1.msra.mxu0 0.0
    %3400 = vmatprep.subr.mxu0 0.0
    %3401 = vmatpush1.msra.mxu0 0.0
    %3402 = vmatprep.subr.mxu0 0.0
    %3403 = vmatpush1.msra.mxu0 0.0
    %3404 = vmatprep.subr.mxu0 0.0
    %3405 = vmatpush1.msra.mxu0 0.0
    %3406 = vmatprep.subr.mxu0 0.0
    %3407 = vmatpush1.msra.mxu0 0.0
    %3408 = vmatprep.subr.mxu0 0.0
    %3409 = vmatpush1.msra.mxu0 0.0
    %3410 = vmatprep.subr.mxu0 0.0
    %3411 = vmatpush1.msra.mxu0 0.0
    %3412 = vmatprep.subr.mxu0 0.0
    %3413 = vmatpush1.msra.mxu0 0.0
    %3414 = vmatprep.mubr.f32.mxu0 0.0
    %3415 = vmatmul.mubr.f32.gmra.mrb[0].mxu0 %v3345
    %v3416 = vpop.f32.mrb[0].mxu0
    %v3417 = vadd.f32 %v3342, %v3416
    %v3418 = vpop.f32.mrb[0].mxu0
    %3419 = vmatprep.mubr.f32.mxu0 0.0
    %3420 = vmatmul.mubr.f32.gmra.mrb[0].mxu0 %v3348
    %v3421 = vpop.f32.mrb[0].mxu0
    %v3422 = vadd.f32 %v3342, %v3421
    %v3423 = vpop.f32.mrb[0].mxu0
    %3424 = vdwg.mxu0
    %v3425 = vtanh.pop %v3417
    %v3426 = vtanh.pop %v3422
    %v3427 = vld [vmem:[%s14] sm:$0x1]
    %v3429 = vlaneseq
    %v3430 = vshrl.u32 %v3429, 7
    %v3431 = vsub.s32 0, %v3430
    %v3432 = vrot.slane %v3427, %v3431
    %v3434 = vmul.f32 %v3425, %v3432
    %v3435 = vmul.f32 %v3426, %v3432
    %v3436 = vsel %vm83, %v3434, 0.0
    %3437 = vadd.xlane.f32.xlu0 %v3436
    %v3438 = vpop.xlane.xlu0 %3437
    %v3439 = vsel %vm83, %v3435, 0.0
    %3440 = vadd.xlane.f32.xlu0 %v3439
    %v3441 = vpop.xlane.xlu0 %3440
    %v3442 = vld [vmem:[#allocation4] sm:$0x1]
    %v3444 = vlaneseq
    %v3445 = vshrl.u32 %v3444, 7
    %v3446 = vsub.s32 0, %v3445
    %v3447 = vrot.slane %v3442, %v3446
    %v3449 = vadd.f32 %v3438, %v3447
    %v3450 = vadd.f32 %v3441, %v3447
    %vm3451 = vcmask 7168
    %v3452 = vsel %vm3451, %v3449, -inf
    %v3453 = vrot.slane %v3452, 4
    %v3454 = vmax.f32 %v3452, %v3453
    %v3455 = vrot.slane %v3454, 2
    %v3456 = vmax.f32 %v3454, %v3455
    %v3457 = vrot.slane %v3456, 1
    %v3458 = vmax.f32 %v3456, %v3457
    %v3459 = vsub.f32 %v3449, %v3458
    %v3460 = vmul.f32 %v3459, 1.442695
    %v3461 = vpow.pop %v3460
    %v3462 = vsel %vm3451, %v3461, 0.0
    %v3463 = vrot.slane %v3462, 4
    %v3464 = vadd.f32 %v3462, %v3463
    %v3465 = vrot.slane %v3464, 2
    %v3466 = vadd.f32 %v3464, %v3465
    %v3467 = vrot.slane %v3466, 1
    %v3468 = vadd.f32 %v3466, %v3467
    %v3469 = vrcp.pop %v3468
    %v3470 = vmul.f32 %v3461, %v3469
    %3472 = vset.pattern.permute.xlu0 0
    %3473 = vperm.xlu0 %3472, %v3470
    %v3474 = vpop.permute.xlu0 %3473
    %v3476 = vmul.f32 %v3474, %v3327
    %v3477 = vsel %vm83, %v3476, 0.0
    %v3478 = vrot.slane %v3477, 4
    %v3479 = vadd.f32 %v3477, %v3478
    %v3480 = vrot.slane %v3479, 2
    %v3481 = vadd.f32 %v3479, %v3480
    %v3482 = vrot.slane %v3481, 1
    %v3483 = vadd.f32 %v3481, %v3482
    %v3484 = vsel %vm3451, %v3450, -inf
    %v3485 = vrot.slane %v3484, 4
    %v3486 = vmax.f32 %v3484, %v3485
    %v3487 = vrot.slane %v3486, 2
    %v3488 = vmax.f32 %v3486, %v3487
    %v3489 = vrot.slane %v3488, 1
    %v3490 = vmax.f32 %v3488, %v3489
    %v3491 = vsub.f32 %v3450, %v3490
    %v3492 = vmul.f32 %v3491, 1.442695
    %v3493 = vpow.pop %v3492
    %v3494 = vsel %vm3451, %v3493, 0.0
    %v3495 = vrot.slane %v3494, 4
    %v3496 = vadd.f32 %v3494, %v3495
    %v3497 = vrot.slane %v3496, 2
    %v3498 = vadd.f32 %v3496, %v3497
    %v3499 = vrot.slane %v3498, 1
    %v3500 = vadd.f32 %v3498, %v3499
    %v3501 = vrcp.pop %v3500
    %v3502 = vmul.f32 %v3493, %v3501
    %3504 = vset.pattern.permute.xlu0 0
    %3505 = vperm.xlu0 %3504, %v3502
    %v3506 = vpop.permute.xlu0 %3505
    %v3508 = vmul.f32 %v3506, %v3328
    %v3509 = vsel %vm83, %v3508, 0.0
    %v3510 = vrot.slane %v3509, 4
    %v3511 = vadd.f32 %v3509, %v3510
    %v3512 = vrot.slane %v3511, 2
    %v3513 = vadd.f32 %v3511, %v3512
    %v3514 = vrot.slane %v3513, 1
    %v3515 = vadd.f32 %v3513, %v3514
    %vm3516 = vcmask 1040384
    %v3517 = vsel %vm3516, %v3483, %v3515
    %v3518 = vld [vmem:[%s16] sm:$0xff]
    %v3519 = vld [vmem:[%s16 + $0x8] sm:$0xff]
    %v3520 = vld [vmem:[%s16 + $0x10] sm:$0xff]
    %v3521 = vld [vmem:[%s16 + $0x18] sm:$0xff]
    %v3522 = vld [vmem:[%s16 + $0x20] sm:$0xff]
    %v3523 = vld [vmem:[%s16 + $0x28] sm:$0xff]
    %v3524 = vld [vmem:[%s16 + $0x30] sm:$0xff]
    %v3525 = vld [vmem:[%s16 + $0x38] sm:$0xff]
    %v3526 = vld [vmem:[%s17] sm:$0x1]
    %v3528 = vlaneseq
    %v3529 = vshrl.u32 %v3528, 7
    %v3530 = vsub.s32 0, %v3529
    %v3531 = vrot.slane %v3526, %v3530
    %v3534 = vsel %vm83, %v3517, 0
    %3536 = vmatprep.subr.mxu0 0.0
    %3537 = vmatpush1.msra.mxu0 %v3518
    %3538 = vmatprep.subr.mxu0 0.0
    %3539 = vmatpush1.msra.mxu0 %v3519
    %3540 = vmatprep.subr.mxu0 0.0
    %3541 = vmatpush1.msra.mxu0 %v3520
    %3542 = vmatprep.subr.mxu0 0.0
    %3543 = vmatpush1.msra.mxu0 %v3521
    %3544 = vmatprep.subr.mxu0 0.0
    %3545 = vmatpush1.msra.mxu0 %v3522
    %3546 = vmatprep.subr.mxu0 0.0
    %3547 = vmatpush1.msra.mxu0 %v3523
    %3548 = vmatprep.subr.mxu0 0.0
    %3549 = vmatpush1.msra.mxu0 %v3524
    %3550 = vmatprep.subr.mxu0 0.0
    %3551 = vmatpush1.msra.mxu0 %v3525
    %3552 = vmatprep.subr.mxu0 0.0
    %3553 = vmatpush1.msra.mxu0 0.0
    %3554 = vmatprep.subr.mxu0 0.0
    %3555 = vmatpush1.msra.mxu0 0.0
    %3556 = vmatprep.subr.mxu0 0.0
    %3557 = vmatpush1.msra.mxu0 0.0
    %3558 = vmatprep.subr.mxu0 0.0
    %3559 = vmatpush1.msra.mxu0 0.0
    %3560 = vmatprep.subr.mxu0 0.0
    %3561 = vmatpush1.msra.mxu0 0.0
    %3562 = vmatprep.subr.mxu0 0.0
    %3563 = vmatpush1.msra.mxu0 0.0
    %3564 = vmatprep.subr.mxu0 0.0
    %3565 = vmatpush1.msra.mxu0 0.0
    %3566 = vmatprep.subr.mxu0 0.0
    %3567 = vmatpush1.msra.mxu0 0.0
    %3568 = vmatprep.subr.mxu0 0.0
    %3569 = vmatpush1.msra.mxu0 0.0
    %3570 = vmatprep.subr.mxu0 0.0
    %3571 = vmatpush1.msra.mxu0 0.0
    %3572 = vmatprep.subr.mxu0 0.0
    %3573 = vmatpush1.msra.mxu0 0.0
    %3574 = vmatprep.subr.mxu0 0.0
    %3575 = vmatpush1.msra.mxu0 0.0
    %3576 = vmatprep.subr.mxu0 0.0
    %3577 = vmatpush1.msra.mxu0 0.0
    %3578 = vmatprep.subr.mxu0 0.0
    %3579 = vmatpush1.msra.mxu0 0.0
    %3580 = vmatprep.subr.mxu0 0.0
    %3581 = vmatpush1.msra.mxu0 0.0
    %3582 = vmatprep.subr.mxu0 0.0
    %3583 = vmatpush1.msra.mxu0 0.0
    %3584 = vmatprep.subr.mxu0 0.0
    %3585 = vmatpush1.msra.mxu0 0.0
    %3586 = vmatprep.subr.mxu0 0.0
    %3587 = vmatpush1.msra.mxu0 0.0
    %3588 = vmatprep.subr.mxu0 0.0
    %3589 = vmatpush1.msra.mxu0 0.0
    %3590 = vmatprep.subr.mxu0 0.0
    %3591 = vmatpush1.msra.mxu0 0.0
    %3592 = vmatprep.subr.mxu0 0.0
    %3593 = vmatpush1.msra.mxu0 0.0
    %3594 = vmatprep.subr.mxu0 0.0
    %3595 = vmatpush1.msra.mxu0 0.0
    %3596 = vmatprep.subr.mxu0 0.0
    %3597 = vmatpush1.msra.mxu0 0.0
    %3598 = vmatprep.subr.mxu0 0.0
    %3599 = vmatpush1.msra.mxu0 0.0
    %3600 = vmatprep.mubr.f32.mxu0 0.0
    %3601 = vmatmul.mubr.f32.gmra.mrb[0].mxu0 %v3534
    %v3602 = vpop.f32.mrb[0].mxu0
    %v3603 = vadd.f32 %v3531, %v3602
    %v3604 = vpop.f32.mrb[0].mxu0
    %3605 = vdwg.mxu0
    %v3606 = vmax.f32 %v3603, 0.0
    %v3607 = vsel %vm413, %v3606, 0.0
    %3608 = vadd.xlane.f32.xlu0 %v3607
    %v3609 = vpop.xlane.xlu0 %3608
    %v3610 = vrcp.pop 32.0
    %v3611 = vmul.f32 %v3609, %v3610
    %v3612 = vsub.f32 %v3606, %v3611
    %v3613 = vmul.f32 %v3612, %v3612
    %v3614 = vsel %vm413, %v3613, 0.0
    %3615 = vadd.xlane.f32.xlu0 %v3614
    %v3616 = vpop.xlane.xlu0 %3615
    %v3617 = vmul.f32 %v3616, %v3610
    %v3618 = vadd.f32 %v3617, 1e-05
    %v3619 = vrsqrt.pop %v3618
    %v3620 = vmul.f32 %v3612, %v3619
    %v3621 = vld [vmem:[%s18] sm:$0x1]
    %v3623 = vlaneseq
    %v3624 = vshrl.u32 %v3623, 7
    %v3625 = vsub.s32 0, %v3624
    %v3626 = vrot.slane %v3621, %v3625
    %v3628 = vmul.f32 %v3620, %v3626
    %v3629 = vld [vmem:[%s19] sm:$0x1]
    %v3631 = vlaneseq
    %v3632 = vshrl.u32 %v3631, 7
    %v3633 = vsub.s32 0, %v3632
    %v3634 = vrot.slane %v3629, %v3633
    %v3636 = vadd.f32 %v3628, %v3634
    %v3637 = vld [vmem:[%s20] sm:$0xff]
    %v3638 = vld [vmem:[%s20 + $0x8] sm:$0xff]
    %v3639 = vld [vmem:[%s20 + $0x10] sm:$0xff]
    %v3640 = vld [vmem:[%s20 + $0x18] sm:$0xff]
    %v3641 = vld [vmem:[%s21] sm:$0x1]
    %v3643 = vlaneseq
    %v3644 = vshrl.u32 %v3643, 7
    %v3645 = vsub.s32 0, %v3644
    %v3646 = vrot.slane %v3641, %v3645
    %v3649 = vsel %vm410, %v3636, 0
    %3651 = vmatprep.subr.mxu0 0.0
    %3652 = vmatpush1.msra.mxu0 %v3637
    %3653 = vmatprep.subr.mxu0 0.0
    %3654 = vmatpush1.msra.mxu0 %v3638
    %3655 = vmatprep.subr.mxu0 0.0
    %3656 = vmatpush1.msra.mxu0 %v3639
    %3657 = vmatprep.subr.mxu0 0.0
    %3658 = vmatpush1.msra.mxu0 %v3640
    %3659 = vmatprep.subr.mxu0 0.0
    %3660 = vmatpush1.msra.mxu0 0.0
    %3661 = vmatprep.subr.mxu0 0.0
    %3662 = vmatpush1.msra.mxu0 0.0
    %3663 = vmatprep.subr.mxu0 0.0
    %3664 = vmatpush1.msra.mxu0 0.0
    %3665 = vmatprep.subr.mxu0 0.0
    %3666 = vmatpush1.msra.mxu0 0.0
    %3667 = vmatprep.subr.mxu0 0.0
    %3668 = vmatpush1.msra.mxu0 0.0
    %3669 = vmatprep.subr.mxu0 0.0
    %3670 = vmatpush1.msra.mxu0 0.0
    %3671 = vmatprep.subr.mxu0 0.0
    %3672 = vmatpush1.msra.mxu0 0.0
    %3673 = vmatprep.subr.mxu0 0.0
    %3674 = vmatpush1.msra.mxu0 0.0
    %3675 = vmatprep.subr.mxu0 0.0
    %3676 = vmatpush1.msra.mxu0 0.0
    %3677 = vmatprep.subr.mxu0 0.0
    %3678 = vmatpush1.msra.mxu0 0.0
    %3679 = vmatprep.subr.mxu0 0.0
    %3680 = vmatpush1.msra.mxu0 0.0
    %3681 = vmatprep.subr.mxu0 0.0
    %3682 = vmatpush1.msra.mxu0 0.0
    %3683 = vmatprep.subr.mxu0 0.0
    %3684 = vmatpush1.msra.mxu0 0.0
    %3685 = vmatprep.subr.mxu0 0.0
    %3686 = vmatpush1.msra.mxu0 0.0
    %3687 = vmatprep.subr.mxu0 0.0
    %3688 = vmatpush1.msra.mxu0 0.0
    %3689 = vmatprep.subr.mxu0 0.0
    %3690 = vmatpush1.msra.mxu0 0.0
    %3691 = vmatprep.subr.mxu0 0.0
    %3692 = vmatpush1.msra.mxu0 0.0
    %3693 = vmatprep.subr.mxu0 0.0
    %3694 = vmatpush1.msra.mxu0 0.0
    %3695 = vmatprep.subr.mxu0 0.0
    %3696 = vmatpush1.msra.mxu0 0.0
    %3697 = vmatprep.subr.mxu0 0.0
    %3698 = vmatpush1.msra.mxu0 0.0
    %3699 = vmatprep.subr.mxu0 0.0
    %3700 = vmatpush1.msra.mxu0 0.0
    %3701 = vmatprep.subr.mxu0 0.0
    %3702 = vmatpush1.msra.mxu0 0.0
    %3703 = vmatprep.subr.mxu0 0.0
    %3704 = vmatpush1.msra.mxu0 0.0
    %3705 = vmatprep.subr.mxu0 0.0
    %3706 = vmatpush1.msra.mxu0 0.0
    %3707 = vmatprep.subr.mxu0 0.0
    %3708 = vmatpush1.msra.mxu0 0.0
    %3709 = vmatprep.subr.mxu0 0.0
    %3710 = vmatpush1.msra.mxu0 0.0
    %3711 = vmatprep.subr.mxu0 0.0
    %3712 = vmatpush1.msra.mxu0 0.0
    %3713 = vmatprep.subr.mxu0 0.0
    %3714 = vmatpush1.msra.mxu0 0.0
    %3715 = vmatprep.mubr.f32.mxu0 0.0
    %3716 = vmatmul.mubr.f32.gmra.mrb[0].mxu0 %v3649
    %v3717 = vpop.f32.mrb[0].mxu0
    %v3718 = vadd.f32 %v3646, %v3717
    %v3719 = vpop.f32.mrb[0].mxu0
    %3720 = vdwg.mxu0
    %vm3721 = vcmask 123904
    %3722 = vst.msk [vmem:[#allocation5] sm:$0x3] %vm3721, %v3718
    // Predicated region
    $region90: #{pallas_forward.1} parent=1 // pred_check
      _
    $region91: #{pallas_forward.1} parent=1 // pred_check_branch
      %3724 = sbr.rel (0) target = $region93
    $region92: #{pallas_forward.1} parent=1 // pred_region
      %s3726 = ssub.s32 32, 32
      %3727 = vsyncadd [#allocation6], %s3726
      %s3729 = sshll.u32 [#allocation5], 4
      %s3730 = int_to_ptr.vmem [resolvable:$true] %s3729
      %3732 = dma.vmem_to_hbm [thread:$0]  %s3730, 32, %s22, [#allocation6]
    $region93: #{pallas_forward.1} parent=1 // pred_fallthru
      _
    // Predicated region
    $region94: #{pallas_forward.1} parent=1 // pred_check
      _
    $region95: #{pallas_forward.1} parent=1 // pred_check_branch
      %3734 = sbr.rel (0) target = $region97
    $region96: #{pallas_forward.1} parent=1 // pred_region
      %3735 = dma.done [#allocation6], 32
    $region97: #{pallas_forward.1} parent=1 // pred_fallthru
      _
    %3736 = vsyncpa [#allocation6], 1

</llo_original>
